<compile_context>
chip_gen: v7x
topology: tpu7x:2x2x1
jax: 0.10.0
libtpu: 0.0.40
codegen_flags: <defaults>
</compile_context>

<pallas_src>
import functools

import jax
import jax.numpy as jnp
from jax.experimental import pallas as pl
from jax.experimental.pallas import tpu as pltpu

CIN_PAD = 8  # merged input channels: geo(3) | attr(3) | zero-pad(2)


def pt_kernel(ga_ref,
              w_in_ref, b_in_ref,
              w_pe1_ref, b_pe1_ref,
              w_peM_ref, b_peM_ref,
              w_peA_ref, b_peA_ref,
              w_emb_ref, b_emb_ref,
              w_kv_ref, b_kv_ref,
              w_we1_ref, b_we1_ref,
              w_we2_ref, b_we2_ref,
              w_res_ref, b_res_ref,
              o_ref, *, n_layers, tbm, K, C, matmul_dtype, approx_recip):
    """One grid step processes tbm (b, m) groups (N = tbm*K rows), full C."""
    N = tbm * K
    C2 = 2 * C

    def cast(x):
        return x.astype(matmul_dtype)

    def mm(x, w, b):
        # MXU matmul in matmul_dtype (bf16 or f32), f32 accumulation + f32 bias.
        return jnp.dot(cast(x), cast(w), preferred_element_type=jnp.float32) + b

    def relu(x):
        return jnp.maximum(x, 0.0)

    ga = ga_ref[...]                                   # [N, 8]: geo|attr|pad

    # linear_in: Conv2d(in_channel, out_channel, 1); weight rows select attr.
    feature = mm(ga, w_in_ref[...], b_in_ref[...])     # [N, C]

    # Position encodings depend only on geo -> hoisted out of the layer loop
    # and widened to lane-dense matmuls.  Per-layer layout (2C lanes each):
    #   peM[:, l*2C:(l+1)*2C] = [pem_l | 1]
    #   peA[:, l*2C:(l+1)*2C] = [peb_l | peb_l]
    # Stored in matmul_dtype (bf16 on the fast path) to halve VMEM residency.
    h = relu(mm(ga, w_pe1_ref[...], b_pe1_ref[...]))   # [N, L*2C]
    peM = mm(h, w_peM_ref[...], b_peM_ref[...]).astype(matmul_dtype)
    peA = mm(h, w_peA_ref[...], b_peA_ref[...]).astype(matmul_dtype)

    if n_layers == 0:
        o_ref[...] = feature.reshape(tbm, K, C).sum(axis=1)
        return

    for l in range(n_layers):                          # static unroll
        identity = feature

        # sa_emb_ls[l]: Conv2d + ReLU
        f = relu(mm(feature, w_emb_ref[l], b_emb_ref[l]))      # [N, C]

        # QueryMaskedAttention, packed 2C lanes wide:
        kv = mm(f, w_kv_ref[l], b_kv_ref[l])                   # [key | value]
        rv = kv * peM[:, l * C2:(l + 1) * C2] + peA[:, l * C2:(l + 1) * C2]
        # rv = [key*pem + peb | value + peb] = [relation_qk | value]

        # weight_encoding: first conv reads only the rel half of rv (the value
        # half of w_we1 is zero rows); second conv is a real [C, C] matmul.
        w1 = relu(mm(rv, w_we1_ref[l], b_we1_ref[l]))          # [N, C]
        w2 = mm(w1, w_we2_ref[l], b_we2_ref[l])                # [N, C]

        # softmax over K (torch dim=2), per lane, in f32, C lanes only.
        w3 = w2.reshape(tbm, K, C)
        w3 = w3 - jnp.max(w3, axis=1, keepdims=True)
        e = jnp.exp(w3)
        denom = jnp.sum(e, axis=1, keepdims=True)
        if approx_recip:
            score = (e * pl.reciprocal(denom, approx=True)).reshape(N, C)
        else:
            score = (e / denom).reshape(N, C)

        # residual_emb: ReLU -> Conv2d, on the value half only.
        val = rv[:, C:]                                        # [N, C]
        feat = relu(score * val)                               # [N, C]

        if l == n_layers - 1:
            # sum-over-K commutes with the res matmul: K x fewer MXU pushes.
            feat_s = feat.reshape(tbm, K, C).sum(axis=1)        # [tbm, C]
            id_s = identity.reshape(tbm, K, C).sum(axis=1)      # [tbm, C]
            o_ref[...] = mm(feat_s, w_res_ref[l], b_res_ref[l] * K) + id_s
        else:
            feature = mm(feat, w_res_ref[l], b_res_ref[l]) + identity


def fuse_params(params, *, n_layers, matmul_dtype=jnp.bfloat16):
    """Build lane-fused weights (trace-time, zero runtime cost).

    Layouts (C = out_channel, C2 = 2*C, L = n_layers):
      w_in  [8, C]       : rows 3:6 = linear_in (reads the attr channels)
      w_pe1 [8, L*C2]    : rows 0:3 = [Wpm1_l | Wpb1_l]_l (reads geo channels)
      w_peM [L*C2, L*C2] : block-diag, emits [pem_l | 1]_l
      w_peA [L*C2, L*C2] : block-diag, emits [peb_l | peb_l]_l
      w_kv  [L, C, C2]   : [Wk | Wv]              -> kv = [key | value]
      w_we1 [L, C2, C]   : [Wwe1 ; 0]  (reads the rel half of rv)
      w_we2 [L, C, C]    : real second weight-encoding conv
      w_res [L, C, C]    : real residual-emb conv (applied to the value half)
    """
    C = params["w_in"].shape[1]
    C2 = 2 * C
    L = n_layers
    Wcc = params["w_cc"]   # [L, 8, C, C]: 0 emb,1 k,2 v,3 pm2,4 pb2,5 we1,6 we2,7 res
    W3 = params["w_c3"]    # [L, 2, 3, C]: 0 pm1, 1 pb1
    Bv = params["b"]       # [L, 10, C]: 0 emb,1 k,2 v,3 pm1,4 pm2,5 pb1,6 pb2,7 we1,8 we2,9 res

    w_in = jnp.zeros((CIN_PAD, C), jnp.float32).at[3:6].set(params["w_in"])
    b_in = params["b_in"]                                        # [1, C]

    w_pe1 = jnp.zeros((CIN_PAD, L * C2), jnp.float32)
    for l in range(L):
        w_pe1 = w_pe1.at[0:3, l * C2:l * C2 + C].set(W3[l, 0])
        w_pe1 = w_pe1.at[0:3, l * C2 + C:(l + 1) * C2].set(W3[l, 1])
    b_pe1 = jnp.concatenate(
        [jnp.concatenate([Bv[l, 3], Bv[l, 5]]) for l in range(L)])[None, :]

    w_peM = jnp.zeros((L * C2, L * C2), jnp.float32)
    w_peA = jnp.zeros((L * C2, L * C2), jnp.float32)
    b_peM = jnp.zeros((L * C2,), jnp.float32)
    b_peA = jnp.zeros((L * C2,), jnp.float32)
    for l in range(L):
        rm, rb = l * C2, l * C2 + C          # rows feeding from hpm_l / hpb_l
        cm, cb = l * C2, l * C2 + C          # cols for rel half / value half
        w_peM = w_peM.at[rm:rm + C, cm:cm + C].set(Wcc[l, 3])        # pem_l
        b_peM = b_peM.at[cm:cm + C].set(Bv[l, 4])
        b_peM = b_peM.at[cb:cb + C].set(1.0)                         # *1 for value
        w_peA = w_peA.at[rb:rb + C, cm:cm + C].set(Wcc[l, 4])        # +peb (rel)
        w_peA = w_peA.at[rb:rb + C, cb:cb + C].set(Wcc[l, 4])        # +peb (value)
        b_peA = b_peA.at[cm:cm + C].set(Bv[l, 6])
        b_peA = b_peA.at[cb:cb + C].set(Bv[l, 6])
    b_peM, b_peA = b_peM[None, :], b_peA[None, :]

    zc = jnp.zeros_like(Wcc[:, 0])           # [L, C, C]
    fp = dict(
        w_in=w_in, b_in=b_in,
        w_pe1=w_pe1, b_pe1=b_pe1,
        w_peM=w_peM, b_peM=b_peM,
        w_peA=w_peA, b_peA=b_peA,
        w_emb=Wcc[:, 0], b_emb=Bv[:, 0][:, None, :],
        w_kv=jnp.concatenate([Wcc[:, 1], Wcc[:, 2]], axis=2),
        b_kv=jnp.concatenate([Bv[:, 1], Bv[:, 2]], axis=1)[:, None, :],
        w_we1=jnp.concatenate([Wcc[:, 5], zc], axis=1),
        b_we1=Bv[:, 7][:, None, :],
        w_we2=Wcc[:, 6], b_we2=Bv[:, 8][:, None, :],
        w_res=Wcc[:, 7], b_res=Bv[:, 9][:, None, :],
    )
    if matmul_dtype != jnp.float32:
        # Pre-cast weight matrices (halves their DMA/VMEM); biases stay f32
        # since they are added after the f32-accumulating matmul.
        fp = {k: (v.astype(matmul_dtype) if k.startswith("w_") else v)
              for k, v in fp.items()}
    return fp


def _divisors(n):
    ds, d = set(), 1
    while d * d <= n:
        if n % d == 0:
            ds.add(d)
            ds.add(n // d)
        d += 1
    return sorted(ds)


def _choose_tiling(BM, K, C, n_layers, matmul_dtype, weight_bytes,
                   requested_tbm=None):
    """VMEM-model-driven tile choice; works for v5e/v6e (128 MiB) and v7x (64 MiB)."""
    try:
        cap = int(pltpu.get_tpu_info().vmem_capacity_bytes)
    except Exception:
        cap = 64 * 1024 * 1024                       # conservative (v7x) fallback
    vmem_limit = max(32 * 1024 * 1024, min(int(cap * 0.70), 96 * 1024 * 1024))
    budget = int(vmem_limit * 0.80)

    itemsize_w = 2 if matmul_dtype == jnp.bfloat16 else 4
    C2 = 2 * C
    # bytes of live per-(b,m,k)-row data during one grid step:
    per_row = (2 * 128 * 4                           # merged input, 2 pipeline bufs, lane-padded 8->128
               + 3 * n_layers * C2 * itemsize_w      # hoisted h / peM / peA
               + 6 * C2 * 4                          # kv / rv / intermediates (f32)
               + 4 * C * 4)                          # feature / identity / f / out (f32)
    avail = budget - 2 * weight_bytes                # weights may be double-buffered
    n_rows = max(K, avail // per_row)
    tbm_cap = max(1, n_rows // K)
    if requested_tbm is not None:
        tbm_cap = min(tbm_cap, int(requested_tbm))
    tbm_cap = min(tbm_cap, BM)

    # sublane-aligned divisors of BM (or the full extent)
    cands = [d for d in _divisors(BM) if d <= tbm_cap and (d % 8 == 0 or d == BM)]
    if not cands:
        cands = [d for d in _divisors(BM) if d <= tbm_cap] or [1]
    # prefer an even grid length >= 4 (>= 2 steps per TensorCore on v7x),
    # then >= 2 steps, then the largest legal tile.
    tbm = None
    for min_steps, want_even in ((4, True), (4, False), (2, True), (2, False), (1, False)):
        ok = [d for d in cands
              if BM // d >= min_steps and (not want_even or (BM // d) % 2 == 0)]
        if ok:
            tbm = max(ok)
            break
    if tbm is None:
        tbm = max(cands)
    return tbm, vmem_limit


def pt_forward(geo, attr, params, *, n_layers, tbm=None,
               matmul_dtype=jnp.bfloat16):
    B, M, K, _ = geo.shape
    C = params["w_in"].shape[1]
    BM = B * M

    fp = fuse_params(params, n_layers=n_layers, matmul_dtype=matmul_dtype)
    weight_names = ("w_in", "b_in", "w_pe1", "b_pe1", "w_peM", "b_peM",
                    "w_peA", "b_peA", "w_emb", "b_emb", "w_kv", "b_kv",
                    "w_we1", "b_we1", "w_we2", "b_we2", "w_res", "b_res")
    weights = [fp[n] for n in weight_names]
    weight_bytes = sum(int(w.size) * w.dtype.itemsize for w in weights)

    tbm, vmem_limit = _choose_tiling(BM, K, C, n_layers, matmul_dtype,
                                     weight_bytes, tbm)
    N = tbm * K

    # Merged geo|attr input: one HBM array, one DMA stream, half the lane-padded
    # (N,8)->128-lane VMEM input buffers.
    ga = jnp.concatenate(
        [geo, attr, jnp.zeros(geo.shape[:-1] + (CIN_PAD - 6,), geo.dtype)],
        axis=-1).reshape(BM * K, CIN_PAD)

    # Weight index_maps are constant across the grid, so Pallas keeps them
    # resident and never re-DMAs them after the first step.
    def const_spec(a):
        return pl.BlockSpec(a.shape, lambda i, _n=a.ndim: (0,) * _n)

    approx_recip = (matmul_dtype != jnp.float32)
    kernel = functools.partial(pt_kernel, n_layers=n_layers, tbm=tbm, K=K, C=C,
                               matmul_dtype=matmul_dtype,
                               approx_recip=approx_recip)

    # Advisory cost estimate for XLA scheduling around the custom call.
    NK = BM * K
    C2L = 2 * C * n_layers
    flops = int(2 * NK * (CIN_PAD * C + CIN_PAD * C2L + 2 * C2L * C2L
                          + n_layers * 7 * C * C))
    transcendentals = int(NK * C * n_layers)
    bytes_accessed = int(ga.size * ga.dtype.itemsize + BM * C * 4 + weight_bytes)

    # NOTE: the (tbm, C) output block is lane-sparse (C=32 < 128), but output
    # traffic is <3% of total bytes and the kernel is MXU-bound after fusion,
    # so a lane-dense [tbm,C]->[1,tbm*C] relayout was deliberately not added.
    out = pl.pallas_call(
        kernel,
        out_shape=jax.ShapeDtypeStruct((BM, C), jnp.float32),
        grid=(BM // tbm,),
        in_specs=[pl.BlockSpec((N, CIN_PAD), lambda i: (i, 0))]   # merged geo|attr
                 + [const_spec(w) for w in weights],
        out_specs=pl.BlockSpec((tbm, C), lambda i: (i, 0)),
        compiler_params=pltpu.CompilerParams(
            dimension_semantics=("parallel",),
            vmem_limit_bytes=vmem_limit),
        cost_estimate=pl.CostEstimate(flops=flops,
                                      transcendentals=transcendentals,
                                      bytes_accessed=bytes_accessed),
    )(ga, *weights)
    return out.reshape(B, M, C)


def init_params(key, C, L):
    """Deterministic synthetic weights. Conv2d(Ci, Co, 1) is stored as [Ci, Co]
    (already transposed for x @ W), biases as trailing-[C] vectors."""
    ks = jax.random.split(key, 5)
    s = 0.1
    w_in = jax.random.normal(ks[0], (3, C), jnp.float32) * s
    b_in = jax.random.normal(ks[1], (1, C), jnp.float32) * s
    # per-layer CxC weights: 0 emb, 1 k, 2 v, 3 pm2, 4 pb2, 5 we1, 6 we2, 7 res
    w_cc = jax.random.normal(ks[2], (L, 8, C, C), jnp.float32) * s
    # per-layer 3->C weights: 0 pm1, 1 pb1
    w_c3 = jax.random.normal(ks[3], (L, 2, 3, C), jnp.float32) * s
    # per-layer biases: 0 emb,1 k,2 v,3 pm1,4 pm2,5 pb1,6 pb2,7 we1,8 we2,9 res
    b = jax.random.normal(ks[4], (L, 10, C), jnp.float32) * s
    return dict(w_in=w_in, b_in=b_in, w_cc=w_cc, w_c3=w_c3, b=b)


def pt_reference(geo, attr, params, n_layers):
    """Pure-JAX reference with identical math (channels-last, unfused)."""
    B, M, K, _ = geo.shape
    C = params["w_in"].shape[1]
    geo2 = geo.reshape(B * M, K, 3)
    attr2 = attr.reshape(B * M, K, 3)
    w_cc, w_c3, b = params["w_cc"], params["w_c3"], params["b"]
    mm = lambda x, w, bb: jnp.einsum("nkd,dc->nkc", x, w) + bb
    relu = lambda x: jnp.maximum(x, 0.0)

    feature = mm(attr2, params["w_in"], params["b_in"][0])
    for l in range(n_layers):
        identity = feature
        f = relu(mm(feature, w_cc[l, 0], b[l, 0]))
        key = mm(f, w_cc[l, 1], b[l, 1])
        value = mm(f, w_cc[l, 2], b[l, 2])
        pem = mm(relu(mm(geo2, w_c3[l, 0], b[l, 3])), w_cc[l, 3], b[l, 4])
        peb = mm(relu(mm(geo2, w_c3[l, 1], b[l, 5])), w_cc[l, 4], b[l, 6])
        rel = key * pem + peb
        value = value + peb
        w = mm(relu(mm(rel, w_cc[l, 5], b[l, 7])), w_cc[l, 6], b[l, 8])
        score = jax.nn.softmax(w, axis=1)
        out = mm(relu(score * value), w_cc[l, 7], b[l, 9])
        feature = out + identity
    return feature.sum(axis=1).reshape(B, M, C)


if __name__ == "__main__":
    B, M, K, C, L = 2, 8, 16, 32, 2
    root = jax.random.PRNGKey(0)
    k_geo, k_attr, k_par = jax.random.split(root, 3)
    geo = jax.random.normal(k_geo, (B, M, K, 3), jnp.float32)
    attr = jax.random.normal(k_attr, (B, M, K, 3), jnp.float32)
    params = init_params(k_par, C, L)

    ref = pt_reference(geo, attr, params, L)

    # f32 MXU operands + exact softmax divide: module-faithful numerics check.
    out_f32 = jax.block_until_ready(
        pt_forward(geo, attr, params, n_layers=L, matmul_dtype=jnp.float32))
    assert out_f32.shape == (B, M, C), out_f32.shape
    err = float(jnp.max(jnp.abs(out_f32 - ref)))
    assert jnp.allclose(out_f32, ref, rtol=1e-4, atol=1e-4), f"f32 max_err={err}"

    # Default fast path: bf16 MXU operands (all element-wise/softmax math f32).
    out = jax.block_until_ready(pt_forward(geo, attr, params, n_layers=L))
    assert out.shape == (B, M, C), out.shape
    err_bf = float(jnp.max(jnp.abs(out - ref)))
    assert jnp.allclose(out, ref, rtol=1.5e-1, atol=1.5e-1), f"bf16 max_err={err_bf}"

    print("KERNEL_OK")
</pallas_src>

<mosaic_0001>
module attributes {stable_mosaic.version = 11 : i64} {
  func.func @pt_kernel(%arg0: i32, %arg1: memref<128x8xf32, #tpu.memory_space<vmem>>, %arg2: memref<8x32xf32, #tpu.memory_space<vmem>>, %arg3: memref<1x32xf32, #tpu.memory_space<vmem>>, %arg4: memref<8x128xf32, #tpu.memory_space<vmem>>, %arg5: memref<1x128xf32, #tpu.memory_space<vmem>>, %arg6: memref<128x128xf32, #tpu.memory_space<vmem>>, %arg7: memref<1x128xf32, #tpu.memory_space<vmem>>, %arg8: memref<128x128xf32, #tpu.memory_space<vmem>>, %arg9: memref<1x128xf32, #tpu.memory_space<vmem>>, %arg10: memref<2x32x32xf32, #tpu.memory_space<vmem>>, %arg11: memref<2x1x32xf32, #tpu.memory_space<vmem>>, %arg12: memref<2x32x64xf32, #tpu.memory_space<vmem>>, %arg13: memref<2x1x64xf32, #tpu.memory_space<vmem>>, %arg14: memref<2x64x32xf32, #tpu.memory_space<vmem>>, %arg15: memref<2x1x32xf32, #tpu.memory_space<vmem>>, %arg16: memref<2x32x32xf32, #tpu.memory_space<vmem>>, %arg17: memref<2x1x32xf32, #tpu.memory_space<vmem>>, %arg18: memref<2x32x32xf32, #tpu.memory_space<vmem>>, %arg19: memref<2x1x32xf32, #tpu.memory_space<vmem>>, %arg20: memref<8x32xf32, #tpu.memory_space<vmem>>) attributes {dimension_semantics = [#tpu.dimension_semantics<parallel>], iteration_bounds = array<i64: 2>, scalar_prefetch = 0 : i64, scratch_operands = 0 : i64, tpu.core_type = #tpu.core_type<tc>, window_params = [{transform_indices = @transform_0, window_bounds = array<i64: 128, 8>}, {pipeline_mode = #tpu.pipeline_mode<synchronous>, transform_indices = @transform_1, window_bounds = array<i64: 8, 32>}, {pipeline_mode = #tpu.pipeline_mode<synchronous>, transform_indices = @transform_2, window_bounds = array<i64: 1, 32>}, {pipeline_mode = #tpu.pipeline_mode<synchronous>, transform_indices = @transform_3, window_bounds = array<i64: 8, 128>}, {pipeline_mode = #tpu.pipeline_mode<synchronous>, transform_indices = @transform_4, window_bounds = array<i64: 1, 128>}, {pipeline_mode = #tpu.pipeline_mode<synchronous>, transform_indices = @transform_5, window_bounds = array<i64: 128, 128>}, {pipeline_mode = #tpu.pipeline_mode<synchronous>, transform_indices = @transform_6, window_bounds = array<i64: 1, 128>}, {pipeline_mode = #tpu.pipeline_mode<synchronous>, transform_indices = @transform_7, window_bounds = array<i64: 128, 128>}, {pipeline_mode = #tpu.pipeline_mode<synchronous>, transform_indices = @transform_8, window_bounds = array<i64: 1, 128>}, {pipeline_mode = #tpu.pipeline_mode<synchronous>, transform_indices = @transform_9, window_bounds = array<i64: 2, 32, 32>}, {pipeline_mode = #tpu.pipeline_mode<synchronous>, transform_indices = @transform_10, window_bounds = array<i64: 2, 1, 32>}, {pipeline_mode = #tpu.pipeline_mode<synchronous>, transform_indices = @transform_11, window_bounds = array<i64: 2, 32, 64>}, {pipeline_mode = #tpu.pipeline_mode<synchronous>, transform_indices = @transform_12, window_bounds = array<i64: 2, 1, 64>}, {pipeline_mode = #tpu.pipeline_mode<synchronous>, transform_indices = @transform_13, window_bounds = array<i64: 2, 64, 32>}, {pipeline_mode = #tpu.pipeline_mode<synchronous>, transform_indices = @transform_14, window_bounds = array<i64: 2, 1, 32>}, {pipeline_mode = #tpu.pipeline_mode<synchronous>, transform_indices = @transform_15, window_bounds = array<i64: 2, 32, 32>}, {pipeline_mode = #tpu.pipeline_mode<synchronous>, transform_indices = @transform_16, window_bounds = array<i64: 2, 1, 32>}, {pipeline_mode = #tpu.pipeline_mode<synchronous>, transform_indices = @transform_17, window_bounds = array<i64: 2, 32, 32>}, {pipeline_mode = #tpu.pipeline_mode<synchronous>, transform_indices = @transform_18, window_bounds = array<i64: 2, 1, 32>}, {transform_indices = @transform_19, window_bounds = array<i64: 8, 32>}]} {
    %c0 = arith.constant 0 : index
    %c0_0 = arith.constant 0 : index
    %0 = vector.load %arg1[%c0, %c0_0] : memref<128x8xf32, #tpu.memory_space<vmem>>, vector<128x8xf32>
    %c0_1 = arith.constant 0 : index
    %c0_2 = arith.constant 0 : index
    %1 = vector.load %arg2[%c0_1, %c0_2] : memref<8x32xf32, #tpu.memory_space<vmem>>, vector<8x32xf32>
    %c0_3 = arith.constant 0 : index
    %c0_4 = arith.constant 0 : index
    %2 = vector.load %arg3[%c0_3, %c0_4] : memref<1x32xf32, #tpu.memory_space<vmem>>, vector<1x32xf32>
    %cst = arith.constant dense<0.000000e+00> : vector<128x32xf32>
    %3 = tpu.matmul %0, %1, %cst {dimension_numbers = #tpu.dot_dimension_numbers<[1], [0], [0], [1], [0, 0, 1, 1], [], []>} : vector<128x8xf32>, vector<8x32xf32>, vector<128x32xf32> -> vector<128x32xf32>
    %4 = vector.broadcast %2 : vector<1x32xf32> to vector<128x32xf32>
    %5 = arith.addf %3, %4 : vector<128x32xf32>
    %c0_5 = arith.constant 0 : index
    %c0_6 = arith.constant 0 : index
    %6 = vector.load %arg4[%c0_5, %c0_6] : memref<8x128xf32, #tpu.memory_space<vmem>>, vector<8x128xf32>
    %c0_7 = arith.constant 0 : index
    %c0_8 = arith.constant 0 : index
    %7 = vector.load %arg5[%c0_7, %c0_8] : memref<1x128xf32, #tpu.memory_space<vmem>>, vector<1x128xf32>
    %cst_9 = arith.constant dense<0.000000e+00> : vector<128x128xf32>
    %8 = tpu.matmul %0, %6, %cst_9 {dimension_numbers = #tpu.dot_dimension_numbers<[1], [0], [0], [1], [0, 0, 1, 1], [], []>} : vector<128x8xf32>, vector<8x128xf32>, vector<128x128xf32> -> vector<128x128xf32>
    %9 = vector.broadcast %7 : vector<1x128xf32> to vector<128x128xf32>
    %10 = arith.addf %8, %9 : vector<128x128xf32>
    %cst_10 = arith.constant 0.000000e+00 : f32
    %11 = vector.broadcast %cst_10 : f32 to vector<128x128xf32>
    %12 = arith.maximumf %10, %11 : vector<128x128xf32>
    %c0_11 = arith.constant 0 : index
    %c0_12 = arith.constant 0 : index
    %13 = vector.load %arg6[%c0_11, %c0_12] : memref<128x128xf32, #tpu.memory_space<vmem>>, vector<128x128xf32>
    %c0_13 = arith.constant 0 : index
    %c0_14 = arith.constant 0 : index
    %14 = vector.load %arg7[%c0_13, %c0_14] : memref<1x128xf32, #tpu.memory_space<vmem>>, vector<1x128xf32>
    %cst_15 = arith.constant dense<0.000000e+00> : vector<128x128xf32>
    %15 = tpu.matmul %12, %13, %cst_15 {dimension_numbers = #tpu.dot_dimension_numbers<[1], [0], [0], [1], [0, 0, 1, 1], [], []>} : vector<128x128xf32>, vector<128x128xf32>, vector<128x128xf32> -> vector<128x128xf32>
    %16 = vector.broadcast %14 : vector<1x128xf32> to vector<128x128xf32>
    %17 = arith.addf %15, %16 : vector<128x128xf32>
    %c0_16 = arith.constant 0 : index
    %c0_17 = arith.constant 0 : index
    %18 = vector.load %arg8[%c0_16, %c0_17] : memref<128x128xf32, #tpu.memory_space<vmem>>, vector<128x128xf32>
    %c0_18 = arith.constant 0 : index
    %c0_19 = arith.constant 0 : index
    %19 = vector.load %arg9[%c0_18, %c0_19] : memref<1x128xf32, #tpu.memory_space<vmem>>, vector<1x128xf32>
    %cst_20 = arith.constant dense<0.000000e+00> : vector<128x128xf32>
    %20 = tpu.matmul %12, %18, %cst_20 {dimension_numbers = #tpu.dot_dimension_numbers<[1], [0], [0], [1], [0, 0, 1, 1], [], []>} : vector<128x128xf32>, vector<128x128xf32>, vector<128x128xf32> -> vector<128x128xf32>
    %21 = vector.broadcast %19 : vector<1x128xf32> to vector<128x128xf32>
    %22 = arith.addf %20, %21 : vector<128x128xf32>
    %c0_21 = arith.constant 0 : index
    %c0_22 = arith.constant 0 : index
    %c0_23 = arith.constant 0 : index
    %23 = vector.load %arg10[%c0_21, %c0_22, %c0_23] : memref<2x32x32xf32, #tpu.memory_space<vmem>>, vector<1x32x32xf32>
    %24 = vector.shape_cast %23 : vector<1x32x32xf32> to vector<32x32xf32>
    %c0_24 = arith.constant 0 : index
    %c0_25 = arith.constant 0 : index
    %c0_26 = arith.constant 0 : index
    %25 = vector.load %arg11[%c0_24, %c0_25, %c0_26] : memref<2x1x32xf32, #tpu.memory_space<vmem>>, vector<1x1x32xf32>
    %26 = vector.shape_cast %25 : vector<1x1x32xf32> to vector<1x32xf32>
    %cst_27 = arith.constant dense<0.000000e+00> : vector<128x32xf32>
    %27 = tpu.matmul %5, %24, %cst_27 {dimension_numbers = #tpu.dot_dimension_numbers<[1], [0], [0], [1], [0, 0, 1, 1], [], []>} : vector<128x32xf32>, vector<32x32xf32>, vector<128x32xf32> -> vector<128x32xf32>
    %28 = vector.broadcast %26 : vector<1x32xf32> to vector<128x32xf32>
    %29 = arith.addf %27, %28 : vector<128x32xf32>
    %cst_28 = arith.constant 0.000000e+00 : f32
    %30 = vector.broadcast %cst_28 : f32 to vector<128x32xf32>
    %31 = arith.maximumf %29, %30 : vector<128x32xf32>
    %c0_29 = arith.constant 0 : index
    %c0_30 = arith.constant 0 : index
    %c0_31 = arith.constant 0 : index
    %32 = vector.load %arg12[%c0_29, %c0_30, %c0_31] : memref<2x32x64xf32, #tpu.memory_space<vmem>>, vector<1x32x64xf32>
    %33 = vector.shape_cast %32 : vector<1x32x64xf32> to vector<32x64xf32>
    %c0_32 = arith.constant 0 : index
    %c0_33 = arith.constant 0 : index
    %c0_34 = arith.constant 0 : index
    %34 = vector.load %arg13[%c0_32, %c0_33, %c0_34] : memref<2x1x64xf32, #tpu.memory_space<vmem>>, vector<1x1x64xf32>
    %35 = vector.shape_cast %34 : vector<1x1x64xf32> to vector<1x64xf32>
    %cst_35 = arith.constant dense<0.000000e+00> : vector<128x64xf32>
    %36 = tpu.matmul %31, %33, %cst_35 {dimension_numbers = #tpu.dot_dimension_numbers<[1], [0], [0], [1], [0, 0, 1, 1], [], []>} : vector<128x32xf32>, vector<32x64xf32>, vector<128x64xf32> -> vector<128x64xf32>
    %37 = vector.broadcast %35 : vector<1x64xf32> to vector<128x64xf32>
    %38 = arith.addf %36, %37 : vector<128x64xf32>
    %39 = vector.extract_strided_slice %17 {offsets = [0, 0], sizes = [128, 64], strides = [1, 1]} : vector<128x128xf32> to vector<128x64xf32>
    %40 = arith.mulf %38, %39 : vector<128x64xf32>
    %41 = vector.extract_strided_slice %22 {offsets = [0, 0], sizes = [128, 64], strides = [1, 1]} : vector<128x128xf32> to vector<128x64xf32>
    %42 = arith.addf %40, %41 : vector<128x64xf32>
    %c0_36 = arith.constant 0 : index
    %c0_37 = arith.constant 0 : index
    %c0_38 = arith.constant 0 : index
    %43 = vector.load %arg14[%c0_36, %c0_37, %c0_38] : memref<2x64x32xf32, #tpu.memory_space<vmem>>, vector<1x64x32xf32>
    %44 = vector.shape_cast %43 : vector<1x64x32xf32> to vector<64x32xf32>
    %c0_39 = arith.constant 0 : index
    %c0_40 = arith.constant 0 : index
    %c0_41 = arith.constant 0 : index
    %45 = vector.load %arg15[%c0_39, %c0_40, %c0_41] : memref<2x1x32xf32, #tpu.memory_space<vmem>>, vector<1x1x32xf32>
    %46 = vector.shape_cast %45 : vector<1x1x32xf32> to vector<1x32xf32>
    %cst_42 = arith.constant dense<0.000000e+00> : vector<128x32xf32>
    %47 = tpu.matmul %42, %44, %cst_42 {dimension_numbers = #tpu.dot_dimension_numbers<[1], [0], [0], [1], [0, 0, 1, 1], [], []>} : vector<128x64xf32>, vector<64x32xf32>, vector<128x32xf32> -> vector<128x32xf32>
    %48 = vector.broadcast %46 : vector<1x32xf32> to vector<128x32xf32>
    %49 = arith.addf %47, %48 : vector<128x32xf32>
    %cst_43 = arith.constant 0.000000e+00 : f32
    %50 = vector.broadcast %cst_43 : f32 to vector<128x32xf32>
    %51 = arith.maximumf %49, %50 : vector<128x32xf32>
    %c0_44 = arith.constant 0 : index
    %c0_45 = arith.constant 0 : index
    %c0_46 = arith.constant 0 : index
    %52 = vector.load %arg16[%c0_44, %c0_45, %c0_46] : memref<2x32x32xf32, #tpu.memory_space<vmem>>, vector<1x32x32xf32>
    %53 = vector.shape_cast %52 : vector<1x32x32xf32> to vector<32x32xf32>
    %c0_47 = arith.constant 0 : index
    %c0_48 = arith.constant 0 : index
    %c0_49 = arith.constant 0 : index
    %54 = vector.load %arg17[%c0_47, %c0_48, %c0_49] : memref<2x1x32xf32, #tpu.memory_space<vmem>>, vector<1x1x32xf32>
    %55 = vector.shape_cast %54 : vector<1x1x32xf32> to vector<1x32xf32>
    %cst_50 = arith.constant dense<0.000000e+00> : vector<128x32xf32>
    %56 = tpu.matmul %51, %53, %cst_50 {dimension_numbers = #tpu.dot_dimension_numbers<[1], [0], [0], [1], [0, 0, 1, 1], [], []>} : vector<128x32xf32>, vector<32x32xf32>, vector<128x32xf32> -> vector<128x32xf32>
    %57 = vector.broadcast %55 : vector<1x32xf32> to vector<128x32xf32>
    %58 = arith.addf %56, %57 : vector<128x32xf32>
    %59 = vector.shape_cast %58 : vector<128x32xf32> to vector<8x16x32xf32>
    %cst_51 = arith.constant dense<0xFF800000> : vector<8x32xf32>
    %60 = vector.multi_reduction <maximumf>, %59, %cst_51 [1] : vector<8x16x32xf32> to vector<8x32xf32>
    %61 = vector.shape_cast %60 : vector<8x32xf32> to vector<8x1x32xf32>
    %62 = vector.broadcast %61 : vector<8x1x32xf32> to vector<8x16x32xf32>
    %63 = arith.subf %59, %62 : vector<8x16x32xf32>
    %64 = math.exp %63 : vector<8x16x32xf32>
    %cst_52 = arith.constant dense<0.000000e+00> : vector<8x32xf32>
    %65 = vector.multi_reduction <add>, %64, %cst_52 [1] : vector<8x16x32xf32> to vector<8x32xf32>
    %66 = vector.shape_cast %65 : vector<8x32xf32> to vector<8x1x32xf32>
    %67 = vector.broadcast %66 : vector<8x1x32xf32> to vector<8x16x32xf32>
    %68 = arith.divf %64, %67 : vector<8x16x32xf32>
    %69 = vector.shape_cast %68 : vector<8x16x32xf32> to vector<128x32xf32>
    %70 = vector.extract_strided_slice %42 {offsets = [0, 32], sizes = [128, 32], strides = [1, 1]} : vector<128x64xf32> to vector<128x32xf32>
    %71 = arith.mulf %69, %70 : vector<128x32xf32>
    %cst_53 = arith.constant 0.000000e+00 : f32
    %72 = vector.broadcast %cst_53 : f32 to vector<128x32xf32>
    %73 = arith.maximumf %71, %72 : vector<128x32xf32>
    %c0_54 = arith.constant 0 : index
    %c0_55 = arith.constant 0 : index
    %c0_56 = arith.constant 0 : index
    %74 = vector.load %arg18[%c0_54, %c0_55, %c0_56] : memref<2x32x32xf32, #tpu.memory_space<vmem>>, vector<1x32x32xf32>
    %75 = vector.shape_cast %74 : vector<1x32x32xf32> to vector<32x32xf32>
    %c0_57 = arith.constant 0 : index
    %c0_58 = arith.constant 0 : index
    %c0_59 = arith.constant 0 : index
    %76 = vector.load %arg19[%c0_57, %c0_58, %c0_59] : memref<2x1x32xf32, #tpu.memory_space<vmem>>, vector<1x1x32xf32>
    %77 = vector.shape_cast %76 : vector<1x1x32xf32> to vector<1x32xf32>
    %cst_60 = arith.constant dense<0.000000e+00> : vector<128x32xf32>
    %78 = tpu.matmul %73, %75, %cst_60 {dimension_numbers = #tpu.dot_dimension_numbers<[1], [0], [0], [1], [0, 0, 1, 1], [], []>} : vector<128x32xf32>, vector<32x32xf32>, vector<128x32xf32> -> vector<128x32xf32>
    %79 = vector.broadcast %77 : vector<1x32xf32> to vector<128x32xf32>
    %80 = arith.addf %78, %79 : vector<128x32xf32>
    %81 = arith.addf %80, %5 : vector<128x32xf32>
    %c1 = arith.constant 1 : index
    %c0_61 = arith.constant 0 : index
    %c0_62 = arith.constant 0 : index
    %82 = vector.load %arg10[%c1, %c0_61, %c0_62] : memref<2x32x32xf32, #tpu.memory_space<vmem>>, vector<1x32x32xf32>
    %83 = vector.shape_cast %82 : vector<1x32x32xf32> to vector<32x32xf32>
    %c1_63 = arith.constant 1 : index
    %c0_64 = arith.constant 0 : index
    %c0_65 = arith.constant 0 : index
    %84 = vector.load %arg11[%c1_63, %c0_64, %c0_65] : memref<2x1x32xf32, #tpu.memory_space<vmem>>, vector<1x1x32xf32>
    %85 = vector.shape_cast %84 : vector<1x1x32xf32> to vector<1x32xf32>
    %cst_66 = arith.constant dense<0.000000e+00> : vector<128x32xf32>
    %86 = tpu.matmul %81, %83, %cst_66 {dimension_numbers = #tpu.dot_dimension_numbers<[1], [0], [0], [1], [0, 0, 1, 1], [], []>} : vector<128x32xf32>, vector<32x32xf32>, vector<128x32xf32> -> vector<128x32xf32>
    %87 = vector.broadcast %85 : vector<1x32xf32> to vector<128x32xf32>
    %88 = arith.addf %86, %87 : vector<128x32xf32>
    %cst_67 = arith.constant 0.000000e+00 : f32
    %89 = vector.broadcast %cst_67 : f32 to vector<128x32xf32>
    %90 = arith.maximumf %88, %89 : vector<128x32xf32>
    %c1_68 = arith.constant 1 : index
    %c0_69 = arith.constant 0 : index
    %c0_70 = arith.constant 0 : index
    %91 = vector.load %arg12[%c1_68, %c0_69, %c0_70] : memref<2x32x64xf32, #tpu.memory_space<vmem>>, vector<1x32x64xf32>
    %92 = vector.shape_cast %91 : vector<1x32x64xf32> to vector<32x64xf32>
    %c1_71 = arith.constant 1 : index
    %c0_72 = arith.constant 0 : index
    %c0_73 = arith.constant 0 : index
    %93 = vector.load %arg13[%c1_71, %c0_72, %c0_73] : memref<2x1x64xf32, #tpu.memory_space<vmem>>, vector<1x1x64xf32>
    %94 = vector.shape_cast %93 : vector<1x1x64xf32> to vector<1x64xf32>
    %cst_74 = arith.constant dense<0.000000e+00> : vector<128x64xf32>
    %95 = tpu.matmul %90, %92, %cst_74 {dimension_numbers = #tpu.dot_dimension_numbers<[1], [0], [0], [1], [0, 0, 1, 1], [], []>} : vector<128x32xf32>, vector<32x64xf32>, vector<128x64xf32> -> vector<128x64xf32>
    %96 = vector.broadcast %94 : vector<1x64xf32> to vector<128x64xf32>
    %97 = arith.addf %95, %96 : vector<128x64xf32>
    %98 = vector.extract_strided_slice %17 {offsets = [0, 64], sizes = [128, 64], strides = [1, 1]} : vector<128x128xf32> to vector<128x64xf32>
    %99 = arith.mulf %97, %98 : vector<128x64xf32>
    %100 = vector.extract_strided_slice %22 {offsets = [0, 64], sizes = [128, 64], strides = [1, 1]} : vector<128x128xf32> to vector<128x64xf32>
    %101 = arith.addf %99, %100 : vector<128x64xf32>
    %c1_75 = arith.constant 1 : index
    %c0_76 = arith.constant 0 : index
    %c0_77 = arith.constant 0 : index
    %102 = vector.load %arg14[%c1_75, %c0_76, %c0_77] : memref<2x64x32xf32, #tpu.memory_space<vmem>>, vector<1x64x32xf32>
    %103 = vector.shape_cast %102 : vector<1x64x32xf32> to vector<64x32xf32>
    %c1_78 = arith.constant 1 : index
    %c0_79 = arith.constant 0 : index
    %c0_80 = arith.constant 0 : index
    %104 = vector.load %arg15[%c1_78, %c0_79, %c0_80] : memref<2x1x32xf32, #tpu.memory_space<vmem>>, vector<1x1x32xf32>
    %105 = vector.shape_cast %104 : vector<1x1x32xf32> to vector<1x32xf32>
    %cst_81 = arith.constant dense<0.000000e+00> : vector<128x32xf32>
    %106 = tpu.matmul %101, %103, %cst_81 {dimension_numbers = #tpu.dot_dimension_numbers<[1], [0], [0], [1], [0, 0, 1, 1], [], []>} : vector<128x64xf32>, vector<64x32xf32>, vector<128x32xf32> -> vector<128x32xf32>
    %107 = vector.broadcast %105 : vector<1x32xf32> to vector<128x32xf32>
    %108 = arith.addf %106, %107 : vector<128x32xf32>
    %cst_82 = arith.constant 0.000000e+00 : f32
    %109 = vector.broadcast %cst_82 : f32 to vector<128x32xf32>
    %110 = arith.maximumf %108, %109 : vector<128x32xf32>
    %c1_83 = arith.constant 1 : index
    %c0_84 = arith.constant 0 : index
    %c0_85 = arith.constant 0 : index
    %111 = vector.load %arg16[%c1_83, %c0_84, %c0_85] : memref<2x32x32xf32, #tpu.memory_space<vmem>>, vector<1x32x32xf32>
    %112 = vector.shape_cast %111 : vector<1x32x32xf32> to vector<32x32xf32>
    %c1_86 = arith.constant 1 : index
    %c0_87 = arith.constant 0 : index
    %c0_88 = arith.constant 0 : index
    %113 = vector.load %arg17[%c1_86, %c0_87, %c0_88] : memref<2x1x32xf32, #tpu.memory_space<vmem>>, vector<1x1x32xf32>
    %114 = vector.shape_cast %113 : vector<1x1x32xf32> to vector<1x32xf32>
    %cst_89 = arith.constant dense<0.000000e+00> : vector<128x32xf32>
    %115 = tpu.matmul %110, %112, %cst_89 {dimension_numbers = #tpu.dot_dimension_numbers<[1], [0], [0], [1], [0, 0, 1, 1], [], []>} : vector<128x32xf32>, vector<32x32xf32>, vector<128x32xf32> -> vector<128x32xf32>
    %116 = vector.broadcast %114 : vector<1x32xf32> to vector<128x32xf32>
    %117 = arith.addf %115, %116 : vector<128x32xf32>
    %118 = vector.shape_cast %117 : vector<128x32xf32> to vector<8x16x32xf32>
    %cst_90 = arith.constant dense<0xFF800000> : vector<8x32xf32>
    %119 = vector.multi_reduction <maximumf>, %118, %cst_90 [1] : vector<8x16x32xf32> to vector<8x32xf32>
    %120 = vector.shape_cast %119 : vector<8x32xf32> to vector<8x1x32xf32>
    %121 = vector.broadcast %120 : vector<8x1x32xf32> to vector<8x16x32xf32>
    %122 = arith.subf %118, %121 : vector<8x16x32xf32>
    %123 = math.exp %122 : vector<8x16x32xf32>
    %cst_91 = arith.constant dense<0.000000e+00> : vector<8x32xf32>
    %124 = vector.multi_reduction <add>, %123, %cst_91 [1] : vector<8x16x32xf32> to vector<8x32xf32>
    %125 = vector.shape_cast %124 : vector<8x32xf32> to vector<8x1x32xf32>
    %126 = vector.broadcast %125 : vector<8x1x32xf32> to vector<8x16x32xf32>
    %127 = arith.divf %123, %126 : vector<8x16x32xf32>
    %128 = vector.shape_cast %127 : vector<8x16x32xf32> to vector<128x32xf32>
    %129 = vector.extract_strided_slice %101 {offsets = [0, 32], sizes = [128, 32], strides = [1, 1]} : vector<128x64xf32> to vector<128x32xf32>
    %130 = arith.mulf %128, %129 : vector<128x32xf32>
    %cst_92 = arith.constant 0.000000e+00 : f32
    %131 = vector.broadcast %cst_92 : f32 to vector<128x32xf32>
    %132 = arith.maximumf %130, %131 : vector<128x32xf32>
    %133 = vector.shape_cast %132 : vector<128x32xf32> to vector<8x16x32xf32>
    %cst_93 = arith.constant dense<0.000000e+00> : vector<8x32xf32>
    %134 = vector.multi_reduction <add>, %133, %cst_93 [1] : vector<8x16x32xf32> to vector<8x32xf32>
    %135 = vector.shape_cast %81 : vector<128x32xf32> to vector<8x16x32xf32>
    %cst_94 = arith.constant dense<0.000000e+00> : vector<8x32xf32>
    %136 = vector.multi_reduction <add>, %135, %cst_94 [1] : vector<8x16x32xf32> to vector<8x32xf32>
    %c1_95 = arith.constant 1 : index
    %c0_96 = arith.constant 0 : index
    %c0_97 = arith.constant 0 : index
    %137 = vector.load %arg18[%c1_95, %c0_96, %c0_97] : memref<2x32x32xf32, #tpu.memory_space<vmem>>, vector<1x32x32xf32>
    %138 = vector.shape_cast %137 : vector<1x32x32xf32> to vector<32x32xf32>
    %c1_98 = arith.constant 1 : index
    %c0_99 = arith.constant 0 : index
    %c0_100 = arith.constant 0 : index
    %139 = vector.load %arg19[%c1_98, %c0_99, %c0_100] : memref<2x1x32xf32, #tpu.memory_space<vmem>>, vector<1x1x32xf32>
    %140 = vector.shape_cast %139 : vector<1x1x32xf32> to vector<1x32xf32>
    %cst_101 = arith.constant 1.600000e+01 : f32
    %141 = vector.broadcast %cst_101 : f32 to vector<1x32xf32>
    %142 = arith.mulf %140, %141 : vector<1x32xf32>
    %cst_102 = arith.constant dense<0.000000e+00> : vector<8x32xf32>
    %143 = tpu.matmul %134, %138, %cst_102 {dimension_numbers = #tpu.dot_dimension_numbers<[1], [0], [0], [1], [0, 0, 1, 1], [], []>} : vector<8x32xf32>, vector<32x32xf32>, vector<8x32xf32> -> vector<8x32xf32>
    %144 = vector.broadcast %142 : vector<1x32xf32> to vector<8x32xf32>
    %145 = arith.addf %143, %144 : vector<8x32xf32>
    %146 = arith.addf %145, %136 : vector<8x32xf32>
    %c0_103 = arith.constant 0 : index
    %c0_104 = arith.constant 0 : index
    %147 = vector.load %arg20[%c0_103, %c0_104] : memref<8x32xf32, #tpu.memory_space<vmem>>, vector<8x32xf32>
    tpu.vector_store %arg20[%c0_103, %c0_104], %146 {strides = array<i32>} : memref<8x32xf32, #tpu.memory_space<vmem>>, vector<8x32xf32>,
    return
  }
  func.func @transform_0(%arg0: i32) -> (i32, i32) {
    %c0_i32 = arith.constant 0 : i32
    %c0_i32_0 = arith.constant 0 : i32
    return %arg0, %c0_i32 : i32, i32
  }
  func.func @transform_1(%arg0: i32) -> (i32, i32) {
    %c0_i32 = arith.constant 0 : i32
    %c0_i32_0 = arith.constant 0 : i32
    %c0_i32_1 = arith.constant 0 : i32
    return %c0_i32, %c0_i32_0 : i32, i32
  }
  func.func @transform_2(%arg0: i32) -> (i32, i32) {
    %c0_i32 = arith.constant 0 : i32
    %c0_i32_0 = arith.constant 0 : i32
    %c0_i32_1 = arith.constant 0 : i32
    return %c0_i32, %c0_i32_0 : i32, i32
  }
  func.func @transform_3(%arg0: i32) -> (i32, i32) {
    %c0_i32 = arith.constant 0 : i32
    %c0_i32_0 = arith.constant 0 : i32
    %c0_i32_1 = arith.constant 0 : i32
    return %c0_i32, %c0_i32_0 : i32, i32
  }
  func.func @transform_4(%arg0: i32) -> (i32, i32) {
    %c0_i32 = arith.constant 0 : i32
    %c0_i32_0 = arith.constant 0 : i32
    %c0_i32_1 = arith.constant 0 : i32
    return %c0_i32, %c0_i32_0 : i32, i32
  }
  func.func @transform_5(%arg0: i32) -> (i32, i32) {
    %c0_i32 = arith.constant 0 : i32
    %c0_i32_0 = arith.constant 0 : i32
    %c0_i32_1 = arith.constant 0 : i32
    return %c0_i32, %c0_i32_0 : i32, i32
  }
  func.func @transform_6(%arg0: i32) -> (i32, i32) {
    %c0_i32 = arith.constant 0 : i32
    %c0_i32_0 = arith.constant 0 : i32
    %c0_i32_1 = arith.constant 0 : i32
    return %c0_i32, %c0_i32_0 : i32, i32
  }
  func.func @transform_7(%arg0: i32) -> (i32, i32) {
    %c0_i32 = arith.constant 0 : i32
    %c0_i32_0 = arith.constant 0 : i32
    %c0_i32_1 = arith.constant 0 : i32
    return %c0_i32, %c0_i32_0 : i32, i32
  }
  func.func @transform_8(%arg0: i32) -> (i32, i32) {
    %c0_i32 = arith.constant 0 : i32
    %c0_i32_0 = arith.constant 0 : i32
    %c0_i32_1 = arith.constant 0 : i32
    return %c0_i32, %c0_i32_0 : i32, i32
  }
  func.func @transform_9(%arg0: i32) -> (i32, i32, i32) {
    %c0_i32 = arith.constant 0 : i32
    %c0_i32_0 = arith.constant 0 : i32
    %c0_i32_1 = arith.constant 0 : i32
    %c0_i32_2 = arith.constant 0 : i32
    return %c0_i32, %c0_i32_0, %c0_i32_1 : i32, i32, i32
  }
  func.func @transform_10(%arg0: i32) -> (i32, i32, i32) {
    %c0_i32 = arith.constant 0 : i32
    %c0_i32_0 = arith.constant 0 : i32
    %c0_i32_1 = arith.constant 0 : i32
    %c0_i32_2 = arith.constant 0 : i32
    return %c0_i32, %c0_i32_0, %c0_i32_1 : i32, i32, i32
  }
  func.func @transform_11(%arg0: i32) -> (i32, i32, i32) {
    %c0_i32 = arith.constant 0 : i32
    %c0_i32_0 = arith.constant 0 : i32
    %c0_i32_1 = arith.constant 0 : i32
    %c0_i32_2 = arith.constant 0 : i32
    return %c0_i32, %c0_i32_0, %c0_i32_1 : i32, i32, i32
  }
  func.func @transform_12(%arg0: i32) -> (i32, i32, i32) {
    %c0_i32 = arith.constant 0 : i32
    %c0_i32_0 = arith.constant 0 : i32
    %c0_i32_1 = arith.constant 0 : i32
    %c0_i32_2 = arith.constant 0 : i32
    return %c0_i32, %c0_i32_0, %c0_i32_1 : i32, i32, i32
  }
  func.func @transform_13(%arg0: i32) -> (i32, i32, i32) {
    %c0_i32 = arith.constant 0 : i32
    %c0_i32_0 = arith.constant 0 : i32
    %c0_i32_1 = arith.constant 0 : i32
    %c0_i32_2 = arith.constant 0 : i32
    return %c0_i32, %c0_i32_0, %c0_i32_1 : i32, i32, i32
  }
  func.func @transform_14(%arg0: i32) -> (i32, i32, i32) {
    %c0_i32 = arith.constant 0 : i32
    %c0_i32_0 = arith.constant 0 : i32
    %c0_i32_1 = arith.constant 0 : i32
    %c0_i32_2 = arith.constant 0 : i32
    return %c0_i32, %c0_i32_0, %c0_i32_1 : i32, i32, i32
  }
  func.func @transform_15(%arg0: i32) -> (i32, i32, i32) {
    %c0_i32 = arith.constant 0 : i32
    %c0_i32_0 = arith.constant 0 : i32
    %c0_i32_1 = arith.constant 0 : i32
    %c0_i32_2 = arith.constant 0 : i32
    return %c0_i32, %c0_i32_0, %c0_i32_1 : i32, i32, i32
  }
  func.func @transform_16(%arg0: i32) -> (i32, i32, i32) {
    %c0_i32 = arith.constant 0 : i32
    %c0_i32_0 = arith.constant 0 : i32
    %c0_i32_1 = arith.constant 0 : i32
    %c0_i32_2 = arith.constant 0 : i32
    return %c0_i32, %c0_i32_0, %c0_i32_1 : i32, i32, i32
  }
  func.func @transform_17(%arg0: i32) -> (i32, i32, i32) {
    %c0_i32 = arith.constant 0 : i32
    %c0_i32_0 = arith.constant 0 : i32
    %c0_i32_1 = arith.constant 0 : i32
    %c0_i32_2 = arith.constant 0 : i32
    return %c0_i32, %c0_i32_0, %c0_i32_1 : i32, i32, i32
  }
  func.func @transform_18(%arg0: i32) -> (i32, i32, i32) {
    %c0_i32 = arith.constant 0 : i32
    %c0_i32_0 = arith.constant 0 : i32
    %c0_i32_1 = arith.constant 0 : i32
    %c0_i32_2 = arith.constant 0 : i32
    return %c0_i32, %c0_i32_0, %c0_i32_1 : i32, i32, i32
  }
  func.func @transform_19(%arg0: i32) -> (i32, i32) {
    %c0_i32 = arith.constant 0 : i32
    %c0_i32_0 = arith.constant 0 : i32
    return %arg0, %c0_i32 : i32, i32
  }
}

</mosaic_0001>

<llo_original>
// kernel: tpu_custom_call.1
$region0: #{tpu_custom_call.1}
  #allocation0 [shape = 'u32[]', space=smem, size = 0x4, offset = 0x4, fixed_abs, tag = 'smem constant byte address 0x4 - core index']
  #allocation1 [shape = 'u32[144,128]{1,0:T(1,128)}', space=vmem, size = 0x12000, scoped, tag = 'internal scratch']
  %s0 = inlined_call_operand.vmem [shape: f32[256,8], index: 0, kind: input, shape index: {}]
  %s1 = inlined_call_operand.hbm [shape: f32[8,32], index: 1, kind: input, shape index: {}]
  %s2 = inlined_call_operand.vmem [shape: f32[1,32], index: 2, kind: input, shape index: {}]
  %s3 = inlined_call_operand.hbm [shape: f32[8,128], index: 3, kind: input, shape index: {}]
  %s4 = inlined_call_operand.hbm [shape: f32[1,128], index: 4, kind: input, shape index: {}]
  %s5 = inlined_call_operand.vmem [shape: f32[128,128], index: 5, kind: input, shape index: {}]
  %s6 = inlined_call_operand.hbm [shape: f32[1,128], index: 6, kind: input, shape index: {}]
  %s7 = inlined_call_operand.vmem [shape: f32[128,128], index: 7, kind: input, shape index: {}]
  %s8 = inlined_call_operand.hbm [shape: f32[1,128], index: 8, kind: input, shape index: {}]
  %s9 = inlined_call_operand.vmem [shape: f32[2,32,32], index: 9, kind: input, shape index: {}]
  %s10 = inlined_call_operand.vmem [shape: f32[2,1,32], index: 10, kind: input, shape index: {}]
  %s11 = inlined_call_operand.vmem [shape: f32[2,32,64], index: 11, kind: input, shape index: {}]
  %s12 = inlined_call_operand.vmem [shape: f32[2,1,64], index: 12, kind: input, shape index: {}]
  %s13 = inlined_call_operand.vmem [shape: f32[2,64,32], index: 13, kind: input, shape index: {}]
  %s14 = inlined_call_operand.hbm [shape: f32[2,1,32], index: 14, kind: input, shape index: {}]
  %s15 = inlined_call_operand.vmem [shape: f32[2,32,32], index: 15, kind: input, shape index: {}]
  %s16 = inlined_call_operand.vmem [shape: f32[2,1,32], index: 16, kind: input, shape index: {}]
  %s17 = inlined_call_operand.vmem [shape: f32[2,32,32], index: 17, kind: input, shape index: {}]
  %s18 = inlined_call_operand.vmem [shape: f32[2,1,32], index: 18, kind: input, shape index: {}]
  %s19 = inlined_call_operand.hbm [shape: f32[16,32], index: 19, kind: output, shape index: {}]
  %s20 = sld [smem:[#allocation0]]
  $region133: #{tpu_custom_call.1} parent=0
    _
  %s22 = ssub.s32 1, %s20
  %s23 = scalar_select 0, %s22, %s20
  $region1: #{tpu_custom_call.1} parent=0
    #allocation2 [shape = 'u8[4096]{0}', space=vmem, size = 0x1000, scoped, tag = 'input window, operand 1, single buffered']
    #allocation3 [shape = 's32[2]{0}', space=sflag, size = 0x8, scoped, tag = 'scoped memory for tpu_custom_call.1']
    #allocation4 [shape = 's32[2]{0}', space=sflag, size = 0x8, scoped, tag = 'scoped memory for tpu_custom_call.1']
    #allocation5 [shape = 'u8[4096]{0}', space=vmem, size = 0x1000, scoped, tag = 'input window, operand 3, single buffered']
    #allocation6 [shape = 's32[1]{0}', space=sflag, size = 0x4, scoped, tag = 'scoped memory for tpu_custom_call.1']
    #allocation7 [shape = 'u8[512]{0}', space=vmem, size = 0x400, scoped, tag = 'input window, operand 4, single buffered']
    #allocation8 [shape = 'u8[512]{0}', space=vmem, size = 0x400, scoped, tag = 'input window, operand 6, single buffered']
    #allocation9 [shape = 's32[1]{0}', space=sflag, size = 0x4, scoped, tag = 'scoped memory for tpu_custom_call.1']
    #allocation10 [shape = 'u8[512]{0}', space=vmem, size = 0x400, scoped, tag = 'input window, operand 8, single buffered']
    #allocation11 [shape = 'u8[1024]{0}', space=vmem, size = 0x400, scoped, tag = 'input window, operand 14, single buffered']
    #allocation12 [shape = 's32[1]{0}', space=sflag, size = 0x4, scoped, tag = 'scoped memory for tpu_custom_call.1']
    #allocation13 [shape = 'u8[8192]{0}', space=vmem, size = 0x2000, scoped, tag = 'output window, operand 0']
    %24 = vsyncpa [#allocation3], 0
    %25 = vsyncpa [#allocation6], 0
    %26 = vsyncpa [#allocation9], 0
    %27 = vsyncpa [#allocation12], 0
    %28 = vsyncpa [#allocation4], 0
    %s29 = scalar_lea.sflag [#allocation4], 1
    %30 = vsyncpa %s29, 0
    loop: start=0, step=1, limit=4
    $region2: #{tpu_custom_call.1} parent=1 // loop_pre_header
      _
    $region3: #{tpu_custom_call.1} parent=1 // loop_header
      %s32 = sphi 0, %s36
      %p33 = scmp.ge.s32.totalorder %s32, 4
      %s42 = sphi 0, %s44
      %s45 = sphi 0, %s42
      %s46 = sphi 0, %s45
      %s62 = sphi 0, %s46
      %s66 = sphi 0, %s66
      %s68 = sphi 0, %s66
      %s69 = sphi 0, %s68
      %s83 = sphi 0, %s69
      %s87 = sphi 0, %s87
      %s89 = sphi 0, %s87
      %s90 = sphi 0, %s89
      %s104 = sphi 0, %s90
      %s108 = sphi 0, %s108
      %s110 = sphi 0, %s108
      %s111 = sphi 0, %s110
      %s125 = sphi 0, %s111
      %s129 = sphi 0, %s129
      %s131 = sphi 0, %s129
      %s132 = sphi 0, %s131
      %s146 = sphi 0, %s132
      %s150 = sphi 0, %s150
      %s152 = sphi 0, %s150
      %s153 = sphi 0, %s152
      %s167 = sphi 0, %s153
      %s171 = sphi 0, %s171
      %s173 = sphi 0, %s171
      %s174 = sphi 0, %s173
      %s188 = sphi 0, %s174
      %s192 = sphi 0, %s192
      %s194 = sphi 0, %s192
      %s195 = sphi 0, %s194
      %s209 = sphi 0, %s195
      %s213 = sphi 0, %s213
      %s215 = sphi 0, %s213
      %s216 = sphi 0, %s215
      %s230 = sphi 0, %s216
      %s234 = sphi 0, %s234
      %s236 = sphi 0, %s234
      %s237 = sphi 0, %s236
      %s251 = sphi 0, %s237
      %s255 = sphi 0, %s255
      %s257 = sphi 0, %s255
      %s258 = sphi 0, %s257
      %s272 = sphi 0, %s258
      %s276 = sphi 0, %s276
      %s278 = sphi 0, %s276
      %s279 = sphi 0, %s278
      %s293 = sphi 0, %s279
      %s297 = sphi 0, %s297
      %s299 = sphi 0, %s297
      %s300 = sphi 0, %s299
      %s314 = sphi 0, %s300
      %s318 = sphi 0, %s318
      %s320 = sphi 0, %s318
      %s321 = sphi 0, %s320
      %s335 = sphi 0, %s321
      %s339 = sphi 0, %s339
      %s341 = sphi 0, %s339
      %s342 = sphi 0, %s341
      %s356 = sphi 0, %s342
      %s360 = sphi 0, %s360
      %s362 = sphi 0, %s360
      %s363 = sphi 0, %s362
      %s377 = sphi 0, %s363
      %s381 = sphi 0, %s381
      %s383 = sphi 0, %s381
      %s384 = sphi 0, %s383
      %s398 = sphi 0, %s384
      %s402 = sphi 0, %s402
      %s404 = sphi 0, %s402
      %s405 = sphi 0, %s404
      %s419 = sphi 0, %s405
      %s423 = sphi 0, %s423
      %s425 = sphi 0, %s423
      %s426 = sphi 0, %s425
      %s440 = sphi 0, %s426
      %s446 = sphi 0, %s448
      %s449 = sphi 0, %s446
      %s450 = sphi 0, %s449
      %s466 = sphi 0, %s450
    $region4: #{tpu_custom_call.1} parent=1 // loop_header_branch
      %35 = sbr.rel (%p33) target = $region8
    $region5: #{tpu_custom_call.1} parent=1 // loop_body
      %s37 = ssub.s32 %s32, 1
      %s38 = ssub.s32 %s32, 2
      %s39 = sadd.s32 %s32, 1
      %s40 = ssub.s32 %s32, %s39
      %p41 = scmp.eq.s32.totalorder %s40, 0
      %s43 = sadd.s32 %s42, 1
      %s44 = scalar_select %p41, %s42, %s43
      %p47 = pneg %p41
      %p48 = scmp.eq.s32.totalorder %s32, 1
      %p49 = por %p47, %p48
      %p50 = scmp.ne.s32.totalorder %s42, %s45
      %p51 = scmp.eq.s32.totalorder %s32, 0
      %p52 = por %p50, %p51
      %p53 = scmp.ne.s32.totalorder %s42, %s45
      %p54 = scmp.eq.s32.totalorder %s37, 1
      %p55 = por %p53, %p54
      %p56 = scmp.ne.s32.totalorder %s45, %s46
      %p57 = scmp.eq.s32.totalorder %s37, 0
      %p58 = por %p56, %p57
      %p59 = scmp.ne.s32.totalorder %s45, %s46
      %p60 = scmp.eq.s32.totalorder %s38, 1
      %p61 = por %p59, %p60
      %p63 = scmp.ne.s32.totalorder %s46, %s62
      %p64 = scmp.eq.s32.totalorder %s38, 0
      %p65 = por %p63, %p64
      %s67 = sadd.s32 %s66, 1
      %p70 = scmp.eq.s32.totalorder %s32, 1
      %p71 = scmp.ne.s32.totalorder %s66, %s68
      %p72 = scmp.eq.s32.totalorder %s32, 0
      %p73 = por %p71, %p72
      %p74 = scmp.ne.s32.totalorder %s66, %s68
      %p75 = scmp.eq.s32.totalorder %s37, 1
      %p76 = por %p74, %p75
      %p77 = scmp.ne.s32.totalorder %s68, %s69
      %p78 = scmp.eq.s32.totalorder %s37, 0
      %p79 = por %p77, %p78
      %p80 = scmp.ne.s32.totalorder %s68, %s69
      %p81 = scmp.eq.s32.totalorder %s38, 1
      %p82 = por %p80, %p81
      %p84 = scmp.ne.s32.totalorder %s69, %s83
      %p85 = scmp.eq.s32.totalorder %s38, 0
      %p86 = por %p84, %p85
      %s88 = sadd.s32 %s87, 1
      %p91 = scmp.eq.s32.totalorder %s32, 1
      %p92 = scmp.ne.s32.totalorder %s87, %s89
      %p93 = scmp.eq.s32.totalorder %s32, 0
      %p94 = por %p92, %p93
      %p95 = scmp.ne.s32.totalorder %s87, %s89
      %p96 = scmp.eq.s32.totalorder %s37, 1
      %p97 = por %p95, %p96
      %p98 = scmp.ne.s32.totalorder %s89, %s90
      %p99 = scmp.eq.s32.totalorder %s37, 0
      %p100 = por %p98, %p99
      %p101 = scmp.ne.s32.totalorder %s89, %s90
      %p102 = scmp.eq.s32.totalorder %s38, 1
      %p103 = por %p101, %p102
      %p105 = scmp.ne.s32.totalorder %s90, %s104
      %p106 = scmp.eq.s32.totalorder %s38, 0
      %p107 = por %p105, %p106
      %s109 = sadd.s32 %s108, 1
      %p112 = scmp.eq.s32.totalorder %s32, 1
      %p113 = scmp.ne.s32.totalorder %s108, %s110
      %p114 = scmp.eq.s32.totalorder %s32, 0
      %p115 = por %p113, %p114
      %p116 = scmp.ne.s32.totalorder %s108, %s110
      %p117 = scmp.eq.s32.totalorder %s37, 1
      %p118 = por %p116, %p117
      %p119 = scmp.ne.s32.totalorder %s110, %s111
      %p120 = scmp.eq.s32.totalorder %s37, 0
      %p121 = por %p119, %p120
      %p122 = scmp.ne.s32.totalorder %s110, %s111
      %p123 = scmp.eq.s32.totalorder %s38, 1
      %p124 = por %p122, %p123
      %p126 = scmp.ne.s32.totalorder %s111, %s125
      %p127 = scmp.eq.s32.totalorder %s38, 0
      %p128 = por %p126, %p127
      %s130 = sadd.s32 %s129, 1
      %p133 = scmp.eq.s32.totalorder %s32, 1
      %p134 = scmp.ne.s32.totalorder %s129, %s131
      %p135 = scmp.eq.s32.totalorder %s32, 0
      %p136 = por %p134, %p135
      %p137 = scmp.ne.s32.totalorder %s129, %s131
      %p138 = scmp.eq.s32.totalorder %s37, 1
      %p139 = por %p137, %p138
      %p140 = scmp.ne.s32.totalorder %s131, %s132
      %p141 = scmp.eq.s32.totalorder %s37, 0
      %p142 = por %p140, %p141
      %p143 = scmp.ne.s32.totalorder %s131, %s132
      %p144 = scmp.eq.s32.totalorder %s38, 1
      %p145 = por %p143, %p144
      %p147 = scmp.ne.s32.totalorder %s132, %s146
      %p148 = scmp.eq.s32.totalorder %s38, 0
      %p149 = por %p147, %p148
      %s151 = sadd.s32 %s150, 1
      %p154 = scmp.eq.s32.totalorder %s32, 1
      %p155 = scmp.ne.s32.totalorder %s150, %s152
      %p156 = scmp.eq.s32.totalorder %s32, 0
      %p157 = por %p155, %p156
      %p158 = scmp.ne.s32.totalorder %s150, %s152
      %p159 = scmp.eq.s32.totalorder %s37, 1
      %p160 = por %p158, %p159
      %p161 = scmp.ne.s32.totalorder %s152, %s153
      %p162 = scmp.eq.s32.totalorder %s37, 0
      %p163 = por %p161, %p162
      %p164 = scmp.ne.s32.totalorder %s152, %s153
      %p165 = scmp.eq.s32.totalorder %s38, 1
      %p166 = por %p164, %p165
      %p168 = scmp.ne.s32.totalorder %s153, %s167
      %p169 = scmp.eq.s32.totalorder %s38, 0
      %p170 = por %p168, %p169
      %s172 = sadd.s32 %s171, 1
      %p175 = scmp.eq.s32.totalorder %s32, 1
      %p176 = scmp.ne.s32.totalorder %s171, %s173
      %p177 = scmp.eq.s32.totalorder %s32, 0
      %p178 = por %p176, %p177
      %p179 = scmp.ne.s32.totalorder %s171, %s173
      %p180 = scmp.eq.s32.totalorder %s37, 1
      %p181 = por %p179, %p180
      %p182 = scmp.ne.s32.totalorder %s173, %s174
      %p183 = scmp.eq.s32.totalorder %s37, 0
      %p184 = por %p182, %p183
      %p185 = scmp.ne.s32.totalorder %s173, %s174
      %p186 = scmp.eq.s32.totalorder %s38, 1
      %p187 = por %p185, %p186
      %p189 = scmp.ne.s32.totalorder %s174, %s188
      %p190 = scmp.eq.s32.totalorder %s38, 0
      %p191 = por %p189, %p190
      %s193 = sadd.s32 %s192, 1
      %p196 = scmp.eq.s32.totalorder %s32, 1
      %p197 = scmp.ne.s32.totalorder %s192, %s194
      %p198 = scmp.eq.s32.totalorder %s32, 0
      %p199 = por %p197, %p198
      %p200 = scmp.ne.s32.totalorder %s192, %s194
      %p201 = scmp.eq.s32.totalorder %s37, 1
      %p202 = por %p200, %p201
      %p203 = scmp.ne.s32.totalorder %s194, %s195
      %p204 = scmp.eq.s32.totalorder %s37, 0
      %p205 = por %p203, %p204
      %p206 = scmp.ne.s32.totalorder %s194, %s195
      %p207 = scmp.eq.s32.totalorder %s38, 1
      %p208 = por %p206, %p207
      %p210 = scmp.ne.s32.totalorder %s195, %s209
      %p211 = scmp.eq.s32.totalorder %s38, 0
      %p212 = por %p210, %p211
      %s214 = sadd.s32 %s213, 1
      %p217 = scmp.eq.s32.totalorder %s32, 1
      %p218 = scmp.ne.s32.totalorder %s213, %s215
      %p219 = scmp.eq.s32.totalorder %s32, 0
      %p220 = por %p218, %p219
      %p221 = scmp.ne.s32.totalorder %s213, %s215
      %p222 = scmp.eq.s32.totalorder %s37, 1
      %p223 = por %p221, %p222
      %p224 = scmp.ne.s32.totalorder %s215, %s216
      %p225 = scmp.eq.s32.totalorder %s37, 0
      %p226 = por %p224, %p225
      %p227 = scmp.ne.s32.totalorder %s215, %s216
      %p228 = scmp.eq.s32.totalorder %s38, 1
      %p229 = por %p227, %p228
      %p231 = scmp.ne.s32.totalorder %s216, %s230
      %p232 = scmp.eq.s32.totalorder %s38, 0
      %p233 = por %p231, %p232
      %s235 = sadd.s32 %s234, 1
      %p238 = scmp.eq.s32.totalorder %s32, 1
      %p239 = scmp.ne.s32.totalorder %s234, %s236
      %p240 = scmp.eq.s32.totalorder %s32, 0
      %p241 = por %p239, %p240
      %p242 = scmp.ne.s32.totalorder %s234, %s236
      %p243 = scmp.eq.s32.totalorder %s37, 1
      %p244 = por %p242, %p243
      %p245 = scmp.ne.s32.totalorder %s236, %s237
      %p246 = scmp.eq.s32.totalorder %s37, 0
      %p247 = por %p245, %p246
      %p248 = scmp.ne.s32.totalorder %s236, %s237
      %p249 = scmp.eq.s32.totalorder %s38, 1
      %p250 = por %p248, %p249
      %p252 = scmp.ne.s32.totalorder %s237, %s251
      %p253 = scmp.eq.s32.totalorder %s38, 0
      %p254 = por %p252, %p253
      %s256 = sadd.s32 %s255, 1
      %p259 = scmp.eq.s32.totalorder %s32, 1
      %p260 = scmp.ne.s32.totalorder %s255, %s257
      %p261 = scmp.eq.s32.totalorder %s32, 0
      %p262 = por %p260, %p261
      %p263 = scmp.ne.s32.totalorder %s255, %s257
      %p264 = scmp.eq.s32.totalorder %s37, 1
      %p265 = por %p263, %p264
      %p266 = scmp.ne.s32.totalorder %s257, %s258
      %p267 = scmp.eq.s32.totalorder %s37, 0
      %p268 = por %p266, %p267
      %p269 = scmp.ne.s32.totalorder %s257, %s258
      %p270 = scmp.eq.s32.totalorder %s38, 1
      %p271 = por %p269, %p270
      %p273 = scmp.ne.s32.totalorder %s258, %s272
      %p274 = scmp.eq.s32.totalorder %s38, 0
      %p275 = por %p273, %p274
      %s277 = sadd.s32 %s276, 1
      %p280 = scmp.eq.s32.totalorder %s32, 1
      %p281 = scmp.ne.s32.totalorder %s276, %s278
      %p282 = scmp.eq.s32.totalorder %s32, 0
      %p283 = por %p281, %p282
      %p284 = scmp.ne.s32.totalorder %s276, %s278
      %p285 = scmp.eq.s32.totalorder %s37, 1
      %p286 = por %p284, %p285
      %p287 = scmp.ne.s32.totalorder %s278, %s279
      %p288 = scmp.eq.s32.totalorder %s37, 0
      %p289 = por %p287, %p288
      %p290 = scmp.ne.s32.totalorder %s278, %s279
      %p291 = scmp.eq.s32.totalorder %s38, 1
      %p292 = por %p290, %p291
      %p294 = scmp.ne.s32.totalorder %s279, %s293
      %p295 = scmp.eq.s32.totalorder %s38, 0
      %p296 = por %p294, %p295
      %s298 = sadd.s32 %s297, 1
      %p301 = scmp.eq.s32.totalorder %s32, 1
      %p302 = scmp.ne.s32.totalorder %s297, %s299
      %p303 = scmp.eq.s32.totalorder %s32, 0
      %p304 = por %p302, %p303
      %p305 = scmp.ne.s32.totalorder %s297, %s299
      %p306 = scmp.eq.s32.totalorder %s37, 1
      %p307 = por %p305, %p306
      %p308 = scmp.ne.s32.totalorder %s299, %s300
      %p309 = scmp.eq.s32.totalorder %s37, 0
      %p310 = por %p308, %p309
      %p311 = scmp.ne.s32.totalorder %s299, %s300
      %p312 = scmp.eq.s32.totalorder %s38, 1
      %p313 = por %p311, %p312
      %p315 = scmp.ne.s32.totalorder %s300, %s314
      %p316 = scmp.eq.s32.totalorder %s38, 0
      %p317 = por %p315, %p316
      %s319 = sadd.s32 %s318, 1
      %p322 = scmp.eq.s32.totalorder %s32, 1
      %p323 = scmp.ne.s32.totalorder %s318, %s320
      %p324 = scmp.eq.s32.totalorder %s32, 0
      %p325 = por %p323, %p324
      %p326 = scmp.ne.s32.totalorder %s318, %s320
      %p327 = scmp.eq.s32.totalorder %s37, 1
      %p328 = por %p326, %p327
      %p329 = scmp.ne.s32.totalorder %s320, %s321
      %p330 = scmp.eq.s32.totalorder %s37, 0
      %p331 = por %p329, %p330
      %p332 = scmp.ne.s32.totalorder %s320, %s321
      %p333 = scmp.eq.s32.totalorder %s38, 1
      %p334 = por %p332, %p333
      %p336 = scmp.ne.s32.totalorder %s321, %s335
      %p337 = scmp.eq.s32.totalorder %s38, 0
      %p338 = por %p336, %p337
      %s340 = sadd.s32 %s339, 1
      %p343 = scmp.eq.s32.totalorder %s32, 1
      %p344 = scmp.ne.s32.totalorder %s339, %s341
      %p345 = scmp.eq.s32.totalorder %s32, 0
      %p346 = por %p344, %p345
      %p347 = scmp.ne.s32.totalorder %s339, %s341
      %p348 = scmp.eq.s32.totalorder %s37, 1
      %p349 = por %p347, %p348
      %p350 = scmp.ne.s32.totalorder %s341, %s342
      %p351 = scmp.eq.s32.totalorder %s37, 0
      %p352 = por %p350, %p351
      %p353 = scmp.ne.s32.totalorder %s341, %s342
      %p354 = scmp.eq.s32.totalorder %s38, 1
      %p355 = por %p353, %p354
      %p357 = scmp.ne.s32.totalorder %s342, %s356
      %p358 = scmp.eq.s32.totalorder %s38, 0
      %p359 = por %p357, %p358
      %s361 = sadd.s32 %s360, 1
      %p364 = scmp.eq.s32.totalorder %s32, 1
      %p365 = scmp.ne.s32.totalorder %s360, %s362
      %p366 = scmp.eq.s32.totalorder %s32, 0
      %p367 = por %p365, %p366
      %p368 = scmp.ne.s32.totalorder %s360, %s362
      %p369 = scmp.eq.s32.totalorder %s37, 1
      %p370 = por %p368, %p369
      %p371 = scmp.ne.s32.totalorder %s362, %s363
      %p372 = scmp.eq.s32.totalorder %s37, 0
      %p373 = por %p371, %p372
      %p374 = scmp.ne.s32.totalorder %s362, %s363
      %p375 = scmp.eq.s32.totalorder %s38, 1
      %p376 = por %p374, %p375
      %p378 = scmp.ne.s32.totalorder %s363, %s377
      %p379 = scmp.eq.s32.totalorder %s38, 0
      %p380 = por %p378, %p379
      %s382 = sadd.s32 %s381, 1
      %p385 = scmp.eq.s32.totalorder %s32, 1
      %p386 = scmp.ne.s32.totalorder %s381, %s383
      %p387 = scmp.eq.s32.totalorder %s32, 0
      %p388 = por %p386, %p387
      %p389 = scmp.ne.s32.totalorder %s381, %s383
      %p390 = scmp.eq.s32.totalorder %s37, 1
      %p391 = por %p389, %p390
      %p392 = scmp.ne.s32.totalorder %s383, %s384
      %p393 = scmp.eq.s32.totalorder %s37, 0
      %p394 = por %p392, %p393
      %p395 = scmp.ne.s32.totalorder %s383, %s384
      %p396 = scmp.eq.s32.totalorder %s38, 1
      %p397 = por %p395, %p396
      %p399 = scmp.ne.s32.totalorder %s384, %s398
      %p400 = scmp.eq.s32.totalorder %s38, 0
      %p401 = por %p399, %p400
      %s403 = sadd.s32 %s402, 1
      %p406 = scmp.eq.s32.totalorder %s32, 1
      %p407 = scmp.ne.s32.totalorder %s402, %s404
      %p408 = scmp.eq.s32.totalorder %s32, 0
      %p409 = por %p407, %p408
      %p410 = scmp.ne.s32.totalorder %s402, %s404
      %p411 = scmp.eq.s32.totalorder %s37, 1
      %p412 = por %p410, %p411
      %p413 = scmp.ne.s32.totalorder %s404, %s405
      %p414 = scmp.eq.s32.totalorder %s37, 0
      %p415 = por %p413, %p414
      %p416 = scmp.ne.s32.totalorder %s404, %s405
      %p417 = scmp.eq.s32.totalorder %s38, 1
      %p418 = por %p416, %p417
      %p420 = scmp.ne.s32.totalorder %s405, %s419
      %p421 = scmp.eq.s32.totalorder %s38, 0
      %p422 = por %p420, %p421
      %s424 = sadd.s32 %s423, 1
      %p427 = scmp.eq.s32.totalorder %s32, 1
      %p428 = scmp.ne.s32.totalorder %s423, %s425
      %p429 = scmp.eq.s32.totalorder %s32, 0
      %p430 = por %p428, %p429
      %p431 = scmp.ne.s32.totalorder %s423, %s425
      %p432 = scmp.eq.s32.totalorder %s37, 1
      %p433 = por %p431, %p432
      %p434 = scmp.ne.s32.totalorder %s425, %s426
      %p435 = scmp.eq.s32.totalorder %s37, 0
      %p436 = por %p434, %p435
      %p437 = scmp.ne.s32.totalorder %s425, %s426
      %p438 = scmp.eq.s32.totalorder %s38, 1
      %p439 = por %p437, %p438
      %p441 = scmp.ne.s32.totalorder %s426, %s440
      %p442 = scmp.eq.s32.totalorder %s38, 0
      %p443 = por %p441, %p442
      %s444 = ssub.s32 %s32, %s39
      %p445 = scmp.eq.s32.totalorder %s444, 0
      %s447 = sadd.s32 %s446, 1
      %s448 = scalar_select %p445, %s446, %s447
      %p451 = pneg %p445
      %p452 = scmp.eq.s32.totalorder %s32, 1
      %p453 = por %p451, %p452
      %p454 = scmp.ne.s32.totalorder %s446, %s449
      %p455 = scmp.eq.s32.totalorder %s32, 0
      %p456 = por %p454, %p455
      %p457 = scmp.ne.s32.totalorder %s446, %s449
      %p458 = scmp.eq.s32.totalorder %s37, 1
      %p459 = por %p457, %p458
      %p460 = scmp.ne.s32.totalorder %s449, %s450
      %p461 = scmp.eq.s32.totalorder %s37, 0
      %p462 = por %p460, %p461
      %p463 = scmp.ne.s32.totalorder %s449, %s450
      %p464 = scmp.eq.s32.totalorder %s38, 1
      %p465 = por %p463, %p464
      %p467 = scmp.ne.s32.totalorder %s450, %s466
      %p468 = scmp.eq.s32.totalorder %s38, 0
      %p469 = por %p467, %p468
      %p470 = scmp.le.s32.totalorder 1, %s32
      %p471 = scmp.lt.s32.totalorder %s32, 3
      %p472 = pnand %p470, %p471
      %p473 = pneg %p472
      // Predicated region
      $region9: #{tpu_custom_call.1} parent=5 // pred_check
        _
      $region10: #{tpu_custom_call.1} parent=5 // pred_check_branch
        %475 = sbr.rel (%p472) target = $region12
      $region11: #{tpu_custom_call.1} parent=5 // pred_region
        %s476 = ssub.s32 %s32, 1
        // Predicated region
        $region13: #{tpu_custom_call.1} parent=11 // pred_check
          %p477 = pneg %p79
        $region14: #{tpu_custom_call.1} parent=11 // pred_check_branch
          %479 = sbr.rel (%p477) target = $region16
        $region15: #{tpu_custom_call.1} parent=11 // pred_region
          %s481 = ssub.s32 128, 128
          %482 = vsyncadd [#allocation3], %s481
          %s484 = sshll.u32 [#allocation2], 4
          %s485 = int_to_ptr.vmem [resolvable:$true] %s484
          %487 = dma.hbm_to_vmem [thread:$0]  %s1, 128, %s485, [#allocation3]
        $region16: #{tpu_custom_call.1} parent=11 // pred_fallthru
          _
        // Predicated region
        $region17: #{tpu_custom_call.1} parent=11 // pred_check
          %p488 = pneg %p100
        $region18: #{tpu_custom_call.1} parent=11 // pred_check_branch
          %490 = sbr.rel (%p488) target = $region20
        $region19: #{tpu_custom_call.1} parent=11 // pred_region
          _
        $region20: #{tpu_custom_call.1} parent=11 // pred_fallthru
          _
        // Predicated region
        $region21: #{tpu_custom_call.1} parent=11 // pred_check
          %p491 = pneg %p121
        $region22: #{tpu_custom_call.1} parent=11 // pred_check_branch
          %493 = sbr.rel (%p491) target = $region24
        $region23: #{tpu_custom_call.1} parent=11 // pred_region
          %s495 = ssub.s32 128, 128
          %496 = vsyncadd [#allocation6], %s495
          %s498 = sshll.u32 [#allocation5], 4
          %s499 = int_to_ptr.vmem [resolvable:$true] %s498
          %501 = dma.hbm_to_vmem [thread:$0]  %s3, 128, %s499, [#allocation6]
        $region24: #{tpu_custom_call.1} parent=11 // pred_fallthru
          _
        // Predicated region
        $region25: #{tpu_custom_call.1} parent=11 // pred_check
          %p502 = pneg %p142
        $region26: #{tpu_custom_call.1} parent=11 // pred_check_branch
          %504 = sbr.rel (%p502) target = $region28
        $region27: #{tpu_custom_call.1} parent=11 // pred_region
          %s506 = ssub.s32 16, 16
          %507 = vsyncadd [#allocation6], %s506
          %s509 = sshll.u32 [#allocation7], 4
          %s510 = int_to_ptr.vmem [resolvable:$true] %s509
          %512 = dma.hbm_to_vmem [thread:$0]  %s4, 16, %s510, [#allocation6]
        $region28: #{tpu_custom_call.1} parent=11 // pred_fallthru
          _
        // Predicated region
        $region29: #{tpu_custom_call.1} parent=11 // pred_check
          %p513 = pneg %p163
        $region30: #{tpu_custom_call.1} parent=11 // pred_check_branch
          %515 = sbr.rel (%p513) target = $region32
        $region31: #{tpu_custom_call.1} parent=11 // pred_region
          _
        $region32: #{tpu_custom_call.1} parent=11 // pred_fallthru
          _
        // Predicated region
        $region33: #{tpu_custom_call.1} parent=11 // pred_check
          %p516 = pneg %p184
        $region34: #{tpu_custom_call.1} parent=11 // pred_check_branch
          %518 = sbr.rel (%p516) target = $region36
        $region35: #{tpu_custom_call.1} parent=11 // pred_region
          %s520 = ssub.s32 16, 16
          %521 = vsyncadd [#allocation9], %s520
          %s523 = sshll.u32 [#allocation8], 4
          %s524 = int_to_ptr.vmem [resolvable:$true] %s523
          %526 = dma.hbm_to_vmem [thread:$0]  %s6, 16, %s524, [#allocation9]
        $region36: #{tpu_custom_call.1} parent=11 // pred_fallthru
          _
        // Predicated region
        $region37: #{tpu_custom_call.1} parent=11 // pred_check
          %p527 = pneg %p205
        $region38: #{tpu_custom_call.1} parent=11 // pred_check_branch
          %529 = sbr.rel (%p527) target = $region40
        $region39: #{tpu_custom_call.1} parent=11 // pred_region
          _
        $region40: #{tpu_custom_call.1} parent=11 // pred_fallthru
          _
        // Predicated region
        $region41: #{tpu_custom_call.1} parent=11 // pred_check
          %p530 = pneg %p226
        $region42: #{tpu_custom_call.1} parent=11 // pred_check_branch
          %532 = sbr.rel (%p530) target = $region44
        $region43: #{tpu_custom_call.1} parent=11 // pred_region
          %s534 = ssub.s32 16, 16
          %535 = vsyncadd [#allocation9], %s534
          %s537 = sshll.u32 [#allocation10], 4
          %s538 = int_to_ptr.vmem [resolvable:$true] %s537
          %540 = dma.hbm_to_vmem [thread:$0]  %s8, 16, %s538, [#allocation9]
        $region44: #{tpu_custom_call.1} parent=11 // pred_fallthru
          _
        // Predicated region
        $region45: #{tpu_custom_call.1} parent=11 // pred_check
          %p541 = pneg %p247
        $region46: #{tpu_custom_call.1} parent=11 // pred_check_branch
          %543 = sbr.rel (%p541) target = $region48
        $region47: #{tpu_custom_call.1} parent=11 // pred_region
          _
        $region48: #{tpu_custom_call.1} parent=11 // pred_fallthru
          _
        // Predicated region
        $region49: #{tpu_custom_call.1} parent=11 // pred_check
          %p544 = pneg %p268
        $region50: #{tpu_custom_call.1} parent=11 // pred_check_branch
          %546 = sbr.rel (%p544) target = $region52
        $region51: #{tpu_custom_call.1} parent=11 // pred_region
          _
        $region52: #{tpu_custom_call.1} parent=11 // pred_fallthru
          _
        // Predicated region
        $region53: #{tpu_custom_call.1} parent=11 // pred_check
          %p547 = pneg %p289
        $region54: #{tpu_custom_call.1} parent=11 // pred_check_branch
          %549 = sbr.rel (%p547) target = $region56
        $region55: #{tpu_custom_call.1} parent=11 // pred_region
          _
        $region56: #{tpu_custom_call.1} parent=11 // pred_fallthru
          _
        // Predicated region
        $region57: #{tpu_custom_call.1} parent=11 // pred_check
          %p550 = pneg %p310
        $region58: #{tpu_custom_call.1} parent=11 // pred_check_branch
          %552 = sbr.rel (%p550) target = $region60
        $region59: #{tpu_custom_call.1} parent=11 // pred_region
          _
        $region60: #{tpu_custom_call.1} parent=11 // pred_fallthru
          _
        // Predicated region
        $region61: #{tpu_custom_call.1} parent=11 // pred_check
          %p553 = pneg %p331
        $region62: #{tpu_custom_call.1} parent=11 // pred_check_branch
          %555 = sbr.rel (%p553) target = $region64
        $region63: #{tpu_custom_call.1} parent=11 // pred_region
          _
        $region64: #{tpu_custom_call.1} parent=11 // pred_fallthru
          _
        // Predicated region
        $region65: #{tpu_custom_call.1} parent=11 // pred_check
          %p556 = pneg %p352
        $region66: #{tpu_custom_call.1} parent=11 // pred_check_branch
          %558 = sbr.rel (%p556) target = $region68
        $region67: #{tpu_custom_call.1} parent=11 // pred_region
          %s560 = ssub.s32 32, 32
          %561 = vsyncadd [#allocation12], %s560
          %s562 = sshll.u32 [#allocation11], 4
          %s563 = int_to_ptr.vmem [resolvable:$true] %s562
          %568 = dma.hbm_to_vmem [thread:$0]  %s14, 32, %s563, [#allocation12], 16, 16, 1
        $region68: #{tpu_custom_call.1} parent=11 // pred_fallthru
          _
        // Predicated region
        $region69: #{tpu_custom_call.1} parent=11 // pred_check
          %p569 = pneg %p373
        $region70: #{tpu_custom_call.1} parent=11 // pred_check_branch
          %571 = sbr.rel (%p569) target = $region72
        $region71: #{tpu_custom_call.1} parent=11 // pred_region
          _
        $region72: #{tpu_custom_call.1} parent=11 // pred_fallthru
          _
        // Predicated region
        $region73: #{tpu_custom_call.1} parent=11 // pred_check
          %p572 = pneg %p394
        $region74: #{tpu_custom_call.1} parent=11 // pred_check_branch
          %574 = sbr.rel (%p572) target = $region76
        $region75: #{tpu_custom_call.1} parent=11 // pred_region
          _
        $region76: #{tpu_custom_call.1} parent=11 // pred_fallthru
          _
        // Predicated region
        $region77: #{tpu_custom_call.1} parent=11 // pred_check
          %p575 = pneg %p415
        $region78: #{tpu_custom_call.1} parent=11 // pred_check_branch
          %577 = sbr.rel (%p575) target = $region80
        $region79: #{tpu_custom_call.1} parent=11 // pred_region
          _
        $region80: #{tpu_custom_call.1} parent=11 // pred_fallthru
          _
        // Predicated region
        $region81: #{tpu_custom_call.1} parent=11 // pred_check
          %p578 = pneg %p436
        $region82: #{tpu_custom_call.1} parent=11 // pred_check_branch
          %580 = sbr.rel (%p578) target = $region84
        $region83: #{tpu_custom_call.1} parent=11 // pred_region
          _
        $region84: #{tpu_custom_call.1} parent=11 // pred_fallthru
          _
      $region12: #{tpu_custom_call.1} parent=5 // pred_fallthru
        _
      %p581 = scmp.lt.s32.totalorder %s32, 2
      // Predicated region
      $region85: #{tpu_custom_call.1} parent=5 // pred_check
        %p582 = pneg %p581
      $region86: #{tpu_custom_call.1} parent=5 // pred_check_branch
        %584 = sbr.rel (%p582) target = $region88
      $region87: #{tpu_custom_call.1} parent=5 // pred_region
        // Predicated region
        $region89: #{tpu_custom_call.1} parent=87 // pred_check
          %p585 = pneg %p52
        $region90: #{tpu_custom_call.1} parent=87 // pred_check_branch
          %587 = sbr.rel (%p585) target = $region92
        $region91: #{tpu_custom_call.1} parent=87 // pred_region
          %s588 = smul.u32 16, %s32
          %p589 = scmp.lt.s32.totalorder %s588, 31
          %s590 = scalar_select %p589, %s588, 31
          %s591 = smul.addr %s590, 8
          %s592 = scalar_lea.vmem %s0, %s591
          %s593 = smul.u32 16, %s32
        $region92: #{tpu_custom_call.1} parent=87 // pred_fallthru
          _
      $region88: #{tpu_custom_call.1} parent=5 // pred_fallthru
        _
      %p594 = scmp.le.s32.totalorder 1, %s32
      %p595 = scmp.lt.s32.totalorder %s32, 3
      %p596 = pnand %p594, %p595
      %p597 = pneg %p596
      // Predicated region
      $region93: #{tpu_custom_call.1} parent=5 // pred_check
        _
      $region94: #{tpu_custom_call.1} parent=5 // pred_check_branch
        %599 = sbr.rel (%p596) target = $region96
      $region95: #{tpu_custom_call.1} parent=5 // pred_region
        %s600 = ssub.s32 %s32, 1
        // Predicated region
        $region97: #{tpu_custom_call.1} parent=95 // pred_check
          %p601 = pneg %p79
        $region98: #{tpu_custom_call.1} parent=95 // pred_check_branch
          %603 = sbr.rel (%p601) target = $region100
        $region99: #{tpu_custom_call.1} parent=95 // pred_region
          %604 = dma.done [#allocation3], 128
        $region100: #{tpu_custom_call.1} parent=95 // pred_fallthru
          _
        // Predicated region
        $region101: #{tpu_custom_call.1} parent=95 // pred_check
          %p605 = pneg %p121
        $region102: #{tpu_custom_call.1} parent=95 // pred_check_branch
          %607 = sbr.rel (%p605) target = $region104
        $region103: #{tpu_custom_call.1} parent=95 // pred_region
          %608 = dma.done [#allocation6], 128
        $region104: #{tpu_custom_call.1} parent=95 // pred_fallthru
          _
        // Predicated region
        $region105: #{tpu_custom_call.1} parent=95 // pred_check
          %p609 = pneg %p142
        $region106: #{tpu_custom_call.1} parent=95 // pred_check_branch
          %611 = sbr.rel (%p609) target = $region108
        $region107: #{tpu_custom_call.1} parent=95 // pred_region
          %612 = dma.done [#allocation6], 16
        $region108: #{tpu_custom_call.1} parent=95 // pred_fallthru
          _
        // Predicated region
        $region109: #{tpu_custom_call.1} parent=95 // pred_check
          %p613 = pneg %p184
        $region110: #{tpu_custom_call.1} parent=95 // pred_check_branch
          %615 = sbr.rel (%p613) target = $region112
        $region111: #{tpu_custom_call.1} parent=95 // pred_region
          %616 = dma.done [#allocation9], 16
        $region112: #{tpu_custom_call.1} parent=95 // pred_fallthru
          _
        // Predicated region
        $region113: #{tpu_custom_call.1} parent=95 // pred_check
          %p617 = pneg %p226
        $region114: #{tpu_custom_call.1} parent=95 // pred_check_branch
          %619 = sbr.rel (%p617) target = $region116
        $region115: #{tpu_custom_call.1} parent=95 // pred_region
          %620 = dma.done [#allocation9], 16
        $region116: #{tpu_custom_call.1} parent=95 // pred_fallthru
          _
        // Predicated region
        $region117: #{tpu_custom_call.1} parent=95 // pred_check
          %p621 = pneg %p352
        $region118: #{tpu_custom_call.1} parent=95 // pred_check_branch
          %623 = sbr.rel (%p621) target = $region120
        $region119: #{tpu_custom_call.1} parent=95 // pred_region
          %624 = dma.done [#allocation12], 32
        $region120: #{tpu_custom_call.1} parent=95 // pred_fallthru
          _
        %s625 = smul.u32 16, %s37
        %p626 = scmp.lt.s32.totalorder %s625, 31
        %s627 = scalar_select %p626, %s625, 31
        %s628 = smul.addr %s627, 8
        %s629 = scalar_lea.vmem %s0, %s628
        %p630 = pneg %p58
        %p631 = pneg %p55
        %p632 = pneg %p79
        %p633 = pneg %p76
        %p634 = pneg %p100
        %p635 = pneg %p97
        %p636 = pneg %p121
        %p637 = pneg %p118
        %p638 = pneg %p142
        %p639 = pneg %p139
        %p640 = pneg %p163
        %p641 = pneg %p160
        %p642 = pneg %p184
        %p643 = pneg %p181
        %p644 = pneg %p205
        %p645 = pneg %p202
        %p646 = pneg %p226
        %p647 = pneg %p223
        %p648 = pneg %p247
        %p649 = pneg %p244
        %p650 = pneg %p268
        %p651 = pneg %p265
        %p652 = pneg %p289
        %p653 = pneg %p286
        %p654 = pneg %p310
        %p655 = pneg %p307
        %p656 = pneg %p331
        %p657 = pneg %p328
        %p658 = pneg %p352
        %p659 = pneg %p349
        %p660 = pneg %p373
        %p661 = pneg %p370
        %p662 = pneg %p394
        %p663 = pneg %p391
        %p664 = pneg %p415
        %p665 = pneg %p412
        %p666 = pneg %p436
        %p667 = pneg %p433
        %p668 = pneg %p462
        %p669 = pneg %p459
        %s670 = sand.u32 %s449, 1
        %s671 = scalar_lea.sflag [#allocation4], %s670
        %s672 = sand.u32 %s449, 1
        %s673 = smul.addr %s672, 8
        %s674 = scalar_lea.vmem [#allocation13], %s673
        %s675 = smul.u32 16, %s37
        %p676 = scmp.lt.s32.totalorder %s675, 31
        %s677 = scalar_select %p676, %s675, 31
        %s678 = smul.addr %s677, 8
        %s679 = scalar_lea.vmem %s0, %s678
        %s680 = smul.u32 16, %s37
        %v681 = vld [vmem:[%s679] sm:$0xff]
        %v682 = vld [vmem:[%s679 + $0x8] sm:$0xff]
        %v683 = vld [vmem:[%s679 + $0x10] sm:$0xff]
        %v684 = vld [vmem:[%s679 + $0x18] sm:$0xff]
        %v685 = vld [vmem:[%s679 + $0x20] sm:$0xff]
        %v686 = vld [vmem:[%s679 + $0x28] sm:$0xff]
        %v687 = vld [vmem:[%s679 + $0x30] sm:$0xff]
        %v688 = vld [vmem:[%s679 + $0x38] sm:$0xff]
        %v689 = vld [vmem:[%s679 + $0x40] sm:$0xff]
        %v690 = vld [vmem:[%s679 + $0x48] sm:$0xff]
        %v691 = vld [vmem:[%s679 + $0x50] sm:$0xff]
        %v692 = vld [vmem:[%s679 + $0x58] sm:$0xff]
        %v693 = vld [vmem:[%s679 + $0x60] sm:$0xff]
        %v694 = vld [vmem:[%s679 + $0x68] sm:$0xff]
        %v695 = vld [vmem:[%s679 + $0x70] sm:$0xff]
        %v696 = vld [vmem:[%s679 + $0x78] sm:$0xff]
        %v697 = vld [vmem:[#allocation2] sm:$0xff]
        %v698 = vld [vmem:[%s2] sm:$0x1]
        %v700 = vlaneseq
        %v701 = vshrl.u32 %v700, 7
        %v702 = vsub.s32 0, %v701
        %v703 = vrot.slane %v698, %v702
        %vm705 = vcmask 64512
        %v707 = vsel %vm705, %v681, 0
        %v710 = vsel %vm705, %v682, 0
        %v713 = vsel %vm705, %v683, 0
        %v716 = vsel %vm705, %v684, 0
        %v719 = vsel %vm705, %v685, 0
        %v722 = vsel %vm705, %v686, 0
        %v725 = vsel %vm705, %v687, 0
        %v728 = vsel %vm705, %v688, 0
        %v731 = vsel %vm705, %v689, 0
        %v734 = vsel %vm705, %v690, 0
        %v737 = vsel %vm705, %v691, 0
        %v740 = vsel %vm705, %v692, 0
        %v743 = vsel %vm705, %v693, 0
        %v746 = vsel %vm705, %v694, 0
        %v749 = vsel %vm705, %v695, 0
        %v752 = vsel %vm705, %v696, 0
        %754 = vmatprep.subr.mxu0 0.0
        %755 = vmatpush1.msra.mxu0 %v697
        %756 = vmatprep.subr.mxu0 0.0
        %757 = vmatpush1.msra.mxu0 0.0
        %758 = vmatprep.subr.mxu0 0.0
        %759 = vmatpush1.msra.mxu0 0.0
        %760 = vmatprep.subr.mxu0 0.0
        %761 = vmatpush1.msra.mxu0 0.0
        %762 = vmatprep.subr.mxu0 0.0
        %763 = vmatpush1.msra.mxu0 0.0
        %764 = vmatprep.subr.mxu0 0.0
        %765 = vmatpush1.msra.mxu0 0.0
        %766 = vmatprep.subr.mxu0 0.0
        %767 = vmatpush1.msra.mxu0 0.0
        %768 = vmatprep.subr.mxu0 0.0
        %769 = vmatpush1.msra.mxu0 0.0
        %770 = vmatprep.subr.mxu0 0.0
        %771 = vmatpush1.msra.mxu0 0.0
        %772 = vmatprep.subr.mxu0 0.0
        %773 = vmatpush1.msra.mxu0 0.0
        %774 = vmatprep.subr.mxu0 0.0
        %775 = vmatpush1.msra.mxu0 0.0
        %776 = vmatprep.subr.mxu0 0.0
        %777 = vmatpush1.msra.mxu0 0.0
        %778 = vmatprep.subr.mxu0 0.0
        %779 = vmatpush1.msra.mxu0 0.0
        %780 = vmatprep.subr.mxu0 0.0
        %781 = vmatpush1.msra.mxu0 0.0
        %782 = vmatprep.subr.mxu0 0.0
        %783 = vmatpush1.msra.mxu0 0.0
        %784 = vmatprep.subr.mxu0 0.0
        %785 = vmatpush1.msra.mxu0 0.0
        %786 = vmatprep.subr.mxu0 0.0
        %787 = vmatpush1.msra.mxu0 0.0
        %788 = vmatprep.subr.mxu0 0.0
        %789 = vmatpush1.msra.mxu0 0.0
        %790 = vmatprep.subr.mxu0 0.0
        %791 = vmatpush1.msra.mxu0 0.0
        %792 = vmatprep.subr.mxu0 0.0
        %793 = vmatpush1.msra.mxu0 0.0
        %794 = vmatprep.subr.mxu0 0.0
        %795 = vmatpush1.msra.mxu0 0.0
        %796 = vmatprep.subr.mxu0 0.0
        %797 = vmatpush1.msra.mxu0 0.0
        %798 = vmatprep.subr.mxu0 0.0
        %799 = vmatpush1.msra.mxu0 0.0
        %800 = vmatprep.subr.mxu0 0.0
        %801 = vmatpush1.msra.mxu0 0.0
        %802 = vmatprep.subr.mxu0 0.0
        %803 = vmatpush1.msra.mxu0 0.0
        %804 = vmatprep.subr.mxu0 0.0
        %805 = vmatpush1.msra.mxu0 0.0
        %806 = vmatprep.subr.mxu0 0.0
        %807 = vmatpush1.msra.mxu0 0.0
        %808 = vmatprep.subr.mxu0 0.0
        %809 = vmatpush1.msra.mxu0 0.0
        %810 = vmatprep.subr.mxu0 0.0
        %811 = vmatpush1.msra.mxu0 0.0
        %812 = vmatprep.subr.mxu0 0.0
        %813 = vmatpush1.msra.mxu0 0.0
        %814 = vmatprep.subr.mxu0 0.0
        %815 = vmatpush1.msra.mxu0 0.0
        %816 = vmatprep.subr.mxu0 0.0
        %817 = vmatpush1.msra.mxu0 0.0
        %818 = vmatprep.mubr.f32.mxu0 0.0
        %819 = vmatmul.mubr.f32.gmra.mrb[0].mxu0 %v707
        %v820 = vpop.f32.mrb[0].mxu0
        %v821 = vadd.f32 %v703, %v820
        %v822 = vpop.f32.mrb[0].mxu0
        %823 = vmatprep.mubr.f32.mxu0 0.0
        %824 = vmatmul.mubr.f32.gmra.mrb[0].mxu0 %v710
        %v825 = vpop.f32.mrb[0].mxu0
        %v826 = vadd.f32 %v703, %v825
        %v827 = vpop.f32.mrb[0].mxu0
        %828 = vmatprep.mubr.f32.mxu0 0.0
        %829 = vmatmul.mubr.f32.gmra.mrb[0].mxu0 %v713
        %v830 = vpop.f32.mrb[0].mxu0
        %v831 = vadd.f32 %v703, %v830
        %v832 = vpop.f32.mrb[0].mxu0
        %833 = vmatprep.mubr.f32.mxu0 0.0
        %834 = vmatmul.mubr.f32.gmra.mrb[0].mxu0 %v716
        %v835 = vpop.f32.mrb[0].mxu0
        %v836 = vadd.f32 %v703, %v835
        %v837 = vpop.f32.mrb[0].mxu0
        %838 = vmatprep.mubr.f32.mxu0 0.0
        %839 = vmatmul.mubr.f32.gmra.mrb[0].mxu0 %v719
        %v840 = vpop.f32.mrb[0].mxu0
        %v841 = vadd.f32 %v703, %v840
        %v842 = vpop.f32.mrb[0].mxu0
        %843 = vmatprep.mubr.f32.mxu0 0.0
        %844 = vmatmul.mubr.f32.gmra.mrb[0].mxu0 %v722
        %v845 = vpop.f32.mrb[0].mxu0
        %v846 = vadd.f32 %v703, %v845
        %v847 = vpop.f32.mrb[0].mxu0
        %848 = vmatprep.mubr.f32.mxu0 0.0
        %849 = vmatmul.mubr.f32.gmra.mrb[0].mxu0 %v725
        %v850 = vpop.f32.mrb[0].mxu0
        %v851 = vadd.f32 %v703, %v850
        %v852 = vpop.f32.mrb[0].mxu0
        %853 = vmatprep.mubr.f32.mxu0 0.0
        %854 = vmatmul.mubr.f32.gmra.mrb[0].mxu0 %v728
        %v855 = vpop.f32.mrb[0].mxu0
        %v856 = vadd.f32 %v703, %v855
        %v857 = vpop.f32.mrb[0].mxu0
        %858 = vmatprep.mubr.f32.mxu0 0.0
        %859 = vmatmul.mubr.f32.gmra.mrb[0].mxu0 %v731
        %v860 = vpop.f32.mrb[0].mxu0
        %v861 = vadd.f32 %v703, %v860
        %v862 = vpop.f32.mrb[0].mxu0
        %863 = vmatprep.mubr.f32.mxu0 0.0
        %864 = vmatmul.mubr.f32.gmra.mrb[0].mxu0 %v734
        %v865 = vpop.f32.mrb[0].mxu0
        %v866 = vadd.f32 %v703, %v865
        %v867 = vpop.f32.mrb[0].mxu0
        %868 = vmatprep.mubr.f32.mxu0 0.0
        %869 = vmatmul.mubr.f32.gmra.mrb[0].mxu0 %v737
        %v870 = vpop.f32.mrb[0].mxu0
        %v871 = vadd.f32 %v703, %v870
        %v872 = vpop.f32.mrb[0].mxu0
        %873 = vmatprep.mubr.f32.mxu0 0.0
        %874 = vmatmul.mubr.f32.gmra.mrb[0].mxu0 %v740
        %v875 = vpop.f32.mrb[0].mxu0
        %v876 = vadd.f32 %v703, %v875
        %v877 = vpop.f32.mrb[0].mxu0
        %878 = vmatprep.mubr.f32.mxu0 0.0
        %879 = vmatmul.mubr.f32.gmra.mrb[0].mxu0 %v743
        %v880 = vpop.f32.mrb[0].mxu0
        %v881 = vadd.f32 %v703, %v880
        %v882 = vpop.f32.mrb[0].mxu0
        %883 = vmatprep.mubr.f32.mxu0 0.0
        %884 = vmatmul.mubr.f32.gmra.mrb[0].mxu0 %v746
        %v885 = vpop.f32.mrb[0].mxu0
        %v886 = vadd.f32 %v703, %v885
        %v887 = vpop.f32.mrb[0].mxu0
        %888 = vmatprep.mubr.f32.mxu0 0.0
        %889 = vmatmul.mubr.f32.gmra.mrb[0].mxu0 %v749
        %v890 = vpop.f32.mrb[0].mxu0
        %v891 = vadd.f32 %v703, %v890
        %v892 = vpop.f32.mrb[0].mxu0
        %893 = vmatprep.mubr.f32.mxu0 0.0
        %894 = vmatmul.mubr.f32.gmra.mrb[0].mxu0 %v752
        %v895 = vpop.f32.mrb[0].mxu0
        %v896 = vadd.f32 %v703, %v895
        %v897 = vpop.f32.mrb[0].mxu0
        %898 = vdwg.mxu0
        %v899 = vld [vmem:[#allocation5] sm:$0xff]
        %v900 = vld [vmem:[#allocation7] sm:$0x1]
        %v902 = vlaneseq
        %v903 = vshrl.u32 %v902, 7
        %v904 = vsub.s32 0, %v903
        %v905 = vrot.slane %v900, %v904
        %907 = vmatprep.subr.mxu0 0.0
        %908 = vmatpush1.msra.mxu0 %v899
        %909 = vmatprep.subr.mxu0 0.0
        %910 = vmatpush1.msra.mxu0 0.0
        %911 = vmatprep.subr.mxu0 0.0
        %912 = vmatpush1.msra.mxu0 0.0
        %913 = vmatprep.subr.mxu0 0.0
        %914 = vmatpush1.msra.mxu0 0.0
        %915 = vmatprep.subr.mxu0 0.0
        %916 = vmatpush1.msra.mxu0 0.0
        %917 = vmatprep.subr.mxu0 0.0
        %918 = vmatpush1.msra.mxu0 0.0
        %919 = vmatprep.subr.mxu0 0.0
        %920 = vmatpush1.msra.mxu0 0.0
        %921 = vmatprep.subr.mxu0 0.0
        %922 = vmatpush1.msra.mxu0 0.0
        %923 = vmatprep.subr.mxu0 0.0
        %924 = vmatpush1.msra.mxu0 0.0
        %925 = vmatprep.subr.mxu0 0.0
        %926 = vmatpush1.msra.mxu0 0.0
        %927 = vmatprep.subr.mxu0 0.0
        %928 = vmatpush1.msra.mxu0 0.0
        %929 = vmatprep.subr.mxu0 0.0
        %930 = vmatpush1.msra.mxu0 0.0
        %931 = vmatprep.subr.mxu0 0.0
        %932 = vmatpush1.msra.mxu0 0.0
        %933 = vmatprep.subr.mxu0 0.0
        %934 = vmatpush1.msra.mxu0 0.0
        %935 = vmatprep.subr.mxu0 0.0
        %936 = vmatpush1.msra.mxu0 0.0
        %937 = vmatprep.subr.mxu0 0.0
        %938 = vmatpush1.msra.mxu0 0.0
        %939 = vmatprep.subr.mxu0 0.0
        %940 = vmatpush1.msra.mxu0 0.0
        %941 = vmatprep.subr.mxu0 0.0
        %942 = vmatpush1.msra.mxu0 0.0
        %943 = vmatprep.subr.mxu0 0.0
        %944 = vmatpush1.msra.mxu0 0.0
        %945 = vmatprep.subr.mxu0 0.0
        %946 = vmatpush1.msra.mxu0 0.0
        %947 = vmatprep.subr.mxu0 0.0
        %948 = vmatpush1.msra.mxu0 0.0
        %949 = vmatprep.subr.mxu0 0.0
        %950 = vmatpush1.msra.mxu0 0.0
        %951 = vmatprep.subr.mxu0 0.0
        %952 = vmatpush1.msra.mxu0 0.0
        %953 = vmatprep.subr.mxu0 0.0
        %954 = vmatpush1.msra.mxu0 0.0
        %955 = vmatprep.subr.mxu0 0.0
        %956 = vmatpush1.msra.mxu0 0.0
        %957 = vmatprep.subr.mxu0 0.0
        %958 = vmatpush1.msra.mxu0 0.0
        %959 = vmatprep.subr.mxu0 0.0
        %960 = vmatpush1.msra.mxu0 0.0
        %961 = vmatprep.subr.mxu0 0.0
        %962 = vmatpush1.msra.mxu0 0.0
        %963 = vmatprep.subr.mxu0 0.0
        %964 = vmatpush1.msra.mxu0 0.0
        %965 = vmatprep.subr.mxu0 0.0
        %966 = vmatpush1.msra.mxu0 0.0
        %967 = vmatprep.subr.mxu0 0.0
        %968 = vmatpush1.msra.mxu0 0.0
        %969 = vmatprep.subr.mxu0 0.0
        %970 = vmatpush1.msra.mxu0 0.0
        %971 = vmatprep.mubr.f32.mxu0 0.0
        %972 = vmatmul.mubr.f32.gmra.mrb[0].mxu0 %v707
        %v973 = vpop.f32.mrb[0].mxu0
        %v974 = vadd.f32 %v905, %v973
        %v975 = vpop.f32.mrb[0].mxu0
        %976 = vmatprep.mubr.f32.mxu0 0.0
        %977 = vmatmul.mubr.f32.gmra.mrb[0].mxu0 %v710
        %v978 = vpop.f32.mrb[0].mxu0
        %v979 = vadd.f32 %v905, %v978
        %v980 = vpop.f32.mrb[0].mxu0
        %981 = vmatprep.mubr.f32.mxu0 0.0
        %982 = vmatmul.mubr.f32.gmra.mrb[0].mxu0 %v713
        %v983 = vpop.f32.mrb[0].mxu0
        %v984 = vadd.f32 %v905, %v983
        %v985 = vpop.f32.mrb[0].mxu0
        %986 = vmatprep.mubr.f32.mxu0 0.0
        %987 = vmatmul.mubr.f32.gmra.mrb[0].mxu0 %v716
        %v988 = vpop.f32.mrb[0].mxu0
        %v989 = vadd.f32 %v905, %v988
        %v990 = vpop.f32.mrb[0].mxu0
        %991 = vmatprep.mubr.f32.mxu0 0.0
        %992 = vmatmul.mubr.f32.gmra.mrb[0].mxu0 %v719
        %v993 = vpop.f32.mrb[0].mxu0
        %v994 = vadd.f32 %v905, %v993
        %v995 = vpop.f32.mrb[0].mxu0
        %996 = vmatprep.mubr.f32.mxu0 0.0
        %997 = vmatmul.mubr.f32.gmra.mrb[0].mxu0 %v722
        %v998 = vpop.f32.mrb[0].mxu0
        %v999 = vadd.f32 %v905, %v998
        %v1000 = vpop.f32.mrb[0].mxu0
        %1001 = vmatprep.mubr.f32.mxu0 0.0
        %1002 = vmatmul.mubr.f32.gmra.mrb[0].mxu0 %v725
        %v1003 = vpop.f32.mrb[0].mxu0
        %v1004 = vadd.f32 %v905, %v1003
        %v1005 = vpop.f32.mrb[0].mxu0
        %1006 = vmatprep.mubr.f32.mxu0 0.0
        %1007 = vmatmul.mubr.f32.gmra.mrb[0].mxu0 %v728
        %v1008 = vpop.f32.mrb[0].mxu0
        %v1009 = vadd.f32 %v905, %v1008
        %v1010 = vpop.f32.mrb[0].mxu0
        %1011 = vmatprep.mubr.f32.mxu0 0.0
        %1012 = vmatmul.mubr.f32.gmra.mrb[0].mxu0 %v731
        %v1013 = vpop.f32.mrb[0].mxu0
        %v1014 = vadd.f32 %v905, %v1013
        %v1015 = vpop.f32.mrb[0].mxu0
        %1016 = vmatprep.mubr.f32.mxu0 0.0
        %1017 = vmatmul.mubr.f32.gmra.mrb[0].mxu0 %v734
        %v1018 = vpop.f32.mrb[0].mxu0
        %v1019 = vadd.f32 %v905, %v1018
        %v1020 = vpop.f32.mrb[0].mxu0
        %1021 = vmatprep.mubr.f32.mxu0 0.0
        %1022 = vmatmul.mubr.f32.gmra.mrb[0].mxu0 %v737
        %v1023 = vpop.f32.mrb[0].mxu0
        %v1024 = vadd.f32 %v905, %v1023
        %v1025 = vpop.f32.mrb[0].mxu0
        %1026 = vmatprep.mubr.f32.mxu0 0.0
        %1027 = vmatmul.mubr.f32.gmra.mrb[0].mxu0 %v740
        %v1028 = vpop.f32.mrb[0].mxu0
        %v1029 = vadd.f32 %v905, %v1028
        %v1030 = vpop.f32.mrb[0].mxu0
        %1031 = vmatprep.mubr.f32.mxu0 0.0
        %1032 = vmatmul.mubr.f32.gmra.mrb[0].mxu0 %v743
        %v1033 = vpop.f32.mrb[0].mxu0
        %v1034 = vadd.f32 %v905, %v1033
        %v1035 = vpop.f32.mrb[0].mxu0
        %1036 = vmatprep.mubr.f32.mxu0 0.0
        %1037 = vmatmul.mubr.f32.gmra.mrb[0].mxu0 %v746
        %v1038 = vpop.f32.mrb[0].mxu0
        %v1039 = vadd.f32 %v905, %v1038
        %v1040 = vpop.f32.mrb[0].mxu0
        %1041 = vmatprep.mubr.f32.mxu0 0.0
        %1042 = vmatmul.mubr.f32.gmra.mrb[0].mxu0 %v749
        %v1043 = vpop.f32.mrb[0].mxu0
        %v1044 = vadd.f32 %v905, %v1043
        %v1045 = vpop.f32.mrb[0].mxu0
        %1046 = vmatprep.mubr.f32.mxu0 0.0
        %1047 = vmatmul.mubr.f32.gmra.mrb[0].mxu0 %v752
        %v1048 = vpop.f32.mrb[0].mxu0
        %v1049 = vadd.f32 %v905, %v1048
        %v1050 = vpop.f32.mrb[0].mxu0
        %1051 = vdwg.mxu0
        %v1052 = vmax.f32 %v974, 0.0
        %v1053 = vmax.f32 %v979, 0.0
        %v1054 = vmax.f32 %v984, 0.0
        %v1055 = vmax.f32 %v989, 0.0
        %v1056 = vmax.f32 %v994, 0.0
        %v1057 = vmax.f32 %v999, 0.0
        %v1058 = vmax.f32 %v1004, 0.0
        %v1059 = vmax.f32 %v1009, 0.0
        %v1060 = vmax.f32 %v1014, 0.0
        %v1061 = vmax.f32 %v1019, 0.0
        %v1062 = vmax.f32 %v1024, 0.0
        %v1063 = vmax.f32 %v1029, 0.0
        %v1064 = vmax.f32 %v1034, 0.0
        %v1065 = vmax.f32 %v1039, 0.0
        %v1066 = vmax.f32 %v1044, 0.0
        %v1067 = vmax.f32 %v1049, 0.0
        %v1068 = vld [vmem:[%s5] sm:$0xff]
        %v1069 = vld [vmem:[%s5 + $0x8] sm:$0xff]
        %v1070 = vld [vmem:[%s5 + $0x10] sm:$0xff]
        %v1071 = vld [vmem:[%s5 + $0x18] sm:$0xff]
        %v1072 = vld [vmem:[%s5 + $0x20] sm:$0xff]
        %v1073 = vld [vmem:[%s5 + $0x28] sm:$0xff]
        %v1074 = vld [vmem:[%s5 + $0x30] sm:$0xff]
        %v1075 = vld [vmem:[%s5 + $0x38] sm:$0xff]
        %v1076 = vld [vmem:[%s5 + $0x40] sm:$0xff]
        %v1077 = vld [vmem:[%s5 + $0x48] sm:$0xff]
        %v1078 = vld [vmem:[%s5 + $0x50] sm:$0xff]
        %v1079 = vld [vmem:[%s5 + $0x58] sm:$0xff]
        %v1080 = vld [vmem:[%s5 + $0x60] sm:$0xff]
        %v1081 = vld [vmem:[%s5 + $0x68] sm:$0xff]
        %v1082 = vld [vmem:[%s5 + $0x70] sm:$0xff]
        %v1083 = vld [vmem:[%s5 + $0x78] sm:$0xff]
        %v1084 = vld [vmem:[#allocation8] sm:$0x1]
        %v1086 = vlaneseq
        %v1087 = vshrl.u32 %v1086, 7
        %v1088 = vsub.s32 0, %v1087
        %v1089 = vrot.slane %v1084, %v1088
        %1091 = vmatprep.subr.mxu0 0.0
        %1092 = vmatpush1.msra.mxu0 %v1068
        %1093 = vmatprep.subr.mxu0 0.0
        %1094 = vmatpush1.msra.mxu0 %v1069
        %1095 = vmatprep.subr.mxu0 0.0
        %1096 = vmatpush1.msra.mxu0 %v1070
        %1097 = vmatprep.subr.mxu0 0.0
        %1098 = vmatpush1.msra.mxu0 %v1071
        %1099 = vmatprep.subr.mxu0 0.0
        %1100 = vmatpush1.msra.mxu0 %v1072
        %1101 = vmatprep.subr.mxu0 0.0
        %1102 = vmatpush1.msra.mxu0 %v1073
        %1103 = vmatprep.subr.mxu0 0.0
        %1104 = vmatpush1.msra.mxu0 %v1074
        %1105 = vmatprep.subr.mxu0 0.0
        %1106 = vmatpush1.msra.mxu0 %v1075
        %1107 = vmatprep.subr.mxu0 0.0
        %1108 = vmatpush1.msra.mxu0 %v1076
        %1109 = vmatprep.subr.mxu0 0.0
        %1110 = vmatpush1.msra.mxu0 %v1077
        %1111 = vmatprep.subr.mxu0 0.0
        %1112 = vmatpush1.msra.mxu0 %v1078
        %1113 = vmatprep.subr.mxu0 0.0
        %1114 = vmatpush1.msra.mxu0 %v1079
        %1115 = vmatprep.subr.mxu0 0.0
        %1116 = vmatpush1.msra.mxu0 %v1080
        %1117 = vmatprep.subr.mxu0 0.0
        %1118 = vmatpush1.msra.mxu0 %v1081
        %1119 = vmatprep.subr.mxu0 0.0
        %1120 = vmatpush1.msra.mxu0 %v1082
        %1121 = vmatprep.subr.mxu0 0.0
        %1122 = vmatpush1.msra.mxu0 %v1083
        %1123 = vmatprep.subr.mxu0 0.0
        %1124 = vmatpush1.msra.mxu0 0.0
        %1125 = vmatprep.subr.mxu0 0.0
        %1126 = vmatpush1.msra.mxu0 0.0
        %1127 = vmatprep.subr.mxu0 0.0
        %1128 = vmatpush1.msra.mxu0 0.0
        %1129 = vmatprep.subr.mxu0 0.0
        %1130 = vmatpush1.msra.mxu0 0.0
        %1131 = vmatprep.subr.mxu0 0.0
        %1132 = vmatpush1.msra.mxu0 0.0
        %1133 = vmatprep.subr.mxu0 0.0
        %1134 = vmatpush1.msra.mxu0 0.0
        %1135 = vmatprep.subr.mxu0 0.0
        %1136 = vmatpush1.msra.mxu0 0.0
        %1137 = vmatprep.subr.mxu0 0.0
        %1138 = vmatpush1.msra.mxu0 0.0
        %1139 = vmatprep.subr.mxu0 0.0
        %1140 = vmatpush1.msra.mxu0 0.0
        %1141 = vmatprep.subr.mxu0 0.0
        %1142 = vmatpush1.msra.mxu0 0.0
        %1143 = vmatprep.subr.mxu0 0.0
        %1144 = vmatpush1.msra.mxu0 0.0
        %1145 = vmatprep.subr.mxu0 0.0
        %1146 = vmatpush1.msra.mxu0 0.0
        %1147 = vmatprep.subr.mxu0 0.0
        %1148 = vmatpush1.msra.mxu0 0.0
        %1149 = vmatprep.subr.mxu0 0.0
        %1150 = vmatpush1.msra.mxu0 0.0
        %1151 = vmatprep.subr.mxu0 0.0
        %1152 = vmatpush1.msra.mxu0 0.0
        %1153 = vmatprep.subr.mxu0 0.0
        %1154 = vmatpush1.msra.mxu0 0.0
        %1155 = vmatprep.mubr.f32.mxu0 0.0
        %1156 = vmatmul.mubr.f32.gmra.mrb[0].mxu0 %v1052
        %v1157 = vpop.f32.mrb[0].mxu0
        %v1158 = vadd.f32 %v1089, %v1157
        %v1159 = vpop.f32.mrb[0].mxu0
        %1160 = vmatprep.mubr.f32.mxu0 0.0
        %1161 = vmatmul.mubr.f32.gmra.mrb[0].mxu0 %v1053
        %v1162 = vpop.f32.mrb[0].mxu0
        %v1163 = vadd.f32 %v1089, %v1162
        %v1164 = vpop.f32.mrb[0].mxu0
        %1165 = vmatprep.mubr.f32.mxu0 0.0
        %1166 = vmatmul.mubr.f32.gmra.mrb[0].mxu0 %v1054
        %v1167 = vpop.f32.mrb[0].mxu0
        %v1168 = vadd.f32 %v1089, %v1167
        %v1169 = vpop.f32.mrb[0].mxu0
        %1170 = vmatprep.mubr.f32.mxu0 0.0
        %1171 = vmatmul.mubr.f32.gmra.mrb[0].mxu0 %v1055
        %v1172 = vpop.f32.mrb[0].mxu0
        %v1173 = vadd.f32 %v1089, %v1172
        %v1174 = vpop.f32.mrb[0].mxu0
        %1175 = vmatprep.mubr.f32.mxu0 0.0
        %1176 = vmatmul.mubr.f32.gmra.mrb[0].mxu0 %v1056
        %v1177 = vpop.f32.mrb[0].mxu0
        %v1178 = vadd.f32 %v1089, %v1177
        %v1179 = vpop.f32.mrb[0].mxu0
        %1180 = vmatprep.mubr.f32.mxu0 0.0
        %1181 = vmatmul.mubr.f32.gmra.mrb[0].mxu0 %v1057
        %v1182 = vpop.f32.mrb[0].mxu0
        %v1183 = vadd.f32 %v1089, %v1182
        %v1184 = vpop.f32.mrb[0].mxu0
        %1185 = vmatprep.mubr.f32.mxu0 0.0
        %1186 = vmatmul.mubr.f32.gmra.mrb[0].mxu0 %v1058
        %v1187 = vpop.f32.mrb[0].mxu0
        %v1188 = vadd.f32 %v1089, %v1187
        %v1189 = vpop.f32.mrb[0].mxu0
        %1190 = vmatprep.mubr.f32.mxu0 0.0
        %1191 = vmatmul.mubr.f32.gmra.mrb[0].mxu0 %v1059
        %v1192 = vpop.f32.mrb[0].mxu0
        %v1193 = vadd.f32 %v1089, %v1192
        %v1194 = vpop.f32.mrb[0].mxu0
        %1195 = vmatprep.mubr.f32.mxu0 0.0
        %1196 = vmatmul.mubr.f32.gmra.mrb[0].mxu0 %v1060
        %v1197 = vpop.f32.mrb[0].mxu0
        %v1198 = vadd.f32 %v1089, %v1197
        %v1199 = vpop.f32.mrb[0].mxu0
        %1200 = vmatprep.mubr.f32.mxu0 0.0
        %1201 = vmatmul.mubr.f32.gmra.mrb[0].mxu0 %v1061
        %v1202 = vpop.f32.mrb[0].mxu0
        %v1203 = vadd.f32 %v1089, %v1202
        %v1204 = vpop.f32.mrb[0].mxu0
        %1205 = vmatprep.mubr.f32.mxu0 0.0
        %1206 = vmatmul.mubr.f32.gmra.mrb[0].mxu0 %v1062
        %v1207 = vpop.f32.mrb[0].mxu0
        %v1208 = vadd.f32 %v1089, %v1207
        %v1209 = vpop.f32.mrb[0].mxu0
        %1210 = vmatprep.mubr.f32.mxu0 0.0
        %1211 = vmatmul.mubr.f32.gmra.mrb[0].mxu0 %v1063
        %v1212 = vpop.f32.mrb[0].mxu0
        %v1213 = vadd.f32 %v1089, %v1212
        %v1214 = vpop.f32.mrb[0].mxu0
        %1215 = vmatprep.mubr.f32.mxu0 0.0
        %1216 = vmatmul.mubr.f32.gmra.mrb[0].mxu0 %v1064
        %v1217 = vpop.f32.mrb[0].mxu0
        %v1218 = vadd.f32 %v1089, %v1217
        %v1219 = vpop.f32.mrb[0].mxu0
        %1220 = vmatprep.mubr.f32.mxu0 0.0
        %1221 = vmatmul.mubr.f32.gmra.mrb[0].mxu0 %v1065
        %v1222 = vpop.f32.mrb[0].mxu0
        %v1223 = vadd.f32 %v1089, %v1222
        %v1224 = vpop.f32.mrb[0].mxu0
        %1225 = vmatprep.mubr.f32.mxu0 0.0
        %1226 = vmatmul.mubr.f32.gmra.mrb[0].mxu0 %v1066
        %v1227 = vpop.f32.mrb[0].mxu0
        %v1228 = vadd.f32 %v1089, %v1227
        %v1229 = vpop.f32.mrb[0].mxu0
        %1230 = vmatprep.mubr.f32.mxu0 0.0
        %1231 = vmatmul.mubr.f32.gmra.mrb[0].mxu0 %v1067
        %v1232 = vpop.f32.mrb[0].mxu0
        %v1233 = vadd.f32 %v1089, %v1232
        %v1234 = vpop.f32.mrb[0].mxu0
        %1235 = vdwg.mxu0
        %v1236 = vld [vmem:[%s7] sm:$0xff]
        %v1237 = vld [vmem:[%s7 + $0x8] sm:$0xff]
        %v1238 = vld [vmem:[%s7 + $0x10] sm:$0xff]
        %v1239 = vld [vmem:[%s7 + $0x18] sm:$0xff]
        %v1240 = vld [vmem:[%s7 + $0x20] sm:$0xff]
        %v1241 = vld [vmem:[%s7 + $0x28] sm:$0xff]
        %v1242 = vld [vmem:[%s7 + $0x30] sm:$0xff]
        %v1243 = vld [vmem:[%s7 + $0x38] sm:$0xff]
        %v1244 = vld [vmem:[%s7 + $0x40] sm:$0xff]
        %v1245 = vld [vmem:[%s7 + $0x48] sm:$0xff]
        %v1246 = vld [vmem:[%s7 + $0x50] sm:$0xff]
        %v1247 = vld [vmem:[%s7 + $0x58] sm:$0xff]
        %v1248 = vld [vmem:[%s7 + $0x60] sm:$0xff]
        %v1249 = vld [vmem:[%s7 + $0x68] sm:$0xff]
        %v1250 = vld [vmem:[%s7 + $0x70] sm:$0xff]
        %v1251 = vld [vmem:[%s7 + $0x78] sm:$0xff]
        %v1252 = vld [vmem:[#allocation10] sm:$0x1]
        %v1254 = vlaneseq
        %v1255 = vshrl.u32 %v1254, 7
        %v1256 = vsub.s32 0, %v1255
        %v1257 = vrot.slane %v1252, %v1256
        %1259 = vmatprep.subr.mxu0 0.0
        %1260 = vmatpush1.msra.mxu0 %v1236
        %1261 = vmatprep.subr.mxu0 0.0
        %1262 = vmatpush1.msra.mxu0 %v1237
        %1263 = vmatprep.subr.mxu0 0.0
        %1264 = vmatpush1.msra.mxu0 %v1238
        %1265 = vmatprep.subr.mxu0 0.0
        %1266 = vmatpush1.msra.mxu0 %v1239
        %1267 = vmatprep.subr.mxu0 0.0
        %1268 = vmatpush1.msra.mxu0 %v1240
        %1269 = vmatprep.subr.mxu0 0.0
        %1270 = vmatpush1.msra.mxu0 %v1241
        %1271 = vmatprep.subr.mxu0 0.0
        %1272 = vmatpush1.msra.mxu0 %v1242
        %1273 = vmatprep.subr.mxu0 0.0
        %1274 = vmatpush1.msra.mxu0 %v1243
        %1275 = vmatprep.subr.mxu0 0.0
        %1276 = vmatpush1.msra.mxu0 %v1244
        %1277 = vmatprep.subr.mxu0 0.0
        %1278 = vmatpush1.msra.mxu0 %v1245
        %1279 = vmatprep.subr.mxu0 0.0
        %1280 = vmatpush1.msra.mxu0 %v1246
        %1281 = vmatprep.subr.mxu0 0.0
        %1282 = vmatpush1.msra.mxu0 %v1247
        %1283 = vmatprep.subr.mxu0 0.0
        %1284 = vmatpush1.msra.mxu0 %v1248
        %1285 = vmatprep.subr.mxu0 0.0
        %1286 = vmatpush1.msra.mxu0 %v1249
        %1287 = vmatprep.subr.mxu0 0.0
        %1288 = vmatpush1.msra.mxu0 %v1250
        %1289 = vmatprep.subr.mxu0 0.0
        %1290 = vmatpush1.msra.mxu0 %v1251
        %1291 = vmatprep.subr.mxu0 0.0
        %1292 = vmatpush1.msra.mxu0 0.0
        %1293 = vmatprep.subr.mxu0 0.0
        %1294 = vmatpush1.msra.mxu0 0.0
        %1295 = vmatprep.subr.mxu0 0.0
        %1296 = vmatpush1.msra.mxu0 0.0
        %1297 = vmatprep.subr.mxu0 0.0
        %1298 = vmatpush1.msra.mxu0 0.0
        %1299 = vmatprep.subr.mxu0 0.0
        %1300 = vmatpush1.msra.mxu0 0.0
        %1301 = vmatprep.subr.mxu0 0.0
        %1302 = vmatpush1.msra.mxu0 0.0
        %1303 = vmatprep.subr.mxu0 0.0
        %1304 = vmatpush1.msra.mxu0 0.0
        %1305 = vmatprep.subr.mxu0 0.0
        %1306 = vmatpush1.msra.mxu0 0.0
        %1307 = vmatprep.subr.mxu0 0.0
        %1308 = vmatpush1.msra.mxu0 0.0
        %1309 = vmatprep.subr.mxu0 0.0
        %1310 = vmatpush1.msra.mxu0 0.0
        %1311 = vmatprep.subr.mxu0 0.0
        %1312 = vmatpush1.msra.mxu0 0.0
        %1313 = vmatprep.subr.mxu0 0.0
        %1314 = vmatpush1.msra.mxu0 0.0
        %1315 = vmatprep.subr.mxu0 0.0
        %1316 = vmatpush1.msra.mxu0 0.0
        %1317 = vmatprep.subr.mxu0 0.0
        %1318 = vmatpush1.msra.mxu0 0.0
        %1319 = vmatprep.subr.mxu0 0.0
        %1320 = vmatpush1.msra.mxu0 0.0
        %1321 = vmatprep.subr.mxu0 0.0
        %1322 = vmatpush1.msra.mxu0 0.0
        %1323 = vmatprep.mubr.f32.mxu0 0.0
        %1324 = vmatmul.mubr.f32.gmra.mrb[0].mxu0 %v1052
        %v1325 = vpop.f32.mrb[0].mxu0
        %v1326 = vadd.f32 %v1257, %v1325
        %v1327 = vpop.f32.mrb[0].mxu0
        %1328 = vmatprep.mubr.f32.mxu0 0.0
        %1329 = vmatmul.mubr.f32.gmra.mrb[0].mxu0 %v1053
        %v1330 = vpop.f32.mrb[0].mxu0
        %v1331 = vadd.f32 %v1257, %v1330
        %v1332 = vpop.f32.mrb[0].mxu0
        %1333 = vmatprep.mubr.f32.mxu0 0.0
        %1334 = vmatmul.mubr.f32.gmra.mrb[0].mxu0 %v1054
        %v1335 = vpop.f32.mrb[0].mxu0
        %v1336 = vadd.f32 %v1257, %v1335
        %v1337 = vpop.f32.mrb[0].mxu0
        %1338 = vmatprep.mubr.f32.mxu0 0.0
        %1339 = vmatmul.mubr.f32.gmra.mrb[0].mxu0 %v1055
        %v1340 = vpop.f32.mrb[0].mxu0
        %v1341 = vadd.f32 %v1257, %v1340
        %v1342 = vpop.f32.mrb[0].mxu0
        %1343 = vmatprep.mubr.f32.mxu0 0.0
        %1344 = vmatmul.mubr.f32.gmra.mrb[0].mxu0 %v1056
        %v1345 = vpop.f32.mrb[0].mxu0
        %v1346 = vadd.f32 %v1257, %v1345
        %v1347 = vpop.f32.mrb[0].mxu0
        %1348 = vmatprep.mubr.f32.mxu0 0.0
        %1349 = vmatmul.mubr.f32.gmra.mrb[0].mxu0 %v1057
        %v1350 = vpop.f32.mrb[0].mxu0
        %v1351 = vadd.f32 %v1257, %v1350
        %v1352 = vpop.f32.mrb[0].mxu0
        %1353 = vmatprep.mubr.f32.mxu0 0.0
        %1354 = vmatmul.mubr.f32.gmra.mrb[0].mxu0 %v1058
        %v1355 = vpop.f32.mrb[0].mxu0
        %v1356 = vadd.f32 %v1257, %v1355
        %v1357 = vpop.f32.mrb[0].mxu0
        %1358 = vmatprep.mubr.f32.mxu0 0.0
        %1359 = vmatmul.mubr.f32.gmra.mrb[0].mxu0 %v1059
        %v1360 = vpop.f32.mrb[0].mxu0
        %v1361 = vadd.f32 %v1257, %v1360
        %v1362 = vpop.f32.mrb[0].mxu0
        %1363 = vmatprep.mubr.f32.mxu0 0.0
        %1364 = vmatmul.mubr.f32.gmra.mrb[0].mxu0 %v1060
        %v1365 = vpop.f32.mrb[0].mxu0
        %v1366 = vadd.f32 %v1257, %v1365
        %v1367 = vpop.f32.mrb[0].mxu0
        %1368 = vmatprep.mubr.f32.mxu0 0.0
        %1369 = vmatmul.mubr.f32.gmra.mrb[0].mxu0 %v1061
        %v1370 = vpop.f32.mrb[0].mxu0
        %v1371 = vadd.f32 %v1257, %v1370
        %v1372 = vpop.f32.mrb[0].mxu0
        %1373 = vmatprep.mubr.f32.mxu0 0.0
        %1374 = vmatmul.mubr.f32.gmra.mrb[0].mxu0 %v1062
        %v1375 = vpop.f32.mrb[0].mxu0
        %v1376 = vadd.f32 %v1257, %v1375
        %v1377 = vpop.f32.mrb[0].mxu0
        %1378 = vmatprep.mubr.f32.mxu0 0.0
        %1379 = vmatmul.mubr.f32.gmra.mrb[0].mxu0 %v1063
        %v1380 = vpop.f32.mrb[0].mxu0
        %v1381 = vadd.f32 %v1257, %v1380
        %v1382 = vpop.f32.mrb[0].mxu0
        %1383 = vmatprep.mubr.f32.mxu0 0.0
        %1384 = vmatmul.mubr.f32.gmra.mrb[0].mxu0 %v1064
        %v1385 = vpop.f32.mrb[0].mxu0
        %v1386 = vadd.f32 %v1257, %v1385
        %v1387 = vpop.f32.mrb[0].mxu0
        %1388 = vmatprep.mubr.f32.mxu0 0.0
        %1389 = vmatmul.mubr.f32.gmra.mrb[0].mxu0 %v1065
        %v1390 = vpop.f32.mrb[0].mxu0
        %v1391 = vadd.f32 %v1257, %v1390
        %v1392 = vpop.f32.mrb[0].mxu0
        %1393 = vmatprep.mubr.f32.mxu0 0.0
        %1394 = vmatmul.mubr.f32.gmra.mrb[0].mxu0 %v1066
        %v1395 = vpop.f32.mrb[0].mxu0
        %v1396 = vadd.f32 %v1257, %v1395
        %v1397 = vpop.f32.mrb[0].mxu0
        %1398 = vmatprep.mubr.f32.mxu0 0.0
        %1399 = vmatmul.mubr.f32.gmra.mrb[0].mxu0 %v1067
        %v1400 = vpop.f32.mrb[0].mxu0
        %v1401 = vadd.f32 %v1257, %v1400
        %v1402 = vpop.f32.mrb[0].mxu0
        %1403 = vdwg.mxu0
        %v1404 = vld [vmem:[%s9] sm:$0xff]
        %v1405 = vld [vmem:[%s9 + $0x8] sm:$0xff]
        %v1406 = vld [vmem:[%s9 + $0x10] sm:$0xff]
        %v1407 = vld [vmem:[%s9 + $0x18] sm:$0xff]
        %v1408 = vld [vmem:[%s10] sm:$0x1]
        %v1410 = vlaneseq
        %v1411 = vshrl.u32 %v1410, 7
        %v1412 = vsub.s32 0, %v1411
        %v1413 = vrot.slane %v1408, %v1412
        %vm1415 = vcmask 261120
        %v1417 = vsel %vm1415, %v821, 0
        %v1420 = vsel %vm1415, %v826, 0
        %v1423 = vsel %vm1415, %v831, 0
        %v1426 = vsel %vm1415, %v836, 0
        %v1429 = vsel %vm1415, %v841, 0
        %v1432 = vsel %vm1415, %v846, 0
        %v1435 = vsel %vm1415, %v851, 0
        %v1438 = vsel %vm1415, %v856, 0
        %v1441 = vsel %vm1415, %v861, 0
        %v1444 = vsel %vm1415, %v866, 0
        %v1447 = vsel %vm1415, %v871, 0
        %v1450 = vsel %vm1415, %v876, 0
        %v1453 = vsel %vm1415, %v881, 0
        %v1456 = vsel %vm1415, %v886, 0
        %v1459 = vsel %vm1415, %v891, 0
        %v1462 = vsel %vm1415, %v896, 0
        %1464 = vmatprep.subr.mxu0 0.0
        %1465 = vmatpush1.msra.mxu0 %v1404
        %1466 = vmatprep.subr.mxu0 0.0
        %1467 = vmatpush1.msra.mxu0 %v1405
        %1468 = vmatprep.subr.mxu0 0.0
        %1469 = vmatpush1.msra.mxu0 %v1406
        %1470 = vmatprep.subr.mxu0 0.0
        %1471 = vmatpush1.msra.mxu0 %v1407
        %1472 = vmatprep.subr.mxu0 0.0
        %1473 = vmatpush1.msra.mxu0 0.0
        %1474 = vmatprep.subr.mxu0 0.0
        %1475 = vmatpush1.msra.mxu0 0.0
        %1476 = vmatprep.subr.mxu0 0.0
        %1477 = vmatpush1.msra.mxu0 0.0
        %1478 = vmatprep.subr.mxu0 0.0
        %1479 = vmatpush1.msra.mxu0 0.0
        %1480 = vmatprep.subr.mxu0 0.0
        %1481 = vmatpush1.msra.mxu0 0.0
        %1482 = vmatprep.subr.mxu0 0.0
        %1483 = vmatpush1.msra.mxu0 0.0
        %1484 = vmatprep.subr.mxu0 0.0
        %1485 = vmatpush1.msra.mxu0 0.0
        %1486 = vmatprep.subr.mxu0 0.0
        %1487 = vmatpush1.msra.mxu0 0.0
        %1488 = vmatprep.subr.mxu0 0.0
        %1489 = vmatpush1.msra.mxu0 0.0
        %1490 = vmatprep.subr.mxu0 0.0
        %1491 = vmatpush1.msra.mxu0 0.0
        %1492 = vmatprep.subr.mxu0 0.0
        %1493 = vmatpush1.msra.mxu0 0.0
        %1494 = vmatprep.subr.mxu0 0.0
        %1495 = vmatpush1.msra.mxu0 0.0
        %1496 = vmatprep.subr.mxu0 0.0
        %1497 = vmatpush1.msra.mxu0 0.0
        %1498 = vmatprep.subr.mxu0 0.0
        %1499 = vmatpush1.msra.mxu0 0.0
        %1500 = vmatprep.subr.mxu0 0.0
        %1501 = vmatpush1.msra.mxu0 0.0
        %1502 = vmatprep.subr.mxu0 0.0
        %1503 = vmatpush1.msra.mxu0 0.0
        %1504 = vmatprep.subr.mxu0 0.0
        %1505 = vmatpush1.msra.mxu0 0.0
        %1506 = vmatprep.subr.mxu0 0.0
        %1507 = vmatpush1.msra.mxu0 0.0
        %1508 = vmatprep.subr.mxu0 0.0
        %1509 = vmatpush1.msra.mxu0 0.0
        %1510 = vmatprep.subr.mxu0 0.0
        %1511 = vmatpush1.msra.mxu0 0.0
        %1512 = vmatprep.subr.mxu0 0.0
        %1513 = vmatpush1.msra.mxu0 0.0
        %1514 = vmatprep.subr.mxu0 0.0
        %1515 = vmatpush1.msra.mxu0 0.0
        %1516 = vmatprep.subr.mxu0 0.0
        %1517 = vmatpush1.msra.mxu0 0.0
        %1518 = vmatprep.subr.mxu0 0.0
        %1519 = vmatpush1.msra.mxu0 0.0
        %1520 = vmatprep.subr.mxu0 0.0
        %1521 = vmatpush1.msra.mxu0 0.0
        %1522 = vmatprep.subr.mxu0 0.0
        %1523 = vmatpush1.msra.mxu0 0.0
        %1524 = vmatprep.subr.mxu0 0.0
        %1525 = vmatpush1.msra.mxu0 0.0
        %1526 = vmatprep.subr.mxu0 0.0
        %1527 = vmatpush1.msra.mxu0 0.0
        %1528 = vmatprep.mubr.f32.mxu0 0.0
        %1529 = vmatmul.mubr.f32.gmra.mrb[0].mxu0 %v1417
        %v1530 = vpop.f32.mrb[0].mxu0
        %v1531 = vadd.f32 %v1413, %v1530
        %v1532 = vpop.f32.mrb[0].mxu0
        %1533 = vmatprep.mubr.f32.mxu0 0.0
        %1534 = vmatmul.mubr.f32.gmra.mrb[0].mxu0 %v1420
        %v1535 = vpop.f32.mrb[0].mxu0
        %v1536 = vadd.f32 %v1413, %v1535
        %v1537 = vpop.f32.mrb[0].mxu0
        %1538 = vmatprep.mubr.f32.mxu0 0.0
        %1539 = vmatmul.mubr.f32.gmra.mrb[0].mxu0 %v1423
        %v1540 = vpop.f32.mrb[0].mxu0
        %v1541 = vadd.f32 %v1413, %v1540
        %v1542 = vpop.f32.mrb[0].mxu0
        %1543 = vmatprep.mubr.f32.mxu0 0.0
        %1544 = vmatmul.mubr.f32.gmra.mrb[0].mxu0 %v1426
        %v1545 = vpop.f32.mrb[0].mxu0
        %v1546 = vadd.f32 %v1413, %v1545
        %v1547 = vpop.f32.mrb[0].mxu0
        %1548 = vmatprep.mubr.f32.mxu0 0.0
        %1549 = vmatmul.mubr.f32.gmra.mrb[0].mxu0 %v1429
        %v1550 = vpop.f32.mrb[0].mxu0
        %v1551 = vadd.f32 %v1413, %v1550
        %v1552 = vpop.f32.mrb[0].mxu0
        %1553 = vmatprep.mubr.f32.mxu0 0.0
        %1554 = vmatmul.mubr.f32.gmra.mrb[0].mxu0 %v1432
        %v1555 = vpop.f32.mrb[0].mxu0
        %v1556 = vadd.f32 %v1413, %v1555
        %v1557 = vpop.f32.mrb[0].mxu0
        %1558 = vmatprep.mubr.f32.mxu0 0.0
        %1559 = vmatmul.mubr.f32.gmra.mrb[0].mxu0 %v1435
        %v1560 = vpop.f32.mrb[0].mxu0
        %v1561 = vadd.f32 %v1413, %v1560
        %v1562 = vpop.f32.mrb[0].mxu0
        %1563 = vmatprep.mubr.f32.mxu0 0.0
        %1564 = vmatmul.mubr.f32.gmra.mrb[0].mxu0 %v1438
        %v1565 = vpop.f32.mrb[0].mxu0
        %v1566 = vadd.f32 %v1413, %v1565
        %v1567 = vpop.f32.mrb[0].mxu0
        %1568 = vmatprep.mubr.f32.mxu0 0.0
        %1569 = vmatmul.mubr.f32.gmra.mrb[0].mxu0 %v1441
        %v1570 = vpop.f32.mrb[0].mxu0
        %v1571 = vadd.f32 %v1413, %v1570
        %v1572 = vpop.f32.mrb[0].mxu0
        %1573 = vmatprep.mubr.f32.mxu0 0.0
        %1574 = vmatmul.mubr.f32.gmra.mrb[0].mxu0 %v1444
        %v1575 = vpop.f32.mrb[0].mxu0
        %v1576 = vadd.f32 %v1413, %v1575
        %v1577 = vpop.f32.mrb[0].mxu0
        %1578 = vmatprep.mubr.f32.mxu0 0.0
        %1579 = vmatmul.mubr.f32.gmra.mrb[0].mxu0 %v1447
        %v1580 = vpop.f32.mrb[0].mxu0
        %v1581 = vadd.f32 %v1413, %v1580
        %v1582 = vpop.f32.mrb[0].mxu0
        %1583 = vmatprep.mubr.f32.mxu0 0.0
        %1584 = vmatmul.mubr.f32.gmra.mrb[0].mxu0 %v1450
        %v1585 = vpop.f32.mrb[0].mxu0
        %v1586 = vadd.f32 %v1413, %v1585
        %v1587 = vpop.f32.mrb[0].mxu0
        %1588 = vmatprep.mubr.f32.mxu0 0.0
        %1589 = vmatmul.mubr.f32.gmra.mrb[0].mxu0 %v1453
        %v1590 = vpop.f32.mrb[0].mxu0
        %v1591 = vadd.f32 %v1413, %v1590
        %v1592 = vpop.f32.mrb[0].mxu0
        %1593 = vmatprep.mubr.f32.mxu0 0.0
        %1594 = vmatmul.mubr.f32.gmra.mrb[0].mxu0 %v1456
        %v1595 = vpop.f32.mrb[0].mxu0
        %v1596 = vadd.f32 %v1413, %v1595
        %v1597 = vpop.f32.mrb[0].mxu0
        %1598 = vmatprep.mubr.f32.mxu0 0.0
        %1599 = vmatmul.mubr.f32.gmra.mrb[0].mxu0 %v1459
        %v1600 = vpop.f32.mrb[0].mxu0
        %v1601 = vadd.f32 %v1413, %v1600
        %v1602 = vpop.f32.mrb[0].mxu0
        %1603 = vmatprep.mubr.f32.mxu0 0.0
        %1604 = vmatmul.mubr.f32.gmra.mrb[0].mxu0 %v1462
        %v1605 = vpop.f32.mrb[0].mxu0
        %v1606 = vadd.f32 %v1413, %v1605
        %v1607 = vpop.f32.mrb[0].mxu0
        %1608 = vdwg.mxu0
        %v1609 = vmax.f32 %v1531, 0.0
        %v1610 = vmax.f32 %v1536, 0.0
        %v1611 = vmax.f32 %v1541, 0.0
        %v1612 = vmax.f32 %v1546, 0.0
        %v1613 = vmax.f32 %v1551, 0.0
        %v1614 = vmax.f32 %v1556, 0.0
        %v1615 = vmax.f32 %v1561, 0.0
        %v1616 = vmax.f32 %v1566, 0.0
        %v1617 = vmax.f32 %v1571, 0.0
        %v1618 = vmax.f32 %v1576, 0.0
        %v1619 = vmax.f32 %v1581, 0.0
        %v1620 = vmax.f32 %v1586, 0.0
        %v1621 = vmax.f32 %v1591, 0.0
        %v1622 = vmax.f32 %v1596, 0.0
        %v1623 = vmax.f32 %v1601, 0.0
        %v1624 = vmax.f32 %v1606, 0.0
        %v1625 = vld [vmem:[%s11] sm:$0xff]
        %v1626 = vld [vmem:[%s11 + $0x8] sm:$0xff]
        %v1627 = vld [vmem:[%s11 + $0x10] sm:$0xff]
        %v1628 = vld [vmem:[%s11 + $0x18] sm:$0xff]
        %v1629 = vld [vmem:[%s12] sm:$0x1]
        %v1631 = vlaneseq
        %v1632 = vshrl.u32 %v1631, 7
        %v1633 = vsub.s32 0, %v1632
        %v1634 = vrot.slane %v1629, %v1633
        %v1637 = vsel %vm1415, %v1609, 0
        %v1640 = vsel %vm1415, %v1610, 0
        %v1643 = vsel %vm1415, %v1611, 0
        %v1646 = vsel %vm1415, %v1612, 0
        %v1649 = vsel %vm1415, %v1613, 0
        %v1652 = vsel %vm1415, %v1614, 0
        %v1655 = vsel %vm1415, %v1615, 0
        %v1658 = vsel %vm1415, %v1616, 0
        %v1661 = vsel %vm1415, %v1617, 0
        %v1664 = vsel %vm1415, %v1618, 0
        %v1667 = vsel %vm1415, %v1619, 0
        %v1670 = vsel %vm1415, %v1620, 0
        %v1673 = vsel %vm1415, %v1621, 0
        %v1676 = vsel %vm1415, %v1622, 0
        %v1679 = vsel %vm1415, %v1623, 0
        %v1682 = vsel %vm1415, %v1624, 0
        %1684 = vmatprep.subr.mxu0 0.0
        %1685 = vmatpush1.msra.mxu0 %v1625
        %1686 = vmatprep.subr.mxu0 0.0
        %1687 = vmatpush1.msra.mxu0 %v1626
        %1688 = vmatprep.subr.mxu0 0.0
        %1689 = vmatpush1.msra.mxu0 %v1627
        %1690 = vmatprep.subr.mxu0 0.0
        %1691 = vmatpush1.msra.mxu0 %v1628
        %1692 = vmatprep.subr.mxu0 0.0
        %1693 = vmatpush1.msra.mxu0 0.0
        %1694 = vmatprep.subr.mxu0 0.0
        %1695 = vmatpush1.msra.mxu0 0.0
        %1696 = vmatprep.subr.mxu0 0.0
        %1697 = vmatpush1.msra.mxu0 0.0
        %1698 = vmatprep.subr.mxu0 0.0
        %1699 = vmatpush1.msra.mxu0 0.0
        %1700 = vmatprep.subr.mxu0 0.0
        %1701 = vmatpush1.msra.mxu0 0.0
        %1702 = vmatprep.subr.mxu0 0.0
        %1703 = vmatpush1.msra.mxu0 0.0
        %1704 = vmatprep.subr.mxu0 0.0
        %1705 = vmatpush1.msra.mxu0 0.0
        %1706 = vmatprep.subr.mxu0 0.0
        %1707 = vmatpush1.msra.mxu0 0.0
        %1708 = vmatprep.subr.mxu0 0.0
        %1709 = vmatpush1.msra.mxu0 0.0
        %1710 = vmatprep.subr.mxu0 0.0
        %1711 = vmatpush1.msra.mxu0 0.0
        %1712 = vmatprep.subr.mxu0 0.0
        %1713 = vmatpush1.msra.mxu0 0.0
        %1714 = vmatprep.subr.mxu0 0.0
        %1715 = vmatpush1.msra.mxu0 0.0
        %1716 = vmatprep.subr.mxu0 0.0
        %1717 = vmatpush1.msra.mxu0 0.0
        %1718 = vmatprep.subr.mxu0 0.0
        %1719 = vmatpush1.msra.mxu0 0.0
        %1720 = vmatprep.subr.mxu0 0.0
        %1721 = vmatpush1.msra.mxu0 0.0
        %1722 = vmatprep.subr.mxu0 0.0
        %1723 = vmatpush1.msra.mxu0 0.0
        %1724 = vmatprep.subr.mxu0 0.0
        %1725 = vmatpush1.msra.mxu0 0.0
        %1726 = vmatprep.subr.mxu0 0.0
        %1727 = vmatpush1.msra.mxu0 0.0
        %1728 = vmatprep.subr.mxu0 0.0
        %1729 = vmatpush1.msra.mxu0 0.0
        %1730 = vmatprep.subr.mxu0 0.0
        %1731 = vmatpush1.msra.mxu0 0.0
        %1732 = vmatprep.subr.mxu0 0.0
        %1733 = vmatpush1.msra.mxu0 0.0
        %1734 = vmatprep.subr.mxu0 0.0
        %1735 = vmatpush1.msra.mxu0 0.0
        %1736 = vmatprep.subr.mxu0 0.0
        %1737 = vmatpush1.msra.mxu0 0.0
        %1738 = vmatprep.subr.mxu0 0.0
        %1739 = vmatpush1.msra.mxu0 0.0
        %1740 = vmatprep.subr.mxu0 0.0
        %1741 = vmatpush1.msra.mxu0 0.0
        %1742 = vmatprep.subr.mxu0 0.0
        %1743 = vmatpush1.msra.mxu0 0.0
        %1744 = vmatprep.subr.mxu0 0.0
        %1745 = vmatpush1.msra.mxu0 0.0
        %1746 = vmatprep.subr.mxu0 0.0
        %1747 = vmatpush1.msra.mxu0 0.0
        %1748 = vmatprep.mubr.f32.mxu0 0.0
        %1749 = vmatmul.mubr.f32.gmra.mrb[0].mxu0 %v1637
        %v1750 = vpop.f32.mrb[0].mxu0
        %v1751 = vadd.f32 %v1634, %v1750
        %v1752 = vpop.f32.mrb[0].mxu0
        %1753 = vmatprep.mubr.f32.mxu0 0.0
        %1754 = vmatmul.mubr.f32.gmra.mrb[0].mxu0 %v1640
        %v1755 = vpop.f32.mrb[0].mxu0
        %v1756 = vadd.f32 %v1634, %v1755
        %v1757 = vpop.f32.mrb[0].mxu0
        %1758 = vmatprep.mubr.f32.mxu0 0.0
        %1759 = vmatmul.mubr.f32.gmra.mrb[0].mxu0 %v1643
        %v1760 = vpop.f32.mrb[0].mxu0
        %v1761 = vadd.f32 %v1634, %v1760
        %v1762 = vpop.f32.mrb[0].mxu0
        %1763 = vmatprep.mubr.f32.mxu0 0.0
        %1764 = vmatmul.mubr.f32.gmra.mrb[0].mxu0 %v1646
        %v1765 = vpop.f32.mrb[0].mxu0
        %v1766 = vadd.f32 %v1634, %v1765
        %v1767 = vpop.f32.mrb[0].mxu0
        %1768 = vmatprep.mubr.f32.mxu0 0.0
        %1769 = vmatmul.mubr.f32.gmra.mrb[0].mxu0 %v1649
        %v1770 = vpop.f32.mrb[0].mxu0
        %v1771 = vadd.f32 %v1634, %v1770
        %v1772 = vpop.f32.mrb[0].mxu0
        %1773 = vmatprep.mubr.f32.mxu0 0.0
        %1774 = vmatmul.mubr.f32.gmra.mrb[0].mxu0 %v1652
        %v1775 = vpop.f32.mrb[0].mxu0
        %v1776 = vadd.f32 %v1634, %v1775
        %v1777 = vpop.f32.mrb[0].mxu0
        %1778 = vmatprep.mubr.f32.mxu0 0.0
        %1779 = vmatmul.mubr.f32.gmra.mrb[0].mxu0 %v1655
        %v1780 = vpop.f32.mrb[0].mxu0
        %v1781 = vadd.f32 %v1634, %v1780
        %v1782 = vpop.f32.mrb[0].mxu0
        %1783 = vmatprep.mubr.f32.mxu0 0.0
        %1784 = vmatmul.mubr.f32.gmra.mrb[0].mxu0 %v1658
        %v1785 = vpop.f32.mrb[0].mxu0
        %v1786 = vadd.f32 %v1634, %v1785
        %v1787 = vpop.f32.mrb[0].mxu0
        %1788 = vmatprep.mubr.f32.mxu0 0.0
        %1789 = vmatmul.mubr.f32.gmra.mrb[0].mxu0 %v1661
        %v1790 = vpop.f32.mrb[0].mxu0
        %v1791 = vadd.f32 %v1634, %v1790
        %v1792 = vpop.f32.mrb[0].mxu0
        %1793 = vmatprep.mubr.f32.mxu0 0.0
        %1794 = vmatmul.mubr.f32.gmra.mrb[0].mxu0 %v1664
        %v1795 = vpop.f32.mrb[0].mxu0
        %v1796 = vadd.f32 %v1634, %v1795
        %v1797 = vpop.f32.mrb[0].mxu0
        %1798 = vmatprep.mubr.f32.mxu0 0.0
        %1799 = vmatmul.mubr.f32.gmra.mrb[0].mxu0 %v1667
        %v1800 = vpop.f32.mrb[0].mxu0
        %v1801 = vadd.f32 %v1634, %v1800
        %v1802 = vpop.f32.mrb[0].mxu0
        %1803 = vmatprep.mubr.f32.mxu0 0.0
        %1804 = vmatmul.mubr.f32.gmra.mrb[0].mxu0 %v1670
        %v1805 = vpop.f32.mrb[0].mxu0
        %v1806 = vadd.f32 %v1634, %v1805
        %v1807 = vpop.f32.mrb[0].mxu0
        %1808 = vmatprep.mubr.f32.mxu0 0.0
        %1809 = vmatmul.mubr.f32.gmra.mrb[0].mxu0 %v1673
        %v1810 = vpop.f32.mrb[0].mxu0
        %v1811 = vadd.f32 %v1634, %v1810
        %v1812 = vpop.f32.mrb[0].mxu0
        %1813 = vmatprep.mubr.f32.mxu0 0.0
        %1814 = vmatmul.mubr.f32.gmra.mrb[0].mxu0 %v1676
        %v1815 = vpop.f32.mrb[0].mxu0
        %v1816 = vadd.f32 %v1634, %v1815
        %v1817 = vpop.f32.mrb[0].mxu0
        %1818 = vmatprep.mubr.f32.mxu0 0.0
        %1819 = vmatmul.mubr.f32.gmra.mrb[0].mxu0 %v1679
        %v1820 = vpop.f32.mrb[0].mxu0
        %v1821 = vadd.f32 %v1634, %v1820
        %v1822 = vpop.f32.mrb[0].mxu0
        %1823 = vmatprep.mubr.f32.mxu0 0.0
        %1824 = vmatmul.mubr.f32.gmra.mrb[0].mxu0 %v1682
        %v1825 = vpop.f32.mrb[0].mxu0
        %v1826 = vadd.f32 %v1634, %v1825
        %v1827 = vpop.f32.mrb[0].mxu0
        %1828 = vdwg.mxu0
        %v1829 = vmul.f32 %v1751, %v1158
        %v1830 = vmul.f32 %v1756, %v1163
        %v1831 = vmul.f32 %v1761, %v1168
        %v1832 = vmul.f32 %v1766, %v1173
        %v1833 = vmul.f32 %v1771, %v1178
        %v1834 = vmul.f32 %v1776, %v1183
        %v1835 = vmul.f32 %v1781, %v1188
        %v1836 = vmul.f32 %v1786, %v1193
        %v1837 = vmul.f32 %v1791, %v1198
        %v1838 = vmul.f32 %v1796, %v1203
        %v1839 = vmul.f32 %v1801, %v1208
        %v1840 = vmul.f32 %v1806, %v1213
        %v1841 = vmul.f32 %v1811, %v1218
        %v1842 = vmul.f32 %v1816, %v1223
        %v1843 = vmul.f32 %v1821, %v1228
        %v1844 = vmul.f32 %v1826, %v1233
        %v1845 = vadd.f32 %v1829, %v1326
        %v1846 = vadd.f32 %v1830, %v1331
        %v1847 = vadd.f32 %v1831, %v1336
        %v1848 = vadd.f32 %v1832, %v1341
        %v1849 = vadd.f32 %v1833, %v1346
        %v1850 = vadd.f32 %v1834, %v1351
        %v1851 = vadd.f32 %v1835, %v1356
        %v1852 = vadd.f32 %v1836, %v1361
        %v1853 = vadd.f32 %v1837, %v1366
        %v1854 = vadd.f32 %v1838, %v1371
        %v1855 = vadd.f32 %v1839, %v1376
        %v1856 = vadd.f32 %v1840, %v1381
        %v1857 = vadd.f32 %v1841, %v1386
        %v1858 = vadd.f32 %v1842, %v1391
        %v1859 = vadd.f32 %v1843, %v1396
        %v1860 = vadd.f32 %v1844, %v1401
        %v1861 = vld [vmem:[%s13] sm:$0xff]
        %v1862 = vld [vmem:[%s13 + $0x8] sm:$0xff]
        %v1863 = vld [vmem:[%s13 + $0x10] sm:$0xff]
        %v1864 = vld [vmem:[%s13 + $0x18] sm:$0xff]
        %v1865 = vld [vmem:[%s13 + $0x20] sm:$0xff]
        %v1866 = vld [vmem:[%s13 + $0x28] sm:$0xff]
        %v1867 = vld [vmem:[%s13 + $0x30] sm:$0xff]
        %v1868 = vld [vmem:[%s13 + $0x38] sm:$0xff]
        %v1869 = vld [vmem:[#allocation11] sm:$0x1]
        %v1871 = vlaneseq
        %v1872 = vshrl.u32 %v1871, 7
        %v1873 = vsub.s32 0, %v1872
        %v1874 = vrot.slane %v1869, %v1873
        %vm1876 = vcmask 523264
        %v1878 = vsel %vm1876, %v1845, 0
        %v1881 = vsel %vm1876, %v1846, 0
        %v1884 = vsel %vm1876, %v1847, 0
        %v1887 = vsel %vm1876, %v1848, 0
        %v1890 = vsel %vm1876, %v1849, 0
        %v1893 = vsel %vm1876, %v1850, 0
        %v1896 = vsel %vm1876, %v1851, 0
        %v1899 = vsel %vm1876, %v1852, 0
        %v1902 = vsel %vm1876, %v1853, 0
        %v1905 = vsel %vm1876, %v1854, 0
        %v1908 = vsel %vm1876, %v1855, 0
        %v1911 = vsel %vm1876, %v1856, 0
        %v1914 = vsel %vm1876, %v1857, 0
        %v1917 = vsel %vm1876, %v1858, 0
        %v1920 = vsel %vm1876, %v1859, 0
        %v1923 = vsel %vm1876, %v1860, 0
        %1925 = vmatprep.subr.mxu0 0.0
        %1926 = vmatpush1.msra.mxu0 %v1861
        %1927 = vmatprep.subr.mxu0 0.0
        %1928 = vmatpush1.msra.mxu0 %v1862
        %1929 = vmatprep.subr.mxu0 0.0
        %1930 = vmatpush1.msra.mxu0 %v1863
        %1931 = vmatprep.subr.mxu0 0.0
        %1932 = vmatpush1.msra.mxu0 %v1864
        %1933 = vmatprep.subr.mxu0 0.0
        %1934 = vmatpush1.msra.mxu0 %v1865
        %1935 = vmatprep.subr.mxu0 0.0
        %1936 = vmatpush1.msra.mxu0 %v1866
        %1937 = vmatprep.subr.mxu0 0.0
        %1938 = vmatpush1.msra.mxu0 %v1867
        %1939 = vmatprep.subr.mxu0 0.0
        %1940 = vmatpush1.msra.mxu0 %v1868
        %1941 = vmatprep.subr.mxu0 0.0
        %1942 = vmatpush1.msra.mxu0 0.0
        %1943 = vmatprep.subr.mxu0 0.0
        %1944 = vmatpush1.msra.mxu0 0.0
        %1945 = vmatprep.subr.mxu0 0.0
        %1946 = vmatpush1.msra.mxu0 0.0
        %1947 = vmatprep.subr.mxu0 0.0
        %1948 = vmatpush1.msra.mxu0 0.0
        %1949 = vmatprep.subr.mxu0 0.0
        %1950 = vmatpush1.msra.mxu0 0.0
        %1951 = vmatprep.subr.mxu0 0.0
        %1952 = vmatpush1.msra.mxu0 0.0
        %1953 = vmatprep.subr.mxu0 0.0
        %1954 = vmatpush1.msra.mxu0 0.0
        %1955 = vmatprep.subr.mxu0 0.0
        %1956 = vmatpush1.msra.mxu0 0.0
        %1957 = vmatprep.subr.mxu0 0.0
        %1958 = vmatpush1.msra.mxu0 0.0
        %1959 = vmatprep.subr.mxu0 0.0
        %1960 = vmatpush1.msra.mxu0 0.0
        %1961 = vmatprep.subr.mxu0 0.0
        %1962 = vmatpush1.msra.mxu0 0.0
        %1963 = vmatprep.subr.mxu0 0.0
        %1964 = vmatpush1.msra.mxu0 0.0
        %1965 = vmatprep.subr.mxu0 0.0
        %1966 = vmatpush1.msra.mxu0 0.0
        %1967 = vmatprep.subr.mxu0 0.0
        %1968 = vmatpush1.msra.mxu0 0.0
        %1969 = vmatprep.subr.mxu0 0.0
        %1970 = vmatpush1.msra.mxu0 0.0
        %1971 = vmatprep.subr.mxu0 0.0
        %1972 = vmatpush1.msra.mxu0 0.0
        %1973 = vmatprep.subr.mxu0 0.0
        %1974 = vmatpush1.msra.mxu0 0.0
        %1975 = vmatprep.subr.mxu0 0.0
        %1976 = vmatpush1.msra.mxu0 0.0
        %1977 = vmatprep.subr.mxu0 0.0
        %1978 = vmatpush1.msra.mxu0 0.0
        %1979 = vmatprep.subr.mxu0 0.0
        %1980 = vmatpush1.msra.mxu0 0.0
        %1981 = vmatprep.subr.mxu0 0.0
        %1982 = vmatpush1.msra.mxu0 0.0
        %1983 = vmatprep.subr.mxu0 0.0
        %1984 = vmatpush1.msra.mxu0 0.0
        %1985 = vmatprep.subr.mxu0 0.0
        %1986 = vmatpush1.msra.mxu0 0.0
        %1987 = vmatprep.subr.mxu0 0.0
        %1988 = vmatpush1.msra.mxu0 0.0
        %1989 = vmatprep.mubr.f32.mxu0 0.0
        %1990 = vmatmul.mubr.f32.gmra.mrb[0].mxu0 %v1878
        %v1991 = vpop.f32.mrb[0].mxu0
        %v1992 = vadd.f32 %v1874, %v1991
        %v1993 = vpop.f32.mrb[0].mxu0
        %1994 = vmatprep.mubr.f32.mxu0 0.0
        %1995 = vmatmul.mubr.f32.gmra.mrb[0].mxu0 %v1881
        %v1996 = vpop.f32.mrb[0].mxu0
        %v1997 = vadd.f32 %v1874, %v1996
        %v1998 = vpop.f32.mrb[0].mxu0
        %1999 = vmatprep.mubr.f32.mxu0 0.0
        %2000 = vmatmul.mubr.f32.gmra.mrb[0].mxu0 %v1884
        %v2001 = vpop.f32.mrb[0].mxu0
        %v2002 = vadd.f32 %v1874, %v2001
        %v2003 = vpop.f32.mrb[0].mxu0
        %2004 = vmatprep.mubr.f32.mxu0 0.0
        %2005 = vmatmul.mubr.f32.gmra.mrb[0].mxu0 %v1887
        %v2006 = vpop.f32.mrb[0].mxu0
        %v2007 = vadd.f32 %v1874, %v2006
        %v2008 = vpop.f32.mrb[0].mxu0
        %2009 = vmatprep.mubr.f32.mxu0 0.0
        %2010 = vmatmul.mubr.f32.gmra.mrb[0].mxu0 %v1890
        %v2011 = vpop.f32.mrb[0].mxu0
        %v2012 = vadd.f32 %v1874, %v2011
        %v2013 = vpop.f32.mrb[0].mxu0
        %2014 = vmatprep.mubr.f32.mxu0 0.0
        %2015 = vmatmul.mubr.f32.gmra.mrb[0].mxu0 %v1893
        %v2016 = vpop.f32.mrb[0].mxu0
        %v2017 = vadd.f32 %v1874, %v2016
        %v2018 = vpop.f32.mrb[0].mxu0
        %2019 = vmatprep.mubr.f32.mxu0 0.0
        %2020 = vmatmul.mubr.f32.gmra.mrb[0].mxu0 %v1896
        %v2021 = vpop.f32.mrb[0].mxu0
        %v2022 = vadd.f32 %v1874, %v2021
        %v2023 = vpop.f32.mrb[0].mxu0
        %2024 = vmatprep.mubr.f32.mxu0 0.0
        %2025 = vmatmul.mubr.f32.gmra.mrb[0].mxu0 %v1899
        %v2026 = vpop.f32.mrb[0].mxu0
        %v2027 = vadd.f32 %v1874, %v2026
        %v2028 = vpop.f32.mrb[0].mxu0
        %2029 = vmatprep.mubr.f32.mxu0 0.0
        %2030 = vmatmul.mubr.f32.gmra.mrb[0].mxu0 %v1902
        %v2031 = vpop.f32.mrb[0].mxu0
        %v2032 = vadd.f32 %v1874, %v2031
        %v2033 = vpop.f32.mrb[0].mxu0
        %2034 = vmatprep.mubr.f32.mxu0 0.0
        %2035 = vmatmul.mubr.f32.gmra.mrb[0].mxu0 %v1905
        %v2036 = vpop.f32.mrb[0].mxu0
        %v2037 = vadd.f32 %v1874, %v2036
        %v2038 = vpop.f32.mrb[0].mxu0
        %2039 = vmatprep.mubr.f32.mxu0 0.0
        %2040 = vmatmul.mubr.f32.gmra.mrb[0].mxu0 %v1908
        %v2041 = vpop.f32.mrb[0].mxu0
        %v2042 = vadd.f32 %v1874, %v2041
        %v2043 = vpop.f32.mrb[0].mxu0
        %2044 = vmatprep.mubr.f32.mxu0 0.0
        %2045 = vmatmul.mubr.f32.gmra.mrb[0].mxu0 %v1911
        %v2046 = vpop.f32.mrb[0].mxu0
        %v2047 = vadd.f32 %v1874, %v2046
        %v2048 = vpop.f32.mrb[0].mxu0
        %2049 = vmatprep.mubr.f32.mxu0 0.0
        %2050 = vmatmul.mubr.f32.gmra.mrb[0].mxu0 %v1914
        %v2051 = vpop.f32.mrb[0].mxu0
        %v2052 = vadd.f32 %v1874, %v2051
        %v2053 = vpop.f32.mrb[0].mxu0
        %2054 = vmatprep.mubr.f32.mxu0 0.0
        %2055 = vmatmul.mubr.f32.gmra.mrb[0].mxu0 %v1917
        %v2056 = vpop.f32.mrb[0].mxu0
        %v2057 = vadd.f32 %v1874, %v2056
        %v2058 = vpop.f32.mrb[0].mxu0
        %2059 = vmatprep.mubr.f32.mxu0 0.0
        %2060 = vmatmul.mubr.f32.gmra.mrb[0].mxu0 %v1920
        %v2061 = vpop.f32.mrb[0].mxu0
        %v2062 = vadd.f32 %v1874, %v2061
        %v2063 = vpop.f32.mrb[0].mxu0
        %2064 = vmatprep.mubr.f32.mxu0 0.0
        %2065 = vmatmul.mubr.f32.gmra.mrb[0].mxu0 %v1923
        %v2066 = vpop.f32.mrb[0].mxu0
        %v2067 = vadd.f32 %v1874, %v2066
        %v2068 = vpop.f32.mrb[0].mxu0
        %2069 = vdwg.mxu0
        %v2070 = vmax.f32 %v1992, 0.0
        %v2071 = vmax.f32 %v1997, 0.0
        %v2072 = vmax.f32 %v2002, 0.0
        %v2073 = vmax.f32 %v2007, 0.0
        %v2074 = vmax.f32 %v2012, 0.0
        %v2075 = vmax.f32 %v2017, 0.0
        %v2076 = vmax.f32 %v2022, 0.0
        %v2077 = vmax.f32 %v2027, 0.0
        %v2078 = vmax.f32 %v2032, 0.0
        %v2079 = vmax.f32 %v2037, 0.0
        %v2080 = vmax.f32 %v2042, 0.0
        %v2081 = vmax.f32 %v2047, 0.0
        %v2082 = vmax.f32 %v2052, 0.0
        %v2083 = vmax.f32 %v2057, 0.0
        %v2084 = vmax.f32 %v2062, 0.0
        %v2085 = vmax.f32 %v2067, 0.0
        %v2086 = vld [vmem:[%s15] sm:$0xff]
        %v2087 = vld [vmem:[%s15 + $0x8] sm:$0xff]
        %v2088 = vld [vmem:[%s15 + $0x10] sm:$0xff]
        %v2089 = vld [vmem:[%s15 + $0x18] sm:$0xff]
        %v2090 = vld [vmem:[%s16] sm:$0x1]
        %v2092 = vlaneseq
        %v2093 = vshrl.u32 %v2092, 7
        %v2094 = vsub.s32 0, %v2093
        %v2095 = vrot.slane %v2090, %v2094
        %v2098 = vsel %vm1415, %v2070, 0
        %v2101 = vsel %vm1415, %v2071, 0
        %v2104 = vsel %vm1415, %v2072, 0
        %v2107 = vsel %vm1415, %v2073, 0
        %v2110 = vsel %vm1415, %v2074, 0
        %v2113 = vsel %vm1415, %v2075, 0
        %v2116 = vsel %vm1415, %v2076, 0
        %v2119 = vsel %vm1415, %v2077, 0
        %v2122 = vsel %vm1415, %v2078, 0
        %v2125 = vsel %vm1415, %v2079, 0
        %v2128 = vsel %vm1415, %v2080, 0
        %v2131 = vsel %vm1415, %v2081, 0
        %v2134 = vsel %vm1415, %v2082, 0
        %v2137 = vsel %vm1415, %v2083, 0
        %v2140 = vsel %vm1415, %v2084, 0
        %v2143 = vsel %vm1415, %v2085, 0
        %2145 = vmatprep.subr.mxu0 0.0
        %2146 = vmatpush1.msra.mxu0 %v2086
        %2147 = vmatprep.subr.mxu0 0.0
        %2148 = vmatpush1.msra.mxu0 %v2087
        %2149 = vmatprep.subr.mxu0 0.0
        %2150 = vmatpush1.msra.mxu0 %v2088
        %2151 = vmatprep.subr.mxu0 0.0
        %2152 = vmatpush1.msra.mxu0 %v2089
        %2153 = vmatprep.subr.mxu0 0.0
        %2154 = vmatpush1.msra.mxu0 0.0
        %2155 = vmatprep.subr.mxu0 0.0
        %2156 = vmatpush1.msra.mxu0 0.0
        %2157 = vmatprep.subr.mxu0 0.0
        %2158 = vmatpush1.msra.mxu0 0.0
        %2159 = vmatprep.subr.mxu0 0.0
        %2160 = vmatpush1.msra.mxu0 0.0
        %2161 = vmatprep.subr.mxu0 0.0
        %2162 = vmatpush1.msra.mxu0 0.0
        %2163 = vmatprep.subr.mxu0 0.0
        %2164 = vmatpush1.msra.mxu0 0.0
        %2165 = vmatprep.subr.mxu0 0.0
        %2166 = vmatpush1.msra.mxu0 0.0
        %2167 = vmatprep.subr.mxu0 0.0
        %2168 = vmatpush1.msra.mxu0 0.0
        %2169 = vmatprep.subr.mxu0 0.0
        %2170 = vmatpush1.msra.mxu0 0.0
        %2171 = vmatprep.subr.mxu0 0.0
        %2172 = vmatpush1.msra.mxu0 0.0
        %2173 = vmatprep.subr.mxu0 0.0
        %2174 = vmatpush1.msra.mxu0 0.0
        %2175 = vmatprep.subr.mxu0 0.0
        %2176 = vmatpush1.msra.mxu0 0.0
        %2177 = vmatprep.subr.mxu0 0.0
        %2178 = vmatpush1.msra.mxu0 0.0
        %2179 = vmatprep.subr.mxu0 0.0
        %2180 = vmatpush1.msra.mxu0 0.0
        %2181 = vmatprep.subr.mxu0 0.0
        %2182 = vmatpush1.msra.mxu0 0.0
        %2183 = vmatprep.subr.mxu0 0.0
        %2184 = vmatpush1.msra.mxu0 0.0
        %2185 = vmatprep.subr.mxu0 0.0
        %2186 = vmatpush1.msra.mxu0 0.0
        %2187 = vmatprep.subr.mxu0 0.0
        %2188 = vmatpush1.msra.mxu0 0.0
        %2189 = vmatprep.subr.mxu0 0.0
        %2190 = vmatpush1.msra.mxu0 0.0
        %2191 = vmatprep.subr.mxu0 0.0
        %2192 = vmatpush1.msra.mxu0 0.0
        %2193 = vmatprep.subr.mxu0 0.0
        %2194 = vmatpush1.msra.mxu0 0.0
        %2195 = vmatprep.subr.mxu0 0.0
        %2196 = vmatpush1.msra.mxu0 0.0
        %2197 = vmatprep.subr.mxu0 0.0
        %2198 = vmatpush1.msra.mxu0 0.0
        %2199 = vmatprep.subr.mxu0 0.0
        %2200 = vmatpush1.msra.mxu0 0.0
        %2201 = vmatprep.subr.mxu0 0.0
        %2202 = vmatpush1.msra.mxu0 0.0
        %2203 = vmatprep.subr.mxu0 0.0
        %2204 = vmatpush1.msra.mxu0 0.0
        %2205 = vmatprep.subr.mxu0 0.0
        %2206 = vmatpush1.msra.mxu0 0.0
        %2207 = vmatprep.subr.mxu0 0.0
        %2208 = vmatpush1.msra.mxu0 0.0
        %2209 = vmatprep.mubr.f32.mxu0 0.0
        %2210 = vmatmul.mubr.f32.gmra.mrb[0].mxu0 %v2098
        %v2211 = vpop.f32.mrb[0].mxu0
        %v2212 = vadd.f32 %v2095, %v2211
        %v2213 = vpop.f32.mrb[0].mxu0
        %2214 = vmatprep.mubr.f32.mxu0 0.0
        %2215 = vmatmul.mubr.f32.gmra.mrb[0].mxu0 %v2101
        %v2216 = vpop.f32.mrb[0].mxu0
        %v2217 = vadd.f32 %v2095, %v2216
        %v2218 = vpop.f32.mrb[0].mxu0
        %2219 = vmatprep.mubr.f32.mxu0 0.0
        %2220 = vmatmul.mubr.f32.gmra.mrb[0].mxu0 %v2104
        %v2221 = vpop.f32.mrb[0].mxu0
        %v2222 = vadd.f32 %v2095, %v2221
        %v2223 = vpop.f32.mrb[0].mxu0
        %2224 = vmatprep.mubr.f32.mxu0 0.0
        %2225 = vmatmul.mubr.f32.gmra.mrb[0].mxu0 %v2107
        %v2226 = vpop.f32.mrb[0].mxu0
        %v2227 = vadd.f32 %v2095, %v2226
        %v2228 = vpop.f32.mrb[0].mxu0
        %2229 = vmatprep.mubr.f32.mxu0 0.0
        %2230 = vmatmul.mubr.f32.gmra.mrb[0].mxu0 %v2110
        %v2231 = vpop.f32.mrb[0].mxu0
        %v2232 = vadd.f32 %v2095, %v2231
        %v2233 = vpop.f32.mrb[0].mxu0
        %2234 = vmatprep.mubr.f32.mxu0 0.0
        %2235 = vmatmul.mubr.f32.gmra.mrb[0].mxu0 %v2113
        %v2236 = vpop.f32.mrb[0].mxu0
        %v2237 = vadd.f32 %v2095, %v2236
        %v2238 = vpop.f32.mrb[0].mxu0
        %2239 = vmatprep.mubr.f32.mxu0 0.0
        %2240 = vmatmul.mubr.f32.gmra.mrb[0].mxu0 %v2116
        %v2241 = vpop.f32.mrb[0].mxu0
        %v2242 = vadd.f32 %v2095, %v2241
        %v2243 = vpop.f32.mrb[0].mxu0
        %2244 = vmatprep.mubr.f32.mxu0 0.0
        %2245 = vmatmul.mubr.f32.gmra.mrb[0].mxu0 %v2119
        %v2246 = vpop.f32.mrb[0].mxu0
        %v2247 = vadd.f32 %v2095, %v2246
        %v2248 = vpop.f32.mrb[0].mxu0
        %2249 = vmatprep.mubr.f32.mxu0 0.0
        %2250 = vmatmul.mubr.f32.gmra.mrb[0].mxu0 %v2122
        %v2251 = vpop.f32.mrb[0].mxu0
        %v2252 = vadd.f32 %v2095, %v2251
        %v2253 = vpop.f32.mrb[0].mxu0
        %2254 = vmatprep.mubr.f32.mxu0 0.0
        %2255 = vmatmul.mubr.f32.gmra.mrb[0].mxu0 %v2125
        %v2256 = vpop.f32.mrb[0].mxu0
        %v2257 = vadd.f32 %v2095, %v2256
        %v2258 = vpop.f32.mrb[0].mxu0
        %2259 = vmatprep.mubr.f32.mxu0 0.0
        %2260 = vmatmul.mubr.f32.gmra.mrb[0].mxu0 %v2128
        %v2261 = vpop.f32.mrb[0].mxu0
        %v2262 = vadd.f32 %v2095, %v2261
        %v2263 = vpop.f32.mrb[0].mxu0
        %2264 = vmatprep.mubr.f32.mxu0 0.0
        %2265 = vmatmul.mubr.f32.gmra.mrb[0].mxu0 %v2131
        %v2266 = vpop.f32.mrb[0].mxu0
        %v2267 = vadd.f32 %v2095, %v2266
        %v2268 = vpop.f32.mrb[0].mxu0
        %2269 = vmatprep.mubr.f32.mxu0 0.0
        %2270 = vmatmul.mubr.f32.gmra.mrb[0].mxu0 %v2134
        %v2271 = vpop.f32.mrb[0].mxu0
        %v2272 = vadd.f32 %v2095, %v2271
        %v2273 = vpop.f32.mrb[0].mxu0
        %2274 = vmatprep.mubr.f32.mxu0 0.0
        %2275 = vmatmul.mubr.f32.gmra.mrb[0].mxu0 %v2137
        %v2276 = vpop.f32.mrb[0].mxu0
        %v2277 = vadd.f32 %v2095, %v2276
        %v2278 = vpop.f32.mrb[0].mxu0
        %2279 = vmatprep.mubr.f32.mxu0 0.0
        %2280 = vmatmul.mubr.f32.gmra.mrb[0].mxu0 %v2140
        %v2281 = vpop.f32.mrb[0].mxu0
        %v2282 = vadd.f32 %v2095, %v2281
        %v2283 = vpop.f32.mrb[0].mxu0
        %2284 = vmatprep.mubr.f32.mxu0 0.0
        %2285 = vmatmul.mubr.f32.gmra.mrb[0].mxu0 %v2143
        %v2286 = vpop.f32.mrb[0].mxu0
        %v2287 = vadd.f32 %v2095, %v2286
        %v2288 = vpop.f32.mrb[0].mxu0
        %2289 = vdwg.mxu0
        %v2290 = vsel %vm1415, %v2212, -inf
        %v2291 = vsel %vm1415, %v2217, -inf
        %v2292 = vmax.f32 %v2290, %v2291
        %v2293 = vrot.slane %v2292, 4
        %v2294 = vmax.f32 %v2292, %v2293
        %v2295 = vrot.slane %v2294, 2
        %v2296 = vmax.f32 %v2294, %v2295
        %v2297 = vrot.slane %v2296, 1
        %v2298 = vmax.f32 %v2296, %v2297
        %v2299 = vsel %vm1415, %v2222, -inf
        %v2300 = vsel %vm1415, %v2227, -inf
        %v2301 = vmax.f32 %v2299, %v2300
        %v2302 = vrot.slane %v2301, 4
        %v2303 = vmax.f32 %v2301, %v2302
        %v2304 = vrot.slane %v2303, 2
        %v2305 = vmax.f32 %v2303, %v2304
        %v2306 = vrot.slane %v2305, 1
        %v2307 = vmax.f32 %v2305, %v2306
        %v2308 = vsel %vm1415, %v2232, -inf
        %v2309 = vsel %vm1415, %v2237, -inf
        %v2310 = vmax.f32 %v2308, %v2309
        %v2311 = vrot.slane %v2310, 4
        %v2312 = vmax.f32 %v2310, %v2311
        %v2313 = vrot.slane %v2312, 2
        %v2314 = vmax.f32 %v2312, %v2313
        %v2315 = vrot.slane %v2314, 1
        %v2316 = vmax.f32 %v2314, %v2315
        %v2317 = vsel %vm1415, %v2242, -inf
        %v2318 = vsel %vm1415, %v2247, -inf
        %v2319 = vmax.f32 %v2317, %v2318
        %v2320 = vrot.slane %v2319, 4
        %v2321 = vmax.f32 %v2319, %v2320
        %v2322 = vrot.slane %v2321, 2
        %v2323 = vmax.f32 %v2321, %v2322
        %v2324 = vrot.slane %v2323, 1
        %v2325 = vmax.f32 %v2323, %v2324
        %v2326 = vsel %vm1415, %v2252, -inf
        %v2327 = vsel %vm1415, %v2257, -inf
        %v2328 = vmax.f32 %v2326, %v2327
        %v2329 = vrot.slane %v2328, 4
        %v2330 = vmax.f32 %v2328, %v2329
        %v2331 = vrot.slane %v2330, 2
        %v2332 = vmax.f32 %v2330, %v2331
        %v2333 = vrot.slane %v2332, 1
        %v2334 = vmax.f32 %v2332, %v2333
        %v2335 = vsel %vm1415, %v2262, -inf
        %v2336 = vsel %vm1415, %v2267, -inf
        %v2337 = vmax.f32 %v2335, %v2336
        %v2338 = vrot.slane %v2337, 4
        %v2339 = vmax.f32 %v2337, %v2338
        %v2340 = vrot.slane %v2339, 2
        %v2341 = vmax.f32 %v2339, %v2340
        %v2342 = vrot.slane %v2341, 1
        %v2343 = vmax.f32 %v2341, %v2342
        %v2344 = vsel %vm1415, %v2272, -inf
        %v2345 = vsel %vm1415, %v2277, -inf
        %v2346 = vmax.f32 %v2344, %v2345
        %v2347 = vrot.slane %v2346, 4
        %v2348 = vmax.f32 %v2346, %v2347
        %v2349 = vrot.slane %v2348, 2
        %v2350 = vmax.f32 %v2348, %v2349
        %v2351 = vrot.slane %v2350, 1
        %v2352 = vmax.f32 %v2350, %v2351
        %v2353 = vsel %vm1415, %v2282, -inf
        %v2354 = vsel %vm1415, %v2287, -inf
        %v2355 = vmax.f32 %v2353, %v2354
        %v2356 = vrot.slane %v2355, 4
        %v2357 = vmax.f32 %v2355, %v2356
        %v2358 = vrot.slane %v2357, 2
        %v2359 = vmax.f32 %v2357, %v2358
        %v2360 = vrot.slane %v2359, 1
        %v2361 = vmax.f32 %v2359, %v2360
        %v2362 = vsub.f32 %v2212, %v2298
        %v2363 = vsub.f32 %v2217, %v2298
        %v2364 = vsub.f32 %v2222, %v2307
        %v2365 = vsub.f32 %v2227, %v2307
        %v2366 = vsub.f32 %v2232, %v2316
        %v2367 = vsub.f32 %v2237, %v2316
        %v2368 = vsub.f32 %v2242, %v2325
        %v2369 = vsub.f32 %v2247, %v2325
        %v2370 = vsub.f32 %v2252, %v2334
        %v2371 = vsub.f32 %v2257, %v2334
        %v2372 = vsub.f32 %v2262, %v2343
        %v2373 = vsub.f32 %v2267, %v2343
        %v2374 = vsub.f32 %v2272, %v2352
        %v2375 = vsub.f32 %v2277, %v2352
        %v2376 = vsub.f32 %v2282, %v2361
        %v2377 = vsub.f32 %v2287, %v2361
        %v2378 = vmul.f32 %v2362, 1.442695
        %v2379 = vpow.pop %v2378
        %v2380 = vmul.f32 %v2363, 1.442695
        %v2381 = vpow.pop %v2380
        %v2382 = vmul.f32 %v2364, 1.442695
        %v2383 = vpow.pop %v2382
        %v2384 = vmul.f32 %v2365, 1.442695
        %v2385 = vpow.pop %v2384
        %v2386 = vmul.f32 %v2366, 1.442695
        %v2387 = vpow.pop %v2386
        %v2388 = vmul.f32 %v2367, 1.442695
        %v2389 = vpow.pop %v2388
        %v2390 = vmul.f32 %v2368, 1.442695
        %v2391 = vpow.pop %v2390
        %v2392 = vmul.f32 %v2369, 1.442695
        %v2393 = vpow.pop %v2392
        %v2394 = vmul.f32 %v2370, 1.442695
        %v2395 = vpow.pop %v2394
        %v2396 = vmul.f32 %v2371, 1.442695
        %v2397 = vpow.pop %v2396
        %v2398 = vmul.f32 %v2372, 1.442695
        %v2399 = vpow.pop %v2398
        %v2400 = vmul.f32 %v2373, 1.442695
        %v2401 = vpow.pop %v2400
        %v2402 = vmul.f32 %v2374, 1.442695
        %v2403 = vpow.pop %v2402
        %v2404 = vmul.f32 %v2375, 1.442695
        %v2405 = vpow.pop %v2404
        %v2406 = vmul.f32 %v2376, 1.442695
        %v2407 = vpow.pop %v2406
        %v2408 = vmul.f32 %v2377, 1.442695
        %v2409 = vpow.pop %v2408
        %v2410 = vsel %vm1415, %v2379, 0.0
        %v2411 = vsel %vm1415, %v2381, 0.0
        %v2412 = vadd.f32 %v2410, %v2411
        %v2413 = vrot.slane %v2412, 4
        %v2414 = vadd.f32 %v2412, %v2413
        %v2415 = vrot.slane %v2414, 2
        %v2416 = vadd.f32 %v2414, %v2415
        %v2417 = vrot.slane %v2416, 1
        %v2418 = vadd.f32 %v2416, %v2417
        %v2419 = vsel %vm1415, %v2383, 0.0
        %v2420 = vsel %vm1415, %v2385, 0.0
        %v2421 = vadd.f32 %v2419, %v2420
        %v2422 = vrot.slane %v2421, 4
        %v2423 = vadd.f32 %v2421, %v2422
        %v2424 = vrot.slane %v2423, 2
        %v2425 = vadd.f32 %v2423, %v2424
        %v2426 = vrot.slane %v2425, 1
        %v2427 = vadd.f32 %v2425, %v2426
        %v2428 = vsel %vm1415, %v2387, 0.0
        %v2429 = vsel %vm1415, %v2389, 0.0
        %v2430 = vadd.f32 %v2428, %v2429
        %v2431 = vrot.slane %v2430, 4
        %v2432 = vadd.f32 %v2430, %v2431
        %v2433 = vrot.slane %v2432, 2
        %v2434 = vadd.f32 %v2432, %v2433
        %v2435 = vrot.slane %v2434, 1
        %v2436 = vadd.f32 %v2434, %v2435
        %v2437 = vsel %vm1415, %v2391, 0.0
        %v2438 = vsel %vm1415, %v2393, 0.0
        %v2439 = vadd.f32 %v2437, %v2438
        %v2440 = vrot.slane %v2439, 4
        %v2441 = vadd.f32 %v2439, %v2440
        %v2442 = vrot.slane %v2441, 2
        %v2443 = vadd.f32 %v2441, %v2442
        %v2444 = vrot.slane %v2443, 1
        %v2445 = vadd.f32 %v2443, %v2444
        %v2446 = vsel %vm1415, %v2395, 0.0
        %v2447 = vsel %vm1415, %v2397, 0.0
        %v2448 = vadd.f32 %v2446, %v2447
        %v2449 = vrot.slane %v2448, 4
        %v2450 = vadd.f32 %v2448, %v2449
        %v2451 = vrot.slane %v2450, 2
        %v2452 = vadd.f32 %v2450, %v2451
        %v2453 = vrot.slane %v2452, 1
        %v2454 = vadd.f32 %v2452, %v2453
        %v2455 = vsel %vm1415, %v2399, 0.0
        %v2456 = vsel %vm1415, %v2401, 0.0
        %v2457 = vadd.f32 %v2455, %v2456
        %v2458 = vrot.slane %v2457, 4
        %v2459 = vadd.f32 %v2457, %v2458
        %v2460 = vrot.slane %v2459, 2
        %v2461 = vadd.f32 %v2459, %v2460
        %v2462 = vrot.slane %v2461, 1
        %v2463 = vadd.f32 %v2461, %v2462
        %v2464 = vsel %vm1415, %v2403, 0.0
        %v2465 = vsel %vm1415, %v2405, 0.0
        %v2466 = vadd.f32 %v2464, %v2465
        %v2467 = vrot.slane %v2466, 4
        %v2468 = vadd.f32 %v2466, %v2467
        %v2469 = vrot.slane %v2468, 2
        %v2470 = vadd.f32 %v2468, %v2469
        %v2471 = vrot.slane %v2470, 1
        %v2472 = vadd.f32 %v2470, %v2471
        %v2473 = vsel %vm1415, %v2407, 0.0
        %v2474 = vsel %vm1415, %v2409, 0.0
        %v2475 = vadd.f32 %v2473, %v2474
        %v2476 = vrot.slane %v2475, 4
        %v2477 = vadd.f32 %v2475, %v2476
        %v2478 = vrot.slane %v2477, 2
        %v2479 = vadd.f32 %v2477, %v2478
        %v2480 = vrot.slane %v2479, 1
        %v2481 = vadd.f32 %v2479, %v2480
        %v2482 = vrcp.pop %v2418
        %v2483 = vmul.f32 %v2379, %v2482
        %v2484 = vmul.f32 %v2381, %v2482
        %v2485 = vrcp.pop %v2427
        %v2486 = vmul.f32 %v2383, %v2485
        %v2487 = vmul.f32 %v2385, %v2485
        %v2488 = vrcp.pop %v2436
        %v2489 = vmul.f32 %v2387, %v2488
        %v2490 = vmul.f32 %v2389, %v2488
        %v2491 = vrcp.pop %v2445
        %v2492 = vmul.f32 %v2391, %v2491
        %v2493 = vmul.f32 %v2393, %v2491
        %v2494 = vrcp.pop %v2454
        %v2495 = vmul.f32 %v2395, %v2494
        %v2496 = vmul.f32 %v2397, %v2494
        %v2497 = vrcp.pop %v2463
        %v2498 = vmul.f32 %v2399, %v2497
        %v2499 = vmul.f32 %v2401, %v2497
        %v2500 = vrcp.pop %v2472
        %v2501 = vmul.f32 %v2403, %v2500
        %v2502 = vmul.f32 %v2405, %v2500
        %v2503 = vrcp.pop %v2481
        %v2504 = vmul.f32 %v2407, %v2503
        %v2505 = vmul.f32 %v2409, %v2503
        %2506 = vrot.lane.b32.xlu0 %v1845, 96
        %v2507 = vpop.permute.xlu0 %2506
        %2508 = vrot.lane.b32.xlu0 %v1846, 96
        %v2509 = vpop.permute.xlu0 %2508
        %2510 = vrot.lane.b32.xlu0 %v1847, 96
        %v2511 = vpop.permute.xlu0 %2510
        %2512 = vrot.lane.b32.xlu0 %v1848, 96
        %v2513 = vpop.permute.xlu0 %2512
        %2514 = vrot.lane.b32.xlu0 %v1849, 96
        %v2515 = vpop.permute.xlu0 %2514
        %2516 = vrot.lane.b32.xlu0 %v1850, 96
        %v2517 = vpop.permute.xlu0 %2516
        %2518 = vrot.lane.b32.xlu0 %v1851, 96
        %v2519 = vpop.permute.xlu0 %2518
        %2520 = vrot.lane.b32.xlu0 %v1852, 96
        %v2521 = vpop.permute.xlu0 %2520
        %2522 = vrot.lane.b32.xlu0 %v1853, 96
        %v2523 = vpop.permute.xlu0 %2522
        %2524 = vrot.lane.b32.xlu0 %v1854, 96
        %v2525 = vpop.permute.xlu0 %2524
        %2526 = vrot.lane.b32.xlu0 %v1855, 96
        %v2527 = vpop.permute.xlu0 %2526
        %2528 = vrot.lane.b32.xlu0 %v1856, 96
        %v2529 = vpop.permute.xlu0 %2528
        %2530 = vrot.lane.b32.xlu0 %v1857, 96
        %v2531 = vpop.permute.xlu0 %2530
        %2532 = vrot.lane.b32.xlu0 %v1858, 96
        %v2533 = vpop.permute.xlu0 %2532
        %2534 = vrot.lane.b32.xlu0 %v1859, 96
        %v2535 = vpop.permute.xlu0 %2534
        %2536 = vrot.lane.b32.xlu0 %v1860, 96
        %v2537 = vpop.permute.xlu0 %2536
        %v2554 = vmul.f32 %v2483, %v2507
        %v2555 = vmul.f32 %v2484, %v2509
        %v2556 = vmul.f32 %v2486, %v2511
        %v2557 = vmul.f32 %v2487, %v2513
        %v2558 = vmul.f32 %v2489, %v2515
        %v2559 = vmul.f32 %v2490, %v2517
        %v2560 = vmul.f32 %v2492, %v2519
        %v2561 = vmul.f32 %v2493, %v2521
        %v2562 = vmul.f32 %v2495, %v2523
        %v2563 = vmul.f32 %v2496, %v2525
        %v2564 = vmul.f32 %v2498, %v2527
        %v2565 = vmul.f32 %v2499, %v2529
        %v2566 = vmul.f32 %v2501, %v2531
        %v2567 = vmul.f32 %v2502, %v2533
        %v2568 = vmul.f32 %v2504, %v2535
        %v2569 = vmul.f32 %v2505, %v2537
        %v2570 = vmax.f32 %v2554, 0.0
        %v2571 = vmax.f32 %v2555, 0.0
        %v2572 = vmax.f32 %v2556, 0.0
        %v2573 = vmax.f32 %v2557, 0.0
        %v2574 = vmax.f32 %v2558, 0.0
        %v2575 = vmax.f32 %v2559, 0.0
        %v2576 = vmax.f32 %v2560, 0.0
        %v2577 = vmax.f32 %v2561, 0.0
        %v2578 = vmax.f32 %v2562, 0.0
        %v2579 = vmax.f32 %v2563, 0.0
        %v2580 = vmax.f32 %v2564, 0.0
        %v2581 = vmax.f32 %v2565, 0.0
        %v2582 = vmax.f32 %v2566, 0.0
        %v2583 = vmax.f32 %v2567, 0.0
        %v2584 = vmax.f32 %v2568, 0.0
        %v2585 = vmax.f32 %v2569, 0.0
        %v2586 = vld [vmem:[%s17] sm:$0xff]
        %v2587 = vld [vmem:[%s17 + $0x8] sm:$0xff]
        %v2588 = vld [vmem:[%s17 + $0x10] sm:$0xff]
        %v2589 = vld [vmem:[%s17 + $0x18] sm:$0xff]
        %v2590 = vld [vmem:[%s18] sm:$0x1]
        %v2592 = vlaneseq
        %v2593 = vshrl.u32 %v2592, 7
        %v2594 = vsub.s32 0, %v2593
        %v2595 = vrot.slane %v2590, %v2594
        %v2598 = vsel %vm1415, %v2570, 0
        %v2601 = vsel %vm1415, %v2571, 0
        %v2604 = vsel %vm1415, %v2572, 0
        %v2607 = vsel %vm1415, %v2573, 0
        %v2610 = vsel %vm1415, %v2574, 0
        %v2613 = vsel %vm1415, %v2575, 0
        %v2616 = vsel %vm1415, %v2576, 0
        %v2619 = vsel %vm1415, %v2577, 0
        %v2622 = vsel %vm1415, %v2578, 0
        %v2625 = vsel %vm1415, %v2579, 0
        %v2628 = vsel %vm1415, %v2580, 0
        %v2631 = vsel %vm1415, %v2581, 0
        %v2634 = vsel %vm1415, %v2582, 0
        %v2637 = vsel %vm1415, %v2583, 0
        %v2640 = vsel %vm1415, %v2584, 0
        %v2643 = vsel %vm1415, %v2585, 0
        %2645 = vmatprep.subr.mxu0 0.0
        %2646 = vmatpush1.msra.mxu0 %v2586
        %2647 = vmatprep.subr.mxu0 0.0
        %2648 = vmatpush1.msra.mxu0 %v2587
        %2649 = vmatprep.subr.mxu0 0.0
        %2650 = vmatpush1.msra.mxu0 %v2588
        %2651 = vmatprep.subr.mxu0 0.0
        %2652 = vmatpush1.msra.mxu0 %v2589
        %2653 = vmatprep.subr.mxu0 0.0
        %2654 = vmatpush1.msra.mxu0 0.0
        %2655 = vmatprep.subr.mxu0 0.0
        %2656 = vmatpush1.msra.mxu0 0.0
        %2657 = vmatprep.subr.mxu0 0.0
        %2658 = vmatpush1.msra.mxu0 0.0
        %2659 = vmatprep.subr.mxu0 0.0
        %2660 = vmatpush1.msra.mxu0 0.0
        %2661 = vmatprep.subr.mxu0 0.0
        %2662 = vmatpush1.msra.mxu0 0.0
        %2663 = vmatprep.subr.mxu0 0.0
        %2664 = vmatpush1.msra.mxu0 0.0
        %2665 = vmatprep.subr.mxu0 0.0
        %2666 = vmatpush1.msra.mxu0 0.0
        %2667 = vmatprep.subr.mxu0 0.0
        %2668 = vmatpush1.msra.mxu0 0.0
        %2669 = vmatprep.subr.mxu0 0.0
        %2670 = vmatpush1.msra.mxu0 0.0
        %2671 = vmatprep.subr.mxu0 0.0
        %2672 = vmatpush1.msra.mxu0 0.0
        %2673 = vmatprep.subr.mxu0 0.0
        %2674 = vmatpush1.msra.mxu0 0.0
        %2675 = vmatprep.subr.mxu0 0.0
        %2676 = vmatpush1.msra.mxu0 0.0
        %2677 = vmatprep.subr.mxu0 0.0
        %2678 = vmatpush1.msra.mxu0 0.0
        %2679 = vmatprep.subr.mxu0 0.0
        %2680 = vmatpush1.msra.mxu0 0.0
        %2681 = vmatprep.subr.mxu0 0.0
        %2682 = vmatpush1.msra.mxu0 0.0
        %2683 = vmatprep.subr.mxu0 0.0
        %2684 = vmatpush1.msra.mxu0 0.0
        %2685 = vmatprep.subr.mxu0 0.0
        %2686 = vmatpush1.msra.mxu0 0.0
        %2687 = vmatprep.subr.mxu0 0.0
        %2688 = vmatpush1.msra.mxu0 0.0
        %2689 = vmatprep.subr.mxu0 0.0
        %2690 = vmatpush1.msra.mxu0 0.0
        %2691 = vmatprep.subr.mxu0 0.0
        %2692 = vmatpush1.msra.mxu0 0.0
        %2693 = vmatprep.subr.mxu0 0.0
        %2694 = vmatpush1.msra.mxu0 0.0
        %2695 = vmatprep.subr.mxu0 0.0
        %2696 = vmatpush1.msra.mxu0 0.0
        %2697 = vmatprep.subr.mxu0 0.0
        %2698 = vmatpush1.msra.mxu0 0.0
        %2699 = vmatprep.subr.mxu0 0.0
        %2700 = vmatpush1.msra.mxu0 0.0
        %2701 = vmatprep.subr.mxu0 0.0
        %2702 = vmatpush1.msra.mxu0 0.0
        %2703 = vmatprep.subr.mxu0 0.0
        %2704 = vmatpush1.msra.mxu0 0.0
        %2705 = vmatprep.subr.mxu0 0.0
        %2706 = vmatpush1.msra.mxu0 0.0
        %2707 = vmatprep.subr.mxu0 0.0
        %2708 = vmatpush1.msra.mxu0 0.0
        %2709 = vmatprep.mubr.f32.mxu0 0.0
        %2710 = vmatmul.mubr.f32.gmra.mrb[0].mxu0 %v2598
        %v2711 = vpop.f32.mrb[0].mxu0
        %v2712 = vadd.f32 %v2595, %v2711
        %v2713 = vpop.f32.mrb[0].mxu0
        %2714 = vmatprep.mubr.f32.mxu0 0.0
        %2715 = vmatmul.mubr.f32.gmra.mrb[0].mxu0 %v2601
        %v2716 = vpop.f32.mrb[0].mxu0
        %v2717 = vadd.f32 %v2595, %v2716
        %v2718 = vpop.f32.mrb[0].mxu0
        %2719 = vmatprep.mubr.f32.mxu0 0.0
        %2720 = vmatmul.mubr.f32.gmra.mrb[0].mxu0 %v2604
        %v2721 = vpop.f32.mrb[0].mxu0
        %v2722 = vadd.f32 %v2595, %v2721
        %v2723 = vpop.f32.mrb[0].mxu0
        %2724 = vmatprep.mubr.f32.mxu0 0.0
        %2725 = vmatmul.mubr.f32.gmra.mrb[0].mxu0 %v2607
        %v2726 = vpop.f32.mrb[0].mxu0
        %v2727 = vadd.f32 %v2595, %v2726
        %v2728 = vpop.f32.mrb[0].mxu0
        %2729 = vmatprep.mubr.f32.mxu0 0.0
        %2730 = vmatmul.mubr.f32.gmra.mrb[0].mxu0 %v2610
        %v2731 = vpop.f32.mrb[0].mxu0
        %v2732 = vadd.f32 %v2595, %v2731
        %v2733 = vpop.f32.mrb[0].mxu0
        %2734 = vmatprep.mubr.f32.mxu0 0.0
        %2735 = vmatmul.mubr.f32.gmra.mrb[0].mxu0 %v2613
        %v2736 = vpop.f32.mrb[0].mxu0
        %v2737 = vadd.f32 %v2595, %v2736
        %v2738 = vpop.f32.mrb[0].mxu0
        %2739 = vmatprep.mubr.f32.mxu0 0.0
        %2740 = vmatmul.mubr.f32.gmra.mrb[0].mxu0 %v2616
        %v2741 = vpop.f32.mrb[0].mxu0
        %v2742 = vadd.f32 %v2595, %v2741
        %v2743 = vpop.f32.mrb[0].mxu0
        %2744 = vmatprep.mubr.f32.mxu0 0.0
        %2745 = vmatmul.mubr.f32.gmra.mrb[0].mxu0 %v2619
        %v2746 = vpop.f32.mrb[0].mxu0
        %v2747 = vadd.f32 %v2595, %v2746
        %v2748 = vpop.f32.mrb[0].mxu0
        %2749 = vmatprep.mubr.f32.mxu0 0.0
        %2750 = vmatmul.mubr.f32.gmra.mrb[0].mxu0 %v2622
        %v2751 = vpop.f32.mrb[0].mxu0
        %v2752 = vadd.f32 %v2595, %v2751
        %v2753 = vpop.f32.mrb[0].mxu0
        %2754 = vmatprep.mubr.f32.mxu0 0.0
        %2755 = vmatmul.mubr.f32.gmra.mrb[0].mxu0 %v2625
        %v2756 = vpop.f32.mrb[0].mxu0
        %v2757 = vadd.f32 %v2595, %v2756
        %v2758 = vpop.f32.mrb[0].mxu0
        %2759 = vmatprep.mubr.f32.mxu0 0.0
        %2760 = vmatmul.mubr.f32.gmra.mrb[0].mxu0 %v2628
        %v2761 = vpop.f32.mrb[0].mxu0
        %v2762 = vadd.f32 %v2595, %v2761
        %v2763 = vpop.f32.mrb[0].mxu0
        %2764 = vmatprep.mubr.f32.mxu0 0.0
        %2765 = vmatmul.mubr.f32.gmra.mrb[0].mxu0 %v2631
        %v2766 = vpop.f32.mrb[0].mxu0
        %v2767 = vadd.f32 %v2595, %v2766
        %v2768 = vpop.f32.mrb[0].mxu0
        %2769 = vmatprep.mubr.f32.mxu0 0.0
        %2770 = vmatmul.mubr.f32.gmra.mrb[0].mxu0 %v2634
        %v2771 = vpop.f32.mrb[0].mxu0
        %v2772 = vadd.f32 %v2595, %v2771
        %v2773 = vpop.f32.mrb[0].mxu0
        %2774 = vmatprep.mubr.f32.mxu0 0.0
        %2775 = vmatmul.mubr.f32.gmra.mrb[0].mxu0 %v2637
        %v2776 = vpop.f32.mrb[0].mxu0
        %v2777 = vadd.f32 %v2595, %v2776
        %v2778 = vpop.f32.mrb[0].mxu0
        %2779 = vmatprep.mubr.f32.mxu0 0.0
        %2780 = vmatmul.mubr.f32.gmra.mrb[0].mxu0 %v2640
        %v2781 = vpop.f32.mrb[0].mxu0
        %v2782 = vadd.f32 %v2595, %v2781
        %v2783 = vpop.f32.mrb[0].mxu0
        %2784 = vmatprep.mubr.f32.mxu0 0.0
        %2785 = vmatmul.mubr.f32.gmra.mrb[0].mxu0 %v2643
        %v2786 = vpop.f32.mrb[0].mxu0
        %v2787 = vadd.f32 %v2595, %v2786
        %v2788 = vpop.f32.mrb[0].mxu0
        %2789 = vdwg.mxu0
        %v2790 = vadd.f32 %v2712, %v821
        %v2791 = vadd.f32 %v2717, %v826
        %v2792 = vadd.f32 %v2722, %v831
        %v2793 = vadd.f32 %v2727, %v836
        %v2794 = vadd.f32 %v2732, %v841
        %v2795 = vadd.f32 %v2737, %v846
        %v2796 = vadd.f32 %v2742, %v851
        %v2797 = vadd.f32 %v2747, %v856
        %v2798 = vadd.f32 %v2752, %v861
        %v2799 = vadd.f32 %v2757, %v866
        %v2800 = vadd.f32 %v2762, %v871
        %v2801 = vadd.f32 %v2767, %v876
        %v2802 = vadd.f32 %v2772, %v881
        %v2803 = vadd.f32 %v2777, %v886
        %v2804 = vadd.f32 %v2782, %v891
        %v2805 = vadd.f32 %v2787, %v896
        %s2806 = scalar_lea.vmem %s9, 32
        %v2807 = vld [vmem:[%s2806] sm:$0xff]
        %v2808 = vld [vmem:[%s2806 + $0x8] sm:$0xff]
        %v2809 = vld [vmem:[%s2806 + $0x10] sm:$0xff]
        %v2810 = vld [vmem:[%s2806 + $0x18] sm:$0xff]
        %s2811 = scalar_lea.vmem %s10, 1
        %v2812 = vld [vmem:[%s2811] sm:$0x1]
        %v2814 = vlaneseq
        %v2815 = vshrl.u32 %v2814, 7
        %v2816 = vsub.s32 0, %v2815
        %v2817 = vrot.slane %v2812, %v2816
        %v2820 = vsel %vm1415, %v2790, 0
        %v2823 = vsel %vm1415, %v2791, 0
        %v2826 = vsel %vm1415, %v2792, 0
        %v2829 = vsel %vm1415, %v2793, 0
        %v2832 = vsel %vm1415, %v2794, 0
        %v2835 = vsel %vm1415, %v2795, 0
        %v2838 = vsel %vm1415, %v2796, 0
        %v2841 = vsel %vm1415, %v2797, 0
        %v2844 = vsel %vm1415, %v2798, 0
        %v2847 = vsel %vm1415, %v2799, 0
        %v2850 = vsel %vm1415, %v2800, 0
        %v2853 = vsel %vm1415, %v2801, 0
        %v2856 = vsel %vm1415, %v2802, 0
        %v2859 = vsel %vm1415, %v2803, 0
        %v2862 = vsel %vm1415, %v2804, 0
        %v2865 = vsel %vm1415, %v2805, 0
        %2867 = vmatprep.subr.mxu0 0.0
        %2868 = vmatpush1.msra.mxu0 %v2807
        %2869 = vmatprep.subr.mxu0 0.0
        %2870 = vmatpush1.msra.mxu0 %v2808
        %2871 = vmatprep.subr.mxu0 0.0
        %2872 = vmatpush1.msra.mxu0 %v2809
        %2873 = vmatprep.subr.mxu0 0.0
        %2874 = vmatpush1.msra.mxu0 %v2810
        %2875 = vmatprep.subr.mxu0 0.0
        %2876 = vmatpush1.msra.mxu0 0.0
        %2877 = vmatprep.subr.mxu0 0.0
        %2878 = vmatpush1.msra.mxu0 0.0
        %2879 = vmatprep.subr.mxu0 0.0
        %2880 = vmatpush1.msra.mxu0 0.0
        %2881 = vmatprep.subr.mxu0 0.0
        %2882 = vmatpush1.msra.mxu0 0.0
        %2883 = vmatprep.subr.mxu0 0.0
        %2884 = vmatpush1.msra.mxu0 0.0
        %2885 = vmatprep.subr.mxu0 0.0
        %2886 = vmatpush1.msra.mxu0 0.0
        %2887 = vmatprep.subr.mxu0 0.0
        %2888 = vmatpush1.msra.mxu0 0.0
        %2889 = vmatprep.subr.mxu0 0.0
        %2890 = vmatpush1.msra.mxu0 0.0
        %2891 = vmatprep.subr.mxu0 0.0
        %2892 = vmatpush1.msra.mxu0 0.0
        %2893 = vmatprep.subr.mxu0 0.0
        %2894 = vmatpush1.msra.mxu0 0.0
        %2895 = vmatprep.subr.mxu0 0.0
        %2896 = vmatpush1.msra.mxu0 0.0
        %2897 = vmatprep.subr.mxu0 0.0
        %2898 = vmatpush1.msra.mxu0 0.0
        %2899 = vmatprep.subr.mxu0 0.0
        %2900 = vmatpush1.msra.mxu0 0.0
        %2901 = vmatprep.subr.mxu0 0.0
        %2902 = vmatpush1.msra.mxu0 0.0
        %2903 = vmatprep.subr.mxu0 0.0
        %2904 = vmatpush1.msra.mxu0 0.0
        %2905 = vmatprep.subr.mxu0 0.0
        %2906 = vmatpush1.msra.mxu0 0.0
        %2907 = vmatprep.subr.mxu0 0.0
        %2908 = vmatpush1.msra.mxu0 0.0
        %2909 = vmatprep.subr.mxu0 0.0
        %2910 = vmatpush1.msra.mxu0 0.0
        %2911 = vmatprep.subr.mxu0 0.0
        %2912 = vmatpush1.msra.mxu0 0.0
        %2913 = vmatprep.subr.mxu0 0.0
        %2914 = vmatpush1.msra.mxu0 0.0
        %2915 = vmatprep.subr.mxu0 0.0
        %2916 = vmatpush1.msra.mxu0 0.0
        %2917 = vmatprep.subr.mxu0 0.0
        %2918 = vmatpush1.msra.mxu0 0.0
        %2919 = vmatprep.subr.mxu0 0.0
        %2920 = vmatpush1.msra.mxu0 0.0
        %2921 = vmatprep.subr.mxu0 0.0
        %2922 = vmatpush1.msra.mxu0 0.0
        %2923 = vmatprep.subr.mxu0 0.0
        %2924 = vmatpush1.msra.mxu0 0.0
        %2925 = vmatprep.subr.mxu0 0.0
        %2926 = vmatpush1.msra.mxu0 0.0
        %2927 = vmatprep.subr.mxu0 0.0
        %2928 = vmatpush1.msra.mxu0 0.0
        %2929 = vmatprep.subr.mxu0 0.0
        %2930 = vmatpush1.msra.mxu0 0.0
        %2931 = vmatprep.mubr.f32.mxu0 0.0
        %2932 = vmatmul.mubr.f32.gmra.mrb[0].mxu0 %v2820
        %v2933 = vpop.f32.mrb[0].mxu0
        %v2934 = vadd.f32 %v2817, %v2933
        %v2935 = vpop.f32.mrb[0].mxu0
        %2936 = vmatprep.mubr.f32.mxu0 0.0
        %2937 = vmatmul.mubr.f32.gmra.mrb[0].mxu0 %v2823
        %v2938 = vpop.f32.mrb[0].mxu0
        %v2939 = vadd.f32 %v2817, %v2938
        %v2940 = vpop.f32.mrb[0].mxu0
        %2941 = vmatprep.mubr.f32.mxu0 0.0
        %2942 = vmatmul.mubr.f32.gmra.mrb[0].mxu0 %v2826
        %v2943 = vpop.f32.mrb[0].mxu0
        %v2944 = vadd.f32 %v2817, %v2943
        %v2945 = vpop.f32.mrb[0].mxu0
        %2946 = vmatprep.mubr.f32.mxu0 0.0
        %2947 = vmatmul.mubr.f32.gmra.mrb[0].mxu0 %v2829
        %v2948 = vpop.f32.mrb[0].mxu0
        %v2949 = vadd.f32 %v2817, %v2948
        %v2950 = vpop.f32.mrb[0].mxu0
        %2951 = vmatprep.mubr.f32.mxu0 0.0
        %2952 = vmatmul.mubr.f32.gmra.mrb[0].mxu0 %v2832
        %v2953 = vpop.f32.mrb[0].mxu0
        %v2954 = vadd.f32 %v2817, %v2953
        %v2955 = vpop.f32.mrb[0].mxu0
        %2956 = vmatprep.mubr.f32.mxu0 0.0
        %2957 = vmatmul.mubr.f32.gmra.mrb[0].mxu0 %v2835
        %v2958 = vpop.f32.mrb[0].mxu0
        %v2959 = vadd.f32 %v2817, %v2958
        %v2960 = vpop.f32.mrb[0].mxu0
        %2961 = vmatprep.mubr.f32.mxu0 0.0
        %2962 = vmatmul.mubr.f32.gmra.mrb[0].mxu0 %v2838
        %v2963 = vpop.f32.mrb[0].mxu0
        %v2964 = vadd.f32 %v2817, %v2963
        %v2965 = vpop.f32.mrb[0].mxu0
        %2966 = vmatprep.mubr.f32.mxu0 0.0
        %2967 = vmatmul.mubr.f32.gmra.mrb[0].mxu0 %v2841
        %v2968 = vpop.f32.mrb[0].mxu0
        %v2969 = vadd.f32 %v2817, %v2968
        %v2970 = vpop.f32.mrb[0].mxu0
        %2971 = vmatprep.mubr.f32.mxu0 0.0
        %2972 = vmatmul.mubr.f32.gmra.mrb[0].mxu0 %v2844
        %v2973 = vpop.f32.mrb[0].mxu0
        %v2974 = vadd.f32 %v2817, %v2973
        %v2975 = vpop.f32.mrb[0].mxu0
        %2976 = vmatprep.mubr.f32.mxu0 0.0
        %2977 = vmatmul.mubr.f32.gmra.mrb[0].mxu0 %v2847
        %v2978 = vpop.f32.mrb[0].mxu0
        %v2979 = vadd.f32 %v2817, %v2978
        %v2980 = vpop.f32.mrb[0].mxu0
        %2981 = vmatprep.mubr.f32.mxu0 0.0
        %2982 = vmatmul.mubr.f32.gmra.mrb[0].mxu0 %v2850
        %v2983 = vpop.f32.mrb[0].mxu0
        %v2984 = vadd.f32 %v2817, %v2983
        %v2985 = vpop.f32.mrb[0].mxu0
        %2986 = vmatprep.mubr.f32.mxu0 0.0
        %2987 = vmatmul.mubr.f32.gmra.mrb[0].mxu0 %v2853
        %v2988 = vpop.f32.mrb[0].mxu0
        %v2989 = vadd.f32 %v2817, %v2988
        %v2990 = vpop.f32.mrb[0].mxu0
        %2991 = vmatprep.mubr.f32.mxu0 0.0
        %2992 = vmatmul.mubr.f32.gmra.mrb[0].mxu0 %v2856
        %v2993 = vpop.f32.mrb[0].mxu0
        %v2994 = vadd.f32 %v2817, %v2993
        %v2995 = vpop.f32.mrb[0].mxu0
        %2996 = vmatprep.mubr.f32.mxu0 0.0
        %2997 = vmatmul.mubr.f32.gmra.mrb[0].mxu0 %v2859
        %v2998 = vpop.f32.mrb[0].mxu0
        %v2999 = vadd.f32 %v2817, %v2998
        %v3000 = vpop.f32.mrb[0].mxu0
        %3001 = vmatprep.mubr.f32.mxu0 0.0
        %3002 = vmatmul.mubr.f32.gmra.mrb[0].mxu0 %v2862
        %v3003 = vpop.f32.mrb[0].mxu0
        %v3004 = vadd.f32 %v2817, %v3003
        %v3005 = vpop.f32.mrb[0].mxu0
        %3006 = vmatprep.mubr.f32.mxu0 0.0
        %3007 = vmatmul.mubr.f32.gmra.mrb[0].mxu0 %v2865
        %v3008 = vpop.f32.mrb[0].mxu0
        %v3009 = vadd.f32 %v2817, %v3008
        %v3010 = vpop.f32.mrb[0].mxu0
        %3011 = vdwg.mxu0
        %v3012 = vmax.f32 %v2934, 0.0
        %v3013 = vmax.f32 %v2939, 0.0
        %v3014 = vmax.f32 %v2944, 0.0
        %v3015 = vmax.f32 %v2949, 0.0
        %v3016 = vmax.f32 %v2954, 0.0
        %v3017 = vmax.f32 %v2959, 0.0
        %v3018 = vmax.f32 %v2964, 0.0
        %v3019 = vmax.f32 %v2969, 0.0
        %v3020 = vmax.f32 %v2974, 0.0
        %v3021 = vmax.f32 %v2979, 0.0
        %v3022 = vmax.f32 %v2984, 0.0
        %v3023 = vmax.f32 %v2989, 0.0
        %v3024 = vmax.f32 %v2994, 0.0
        %v3025 = vmax.f32 %v2999, 0.0
        %v3026 = vmax.f32 %v3004, 0.0
        %v3027 = vmax.f32 %v3009, 0.0
        %s3028 = scalar_lea.vmem %s11, 32
        %v3029 = vld [vmem:[%s3028] sm:$0xff]
        %v3030 = vld [vmem:[%s3028 + $0x8] sm:$0xff]
        %v3031 = vld [vmem:[%s3028 + $0x10] sm:$0xff]
        %v3032 = vld [vmem:[%s3028 + $0x18] sm:$0xff]
        %s3033 = scalar_lea.vmem %s12, 1
        %v3034 = vld [vmem:[%s3033] sm:$0x1]
        %v3036 = vlaneseq
        %v3037 = vshrl.u32 %v3036, 7
        %v3038 = vsub.s32 0, %v3037
        %v3039 = vrot.slane %v3034, %v3038
        %v3042 = vsel %vm1415, %v3012, 0
        %v3045 = vsel %vm1415, %v3013, 0
        %v3048 = vsel %vm1415, %v3014, 0
        %v3051 = vsel %vm1415, %v3015, 0
        %v3054 = vsel %vm1415, %v3016, 0
        %v3057 = vsel %vm1415, %v3017, 0
        %v3060 = vsel %vm1415, %v3018, 0
        %v3063 = vsel %vm1415, %v3019, 0
        %v3066 = vsel %vm1415, %v3020, 0
        %v3069 = vsel %vm1415, %v3021, 0
        %v3072 = vsel %vm1415, %v3022, 0
        %v3075 = vsel %vm1415, %v3023, 0
        %v3078 = vsel %vm1415, %v3024, 0
        %v3081 = vsel %vm1415, %v3025, 0
        %v3084 = vsel %vm1415, %v3026, 0
        %v3087 = vsel %vm1415, %v3027, 0
        %3089 = vmatprep.subr.mxu0 0.0
        %3090 = vmatpush1.msra.mxu0 %v3029
        %3091 = vmatprep.subr.mxu0 0.0
        %3092 = vmatpush1.msra.mxu0 %v3030
        %3093 = vmatprep.subr.mxu0 0.0
        %3094 = vmatpush1.msra.mxu0 %v3031
        %3095 = vmatprep.subr.mxu0 0.0
        %3096 = vmatpush1.msra.mxu0 %v3032
        %3097 = vmatprep.subr.mxu0 0.0
        %3098 = vmatpush1.msra.mxu0 0.0
        %3099 = vmatprep.subr.mxu0 0.0
        %3100 = vmatpush1.msra.mxu0 0.0
        %3101 = vmatprep.subr.mxu0 0.0
        %3102 = vmatpush1.msra.mxu0 0.0
        %3103 = vmatprep.subr.mxu0 0.0
        %3104 = vmatpush1.msra.mxu0 0.0
        %3105 = vmatprep.subr.mxu0 0.0
        %3106 = vmatpush1.msra.mxu0 0.0
        %3107 = vmatprep.subr.mxu0 0.0
        %3108 = vmatpush1.msra.mxu0 0.0
        %3109 = vmatprep.subr.mxu0 0.0
        %3110 = vmatpush1.msra.mxu0 0.0
        %3111 = vmatprep.subr.mxu0 0.0
        %3112 = vmatpush1.msra.mxu0 0.0
        %3113 = vmatprep.subr.mxu0 0.0
        %3114 = vmatpush1.msra.mxu0 0.0
        %3115 = vmatprep.subr.mxu0 0.0
        %3116 = vmatpush1.msra.mxu0 0.0
        %3117 = vmatprep.subr.mxu0 0.0
        %3118 = vmatpush1.msra.mxu0 0.0
        %3119 = vmatprep.subr.mxu0 0.0
        %3120 = vmatpush1.msra.mxu0 0.0
        %3121 = vmatprep.subr.mxu0 0.0
        %3122 = vmatpush1.msra.mxu0 0.0
        %3123 = vmatprep.subr.mxu0 0.0
        %3124 = vmatpush1.msra.mxu0 0.0
        %3125 = vmatprep.subr.mxu0 0.0
        %3126 = vmatpush1.msra.mxu0 0.0
        %3127 = vmatprep.subr.mxu0 0.0
        %3128 = vmatpush1.msra.mxu0 0.0
        %3129 = vmatprep.subr.mxu0 0.0
        %3130 = vmatpush1.msra.mxu0 0.0
        %3131 = vmatprep.subr.mxu0 0.0
        %3132 = vmatpush1.msra.mxu0 0.0
        %3133 = vmatprep.subr.mxu0 0.0
        %3134 = vmatpush1.msra.mxu0 0.0
        %3135 = vmatprep.subr.mxu0 0.0
        %3136 = vmatpush1.msra.mxu0 0.0
        %3137 = vmatprep.subr.mxu0 0.0
        %3138 = vmatpush1.msra.mxu0 0.0
        %3139 = vmatprep.subr.mxu0 0.0
        %3140 = vmatpush1.msra.mxu0 0.0
        %3141 = vmatprep.subr.mxu0 0.0
        %3142 = vmatpush1.msra.mxu0 0.0
        %3143 = vmatprep.subr.mxu0 0.0
        %3144 = vmatpush1.msra.mxu0 0.0
        %3145 = vmatprep.subr.mxu0 0.0
        %3146 = vmatpush1.msra.mxu0 0.0
        %3147 = vmatprep.subr.mxu0 0.0
        %3148 = vmatpush1.msra.mxu0 0.0
        %3149 = vmatprep.subr.mxu0 0.0
        %3150 = vmatpush1.msra.mxu0 0.0
        %3151 = vmatprep.subr.mxu0 0.0
        %3152 = vmatpush1.msra.mxu0 0.0
        %3153 = vmatprep.mubr.f32.mxu0 0.0
        %3154 = vmatmul.mubr.f32.gmra.mrb[0].mxu0 %v3042
        %v3155 = vpop.f32.mrb[0].mxu0
        %v3156 = vadd.f32 %v3039, %v3155
        %v3157 = vpop.f32.mrb[0].mxu0
        %3158 = vmatprep.mubr.f32.mxu0 0.0
        %3159 = vmatmul.mubr.f32.gmra.mrb[0].mxu0 %v3045
        %v3160 = vpop.f32.mrb[0].mxu0
        %v3161 = vadd.f32 %v3039, %v3160
        %v3162 = vpop.f32.mrb[0].mxu0
        %3163 = vmatprep.mubr.f32.mxu0 0.0
        %3164 = vmatmul.mubr.f32.gmra.mrb[0].mxu0 %v3048
        %v3165 = vpop.f32.mrb[0].mxu0
        %v3166 = vadd.f32 %v3039, %v3165
        %v3167 = vpop.f32.mrb[0].mxu0
        %3168 = vmatprep.mubr.f32.mxu0 0.0
        %3169 = vmatmul.mubr.f32.gmra.mrb[0].mxu0 %v3051
        %v3170 = vpop.f32.mrb[0].mxu0
        %v3171 = vadd.f32 %v3039, %v3170
        %v3172 = vpop.f32.mrb[0].mxu0
        %3173 = vmatprep.mubr.f32.mxu0 0.0
        %3174 = vmatmul.mubr.f32.gmra.mrb[0].mxu0 %v3054
        %v3175 = vpop.f32.mrb[0].mxu0
        %v3176 = vadd.f32 %v3039, %v3175
        %v3177 = vpop.f32.mrb[0].mxu0
        %3178 = vmatprep.mubr.f32.mxu0 0.0
        %3179 = vmatmul.mubr.f32.gmra.mrb[0].mxu0 %v3057
        %v3180 = vpop.f32.mrb[0].mxu0
        %v3181 = vadd.f32 %v3039, %v3180
        %v3182 = vpop.f32.mrb[0].mxu0
        %3183 = vmatprep.mubr.f32.mxu0 0.0
        %3184 = vmatmul.mubr.f32.gmra.mrb[0].mxu0 %v3060
        %v3185 = vpop.f32.mrb[0].mxu0
        %v3186 = vadd.f32 %v3039, %v3185
        %v3187 = vpop.f32.mrb[0].mxu0
        %3188 = vmatprep.mubr.f32.mxu0 0.0
        %3189 = vmatmul.mubr.f32.gmra.mrb[0].mxu0 %v3063
        %v3190 = vpop.f32.mrb[0].mxu0
        %v3191 = vadd.f32 %v3039, %v3190
        %v3192 = vpop.f32.mrb[0].mxu0
        %3193 = vmatprep.mubr.f32.mxu0 0.0
        %3194 = vmatmul.mubr.f32.gmra.mrb[0].mxu0 %v3066
        %v3195 = vpop.f32.mrb[0].mxu0
        %v3196 = vadd.f32 %v3039, %v3195
        %v3197 = vpop.f32.mrb[0].mxu0
        %3198 = vmatprep.mubr.f32.mxu0 0.0
        %3199 = vmatmul.mubr.f32.gmra.mrb[0].mxu0 %v3069
        %v3200 = vpop.f32.mrb[0].mxu0
        %v3201 = vadd.f32 %v3039, %v3200
        %v3202 = vpop.f32.mrb[0].mxu0
        %3203 = vmatprep.mubr.f32.mxu0 0.0
        %3204 = vmatmul.mubr.f32.gmra.mrb[0].mxu0 %v3072
        %v3205 = vpop.f32.mrb[0].mxu0
        %v3206 = vadd.f32 %v3039, %v3205
        %v3207 = vpop.f32.mrb[0].mxu0
        %3208 = vmatprep.mubr.f32.mxu0 0.0
        %3209 = vmatmul.mubr.f32.gmra.mrb[0].mxu0 %v3075
        %v3210 = vpop.f32.mrb[0].mxu0
        %v3211 = vadd.f32 %v3039, %v3210
        %v3212 = vpop.f32.mrb[0].mxu0
        %3213 = vmatprep.mubr.f32.mxu0 0.0
        %3214 = vmatmul.mubr.f32.gmra.mrb[0].mxu0 %v3078
        %v3215 = vpop.f32.mrb[0].mxu0
        %v3216 = vadd.f32 %v3039, %v3215
        %v3217 = vpop.f32.mrb[0].mxu0
        %3218 = vmatprep.mubr.f32.mxu0 0.0
        %3219 = vmatmul.mubr.f32.gmra.mrb[0].mxu0 %v3081
        %v3220 = vpop.f32.mrb[0].mxu0
        %v3221 = vadd.f32 %v3039, %v3220
        %v3222 = vpop.f32.mrb[0].mxu0
        %3223 = vmatprep.mubr.f32.mxu0 0.0
        %3224 = vmatmul.mubr.f32.gmra.mrb[0].mxu0 %v3084
        %v3225 = vpop.f32.mrb[0].mxu0
        %v3226 = vadd.f32 %v3039, %v3225
        %v3227 = vpop.f32.mrb[0].mxu0
        %3228 = vmatprep.mubr.f32.mxu0 0.0
        %3229 = vmatmul.mubr.f32.gmra.mrb[0].mxu0 %v3087
        %v3230 = vpop.f32.mrb[0].mxu0
        %v3231 = vadd.f32 %v3039, %v3230
        %v3232 = vpop.f32.mrb[0].mxu0
        %3233 = vdwg.mxu0
        %3250 = vrot.lane.b32.xlu0 %v1158, 64
        %v3251 = vpop.permute.xlu0 %3250
        %3252 = vrot.lane.b32.xlu0 %v1163, 64
        %v3253 = vpop.permute.xlu0 %3252
        %3254 = vrot.lane.b32.xlu0 %v1168, 64
        %v3255 = vpop.permute.xlu0 %3254
        %3256 = vrot.lane.b32.xlu0 %v1173, 64
        %v3257 = vpop.permute.xlu0 %3256
        %3258 = vrot.lane.b32.xlu0 %v1178, 64
        %v3259 = vpop.permute.xlu0 %3258
        %3260 = vrot.lane.b32.xlu0 %v1183, 64
        %v3261 = vpop.permute.xlu0 %3260
        %3262 = vrot.lane.b32.xlu0 %v1188, 64
        %v3263 = vpop.permute.xlu0 %3262
        %3264 = vrot.lane.b32.xlu0 %v1193, 64
        %v3265 = vpop.permute.xlu0 %3264
        %3266 = vrot.lane.b32.xlu0 %v1198, 64
        %v3267 = vpop.permute.xlu0 %3266
        %3268 = vrot.lane.b32.xlu0 %v1203, 64
        %v3269 = vpop.permute.xlu0 %3268
        %3270 = vrot.lane.b32.xlu0 %v1208, 64
        %v3271 = vpop.permute.xlu0 %3270
        %3272 = vrot.lane.b32.xlu0 %v1213, 64
        %v3273 = vpop.permute.xlu0 %3272
        %3274 = vrot.lane.b32.xlu0 %v1218, 64
        %v3275 = vpop.permute.xlu0 %3274
        %3276 = vrot.lane.b32.xlu0 %v1223, 64
        %v3277 = vpop.permute.xlu0 %3276
        %3278 = vrot.lane.b32.xlu0 %v1228, 64
        %v3279 = vpop.permute.xlu0 %3278
        %3280 = vrot.lane.b32.xlu0 %v1233, 64
        %v3281 = vpop.permute.xlu0 %3280
        %v3298 = vmul.f32 %v3156, %v3251
        %v3299 = vmul.f32 %v3161, %v3253
        %v3300 = vmul.f32 %v3166, %v3255
        %v3301 = vmul.f32 %v3171, %v3257
        %v3302 = vmul.f32 %v3176, %v3259
        %v3303 = vmul.f32 %v3181, %v3261
        %v3304 = vmul.f32 %v3186, %v3263
        %v3305 = vmul.f32 %v3191, %v3265
        %v3306 = vmul.f32 %v3196, %v3267
        %v3307 = vmul.f32 %v3201, %v3269
        %v3308 = vmul.f32 %v3206, %v3271
        %v3309 = vmul.f32 %v3211, %v3273
        %v3310 = vmul.f32 %v3216, %v3275
        %v3311 = vmul.f32 %v3221, %v3277
        %v3312 = vmul.f32 %v3226, %v3279
        %v3313 = vmul.f32 %v3231, %v3281
        %3330 = vrot.lane.b32.xlu0 %v1326, 64
        %v3331 = vpop.permute.xlu0 %3330
        %3332 = vrot.lane.b32.xlu0 %v1331, 64
        %v3333 = vpop.permute.xlu0 %3332
        %3334 = vrot.lane.b32.xlu0 %v1336, 64
        %v3335 = vpop.permute.xlu0 %3334
        %3336 = vrot.lane.b32.xlu0 %v1341, 64
        %v3337 = vpop.permute.xlu0 %3336
        %3338 = vrot.lane.b32.xlu0 %v1346, 64
        %v3339 = vpop.permute.xlu0 %3338
        %3340 = vrot.lane.b32.xlu0 %v1351, 64
        %v3341 = vpop.permute.xlu0 %3340
        %3342 = vrot.lane.b32.xlu0 %v1356, 64
        %v3343 = vpop.permute.xlu0 %3342
        %3344 = vrot.lane.b32.xlu0 %v1361, 64
        %v3345 = vpop.permute.xlu0 %3344
        %3346 = vrot.lane.b32.xlu0 %v1366, 64
        %v3347 = vpop.permute.xlu0 %3346
        %3348 = vrot.lane.b32.xlu0 %v1371, 64
        %v3349 = vpop.permute.xlu0 %3348
        %3350 = vrot.lane.b32.xlu0 %v1376, 64
        %v3351 = vpop.permute.xlu0 %3350
        %3352 = vrot.lane.b32.xlu0 %v1381, 64
        %v3353 = vpop.permute.xlu0 %3352
        %3354 = vrot.lane.b32.xlu0 %v1386, 64
        %v3355 = vpop.permute.xlu0 %3354
        %3356 = vrot.lane.b32.xlu0 %v1391, 64
        %v3357 = vpop.permute.xlu0 %3356
        %3358 = vrot.lane.b32.xlu0 %v1396, 64
        %v3359 = vpop.permute.xlu0 %3358
        %3360 = vrot.lane.b32.xlu0 %v1401, 64
        %v3361 = vpop.permute.xlu0 %3360
        %v3378 = vadd.f32 %v3298, %v3331
        %v3379 = vadd.f32 %v3299, %v3333
        %v3380 = vadd.f32 %v3300, %v3335
        %v3381 = vadd.f32 %v3301, %v3337
        %v3382 = vadd.f32 %v3302, %v3339
        %v3383 = vadd.f32 %v3303, %v3341
        %v3384 = vadd.f32 %v3304, %v3343
        %v3385 = vadd.f32 %v3305, %v3345
        %v3386 = vadd.f32 %v3306, %v3347
        %v3387 = vadd.f32 %v3307, %v3349
        %v3388 = vadd.f32 %v3308, %v3351
        %v3389 = vadd.f32 %v3309, %v3353
        %v3390 = vadd.f32 %v3310, %v3355
        %v3391 = vadd.f32 %v3311, %v3357
        %v3392 = vadd.f32 %v3312, %v3359
        %v3393 = vadd.f32 %v3313, %v3361
        %s3394 = scalar_lea.vmem %s13, 64
        %v3395 = vld [vmem:[%s3394] sm:$0xff]
        %v3396 = vld [vmem:[%s3394 + $0x8] sm:$0xff]
        %v3397 = vld [vmem:[%s3394 + $0x10] sm:$0xff]
        %v3398 = vld [vmem:[%s3394 + $0x18] sm:$0xff]
        %v3399 = vld [vmem:[%s3394 + $0x20] sm:$0xff]
        %v3400 = vld [vmem:[%s3394 + $0x28] sm:$0xff]
        %v3401 = vld [vmem:[%s3394 + $0x30] sm:$0xff]
        %v3402 = vld [vmem:[%s3394 + $0x38] sm:$0xff]
        %s3403 = scalar_lea.vmem [#allocation11], 1
        %v3404 = vld [vmem:[%s3403] sm:$0x1]
        %v3406 = vlaneseq
        %v3407 = vshrl.u32 %v3406, 7
        %v3408 = vsub.s32 0, %v3407
        %v3409 = vrot.slane %v3404, %v3408
        %v3412 = vsel %vm1876, %v3378, 0
        %v3415 = vsel %vm1876, %v3379, 0
        %v3418 = vsel %vm1876, %v3380, 0
        %v3421 = vsel %vm1876, %v3381, 0
        %v3424 = vsel %vm1876, %v3382, 0
        %v3427 = vsel %vm1876, %v3383, 0
        %v3430 = vsel %vm1876, %v3384, 0
        %v3433 = vsel %vm1876, %v3385, 0
        %v3436 = vsel %vm1876, %v3386, 0
        %v3439 = vsel %vm1876, %v3387, 0
        %v3442 = vsel %vm1876, %v3388, 0
        %v3445 = vsel %vm1876, %v3389, 0
        %v3448 = vsel %vm1876, %v3390, 0
        %v3451 = vsel %vm1876, %v3391, 0
        %v3454 = vsel %vm1876, %v3392, 0
        %v3457 = vsel %vm1876, %v3393, 0
        %3459 = vmatprep.subr.mxu0 0.0
        %3460 = vmatpush1.msra.mxu0 %v3395
        %3461 = vmatprep.subr.mxu0 0.0
        %3462 = vmatpush1.msra.mxu0 %v3396
        %3463 = vmatprep.subr.mxu0 0.0
        %3464 = vmatpush1.msra.mxu0 %v3397
        %3465 = vmatprep.subr.mxu0 0.0
        %3466 = vmatpush1.msra.mxu0 %v3398
        %3467 = vmatprep.subr.mxu0 0.0
        %3468 = vmatpush1.msra.mxu0 %v3399
        %3469 = vmatprep.subr.mxu0 0.0
        %3470 = vmatpush1.msra.mxu0 %v3400
        %3471 = vmatprep.subr.mxu0 0.0
        %3472 = vmatpush1.msra.mxu0 %v3401
        %3473 = vmatprep.subr.mxu0 0.0
        %3474 = vmatpush1.msra.mxu0 %v3402
        %3475 = vmatprep.subr.mxu0 0.0
        %3476 = vmatpush1.msra.mxu0 0.0
        %3477 = vmatprep.subr.mxu0 0.0
        %3478 = vmatpush1.msra.mxu0 0.0
        %3479 = vmatprep.subr.mxu0 0.0
        %3480 = vmatpush1.msra.mxu0 0.0
        %3481 = vmatprep.subr.mxu0 0.0
        %3482 = vmatpush1.msra.mxu0 0.0
        %3483 = vmatprep.subr.mxu0 0.0
        %3484 = vmatpush1.msra.mxu0 0.0
        %3485 = vmatprep.subr.mxu0 0.0
        %3486 = vmatpush1.msra.mxu0 0.0
        %3487 = vmatprep.subr.mxu0 0.0
        %3488 = vmatpush1.msra.mxu0 0.0
        %3489 = vmatprep.subr.mxu0 0.0
        %3490 = vmatpush1.msra.mxu0 0.0
        %3491 = vmatprep.subr.mxu0 0.0
        %3492 = vmatpush1.msra.mxu0 0.0
        %3493 = vmatprep.subr.mxu0 0.0
        %3494 = vmatpush1.msra.mxu0 0.0
        %3495 = vmatprep.subr.mxu0 0.0
        %3496 = vmatpush1.msra.mxu0 0.0
        %3497 = vmatprep.subr.mxu0 0.0
        %3498 = vmatpush1.msra.mxu0 0.0
        %3499 = vmatprep.subr.mxu0 0.0
        %3500 = vmatpush1.msra.mxu0 0.0
        %3501 = vmatprep.subr.mxu0 0.0
        %3502 = vmatpush1.msra.mxu0 0.0
        %3503 = vmatprep.subr.mxu0 0.0
        %3504 = vmatpush1.msra.mxu0 0.0
        %3505 = vmatprep.subr.mxu0 0.0
        %3506 = vmatpush1.msra.mxu0 0.0
        %3507 = vmatprep.subr.mxu0 0.0
        %3508 = vmatpush1.msra.mxu0 0.0
        %3509 = vmatprep.subr.mxu0 0.0
        %3510 = vmatpush1.msra.mxu0 0.0
        %3511 = vmatprep.subr.mxu0 0.0
        %3512 = vmatpush1.msra.mxu0 0.0
        %3513 = vmatprep.subr.mxu0 0.0
        %3514 = vmatpush1.msra.mxu0 0.0
        %3515 = vmatprep.subr.mxu0 0.0
        %3516 = vmatpush1.msra.mxu0 0.0
        %3517 = vmatprep.subr.mxu0 0.0
        %3518 = vmatpush1.msra.mxu0 0.0
        %3519 = vmatprep.subr.mxu0 0.0
        %3520 = vmatpush1.msra.mxu0 0.0
        %3521 = vmatprep.subr.mxu0 0.0
        %3522 = vmatpush1.msra.mxu0 0.0
        %3523 = vmatprep.mubr.f32.mxu0 0.0
        %3524 = vmatmul.mubr.f32.gmra.mrb[0].mxu0 %v3412
        %v3525 = vpop.f32.mrb[0].mxu0
        %v3526 = vadd.f32 %v3409, %v3525
        %v3527 = vpop.f32.mrb[0].mxu0
        %3528 = vmatprep.mubr.f32.mxu0 0.0
        %3529 = vmatmul.mubr.f32.gmra.mrb[0].mxu0 %v3415
        %v3530 = vpop.f32.mrb[0].mxu0
        %v3531 = vadd.f32 %v3409, %v3530
        %v3532 = vpop.f32.mrb[0].mxu0
        %3533 = vmatprep.mubr.f32.mxu0 0.0
        %3534 = vmatmul.mubr.f32.gmra.mrb[0].mxu0 %v3418
        %v3535 = vpop.f32.mrb[0].mxu0
        %v3536 = vadd.f32 %v3409, %v3535
        %v3537 = vpop.f32.mrb[0].mxu0
        %3538 = vmatprep.mubr.f32.mxu0 0.0
        %3539 = vmatmul.mubr.f32.gmra.mrb[0].mxu0 %v3421
        %v3540 = vpop.f32.mrb[0].mxu0
        %v3541 = vadd.f32 %v3409, %v3540
        %v3542 = vpop.f32.mrb[0].mxu0
        %3543 = vmatprep.mubr.f32.mxu0 0.0
        %3544 = vmatmul.mubr.f32.gmra.mrb[0].mxu0 %v3424
        %v3545 = vpop.f32.mrb[0].mxu0
        %v3546 = vadd.f32 %v3409, %v3545
        %v3547 = vpop.f32.mrb[0].mxu0
        %3548 = vmatprep.mubr.f32.mxu0 0.0
        %3549 = vmatmul.mubr.f32.gmra.mrb[0].mxu0 %v3427
        %v3550 = vpop.f32.mrb[0].mxu0
        %v3551 = vadd.f32 %v3409, %v3550
        %v3552 = vpop.f32.mrb[0].mxu0
        %3553 = vmatprep.mubr.f32.mxu0 0.0
        %3554 = vmatmul.mubr.f32.gmra.mrb[0].mxu0 %v3430
        %v3555 = vpop.f32.mrb[0].mxu0
        %v3556 = vadd.f32 %v3409, %v3555
        %v3557 = vpop.f32.mrb[0].mxu0
        %3558 = vmatprep.mubr.f32.mxu0 0.0
        %3559 = vmatmul.mubr.f32.gmra.mrb[0].mxu0 %v3433
        %v3560 = vpop.f32.mrb[0].mxu0
        %v3561 = vadd.f32 %v3409, %v3560
        %v3562 = vpop.f32.mrb[0].mxu0
        %3563 = vmatprep.mubr.f32.mxu0 0.0
        %3564 = vmatmul.mubr.f32.gmra.mrb[0].mxu0 %v3436
        %v3565 = vpop.f32.mrb[0].mxu0
        %v3566 = vadd.f32 %v3409, %v3565
        %v3567 = vpop.f32.mrb[0].mxu0
        %3568 = vmatprep.mubr.f32.mxu0 0.0
        %3569 = vmatmul.mubr.f32.gmra.mrb[0].mxu0 %v3439
        %v3570 = vpop.f32.mrb[0].mxu0
        %v3571 = vadd.f32 %v3409, %v3570
        %v3572 = vpop.f32.mrb[0].mxu0
        %3573 = vmatprep.mubr.f32.mxu0 0.0
        %3574 = vmatmul.mubr.f32.gmra.mrb[0].mxu0 %v3442
        %v3575 = vpop.f32.mrb[0].mxu0
        %v3576 = vadd.f32 %v3409, %v3575
        %v3577 = vpop.f32.mrb[0].mxu0
        %3578 = vmatprep.mubr.f32.mxu0 0.0
        %3579 = vmatmul.mubr.f32.gmra.mrb[0].mxu0 %v3445
        %v3580 = vpop.f32.mrb[0].mxu0
        %v3581 = vadd.f32 %v3409, %v3580
        %v3582 = vpop.f32.mrb[0].mxu0
        %3583 = vmatprep.mubr.f32.mxu0 0.0
        %3584 = vmatmul.mubr.f32.gmra.mrb[0].mxu0 %v3448
        %v3585 = vpop.f32.mrb[0].mxu0
        %v3586 = vadd.f32 %v3409, %v3585
        %v3587 = vpop.f32.mrb[0].mxu0
        %3588 = vmatprep.mubr.f32.mxu0 0.0
        %3589 = vmatmul.mubr.f32.gmra.mrb[0].mxu0 %v3451
        %v3590 = vpop.f32.mrb[0].mxu0
        %v3591 = vadd.f32 %v3409, %v3590
        %v3592 = vpop.f32.mrb[0].mxu0
        %3593 = vmatprep.mubr.f32.mxu0 0.0
        %3594 = vmatmul.mubr.f32.gmra.mrb[0].mxu0 %v3454
        %v3595 = vpop.f32.mrb[0].mxu0
        %v3596 = vadd.f32 %v3409, %v3595
        %v3597 = vpop.f32.mrb[0].mxu0
        %3598 = vmatprep.mubr.f32.mxu0 0.0
        %3599 = vmatmul.mubr.f32.gmra.mrb[0].mxu0 %v3457
        %v3600 = vpop.f32.mrb[0].mxu0
        %v3601 = vadd.f32 %v3409, %v3600
        %v3602 = vpop.f32.mrb[0].mxu0
        %3603 = vdwg.mxu0
        %v3604 = vmax.f32 %v3526, 0.0
        %v3605 = vmax.f32 %v3531, 0.0
        %v3606 = vmax.f32 %v3536, 0.0
        %v3607 = vmax.f32 %v3541, 0.0
        %v3608 = vmax.f32 %v3546, 0.0
        %v3609 = vmax.f32 %v3551, 0.0
        %v3610 = vmax.f32 %v3556, 0.0
        %v3611 = vmax.f32 %v3561, 0.0
        %v3612 = vmax.f32 %v3566, 0.0
        %v3613 = vmax.f32 %v3571, 0.0
        %v3614 = vmax.f32 %v3576, 0.0
        %v3615 = vmax.f32 %v3581, 0.0
        %v3616 = vmax.f32 %v3586, 0.0
        %v3617 = vmax.f32 %v3591, 0.0
        %v3618 = vmax.f32 %v3596, 0.0
        %v3619 = vmax.f32 %v3601, 0.0
        %s3620 = scalar_lea.vmem %s15, 32
        %v3621 = vld [vmem:[%s3620] sm:$0xff]
        %v3622 = vld [vmem:[%s3620 + $0x8] sm:$0xff]
        %v3623 = vld [vmem:[%s3620 + $0x10] sm:$0xff]
        %v3624 = vld [vmem:[%s3620 + $0x18] sm:$0xff]
        %s3625 = scalar_lea.vmem %s16, 1
        %v3626 = vld [vmem:[%s3625] sm:$0x1]
        %v3628 = vlaneseq
        %v3629 = vshrl.u32 %v3628, 7
        %v3630 = vsub.s32 0, %v3629
        %v3631 = vrot.slane %v3626, %v3630
        %v3634 = vsel %vm1415, %v3604, 0
        %v3637 = vsel %vm1415, %v3605, 0
        %v3640 = vsel %vm1415, %v3606, 0
        %v3643 = vsel %vm1415, %v3607, 0
        %v3646 = vsel %vm1415, %v3608, 0
        %v3649 = vsel %vm1415, %v3609, 0
        %v3652 = vsel %vm1415, %v3610, 0
        %v3655 = vsel %vm1415, %v3611, 0
        %v3658 = vsel %vm1415, %v3612, 0
        %v3661 = vsel %vm1415, %v3613, 0
        %v3664 = vsel %vm1415, %v3614, 0
        %v3667 = vsel %vm1415, %v3615, 0
        %v3670 = vsel %vm1415, %v3616, 0
        %v3673 = vsel %vm1415, %v3617, 0
        %v3676 = vsel %vm1415, %v3618, 0
        %v3679 = vsel %vm1415, %v3619, 0
        %3681 = vmatprep.subr.mxu0 0.0
        %3682 = vmatpush1.msra.mxu0 %v3621
        %3683 = vmatprep.subr.mxu0 0.0
        %3684 = vmatpush1.msra.mxu0 %v3622
        %3685 = vmatprep.subr.mxu0 0.0
        %3686 = vmatpush1.msra.mxu0 %v3623
        %3687 = vmatprep.subr.mxu0 0.0
        %3688 = vmatpush1.msra.mxu0 %v3624
        %3689 = vmatprep.subr.mxu0 0.0
        %3690 = vmatpush1.msra.mxu0 0.0
        %3691 = vmatprep.subr.mxu0 0.0
        %3692 = vmatpush1.msra.mxu0 0.0
        %3693 = vmatprep.subr.mxu0 0.0
        %3694 = vmatpush1.msra.mxu0 0.0
        %3695 = vmatprep.subr.mxu0 0.0
        %3696 = vmatpush1.msra.mxu0 0.0
        %3697 = vmatprep.subr.mxu0 0.0
        %3698 = vmatpush1.msra.mxu0 0.0
        %3699 = vmatprep.subr.mxu0 0.0
        %3700 = vmatpush1.msra.mxu0 0.0
        %3701 = vmatprep.subr.mxu0 0.0
        %3702 = vmatpush1.msra.mxu0 0.0
        %3703 = vmatprep.subr.mxu0 0.0
        %3704 = vmatpush1.msra.mxu0 0.0
        %3705 = vmatprep.subr.mxu0 0.0
        %3706 = vmatpush1.msra.mxu0 0.0
        %3707 = vmatprep.subr.mxu0 0.0
        %3708 = vmatpush1.msra.mxu0 0.0
        %3709 = vmatprep.subr.mxu0 0.0
        %3710 = vmatpush1.msra.mxu0 0.0
        %3711 = vmatprep.subr.mxu0 0.0
        %3712 = vmatpush1.msra.mxu0 0.0
        %3713 = vmatprep.subr.mxu0 0.0
        %3714 = vmatpush1.msra.mxu0 0.0
        %3715 = vmatprep.subr.mxu0 0.0
        %3716 = vmatpush1.msra.mxu0 0.0
        %3717 = vmatprep.subr.mxu0 0.0
        %3718 = vmatpush1.msra.mxu0 0.0
        %3719 = vmatprep.subr.mxu0 0.0
        %3720 = vmatpush1.msra.mxu0 0.0
        %3721 = vmatprep.subr.mxu0 0.0
        %3722 = vmatpush1.msra.mxu0 0.0
        %3723 = vmatprep.subr.mxu0 0.0
        %3724 = vmatpush1.msra.mxu0 0.0
        %3725 = vmatprep.subr.mxu0 0.0
        %3726 = vmatpush1.msra.mxu0 0.0
        %3727 = vmatprep.subr.mxu0 0.0
        %3728 = vmatpush1.msra.mxu0 0.0
        %3729 = vmatprep.subr.mxu0 0.0
        %3730 = vmatpush1.msra.mxu0 0.0
        %3731 = vmatprep.subr.mxu0 0.0
        %3732 = vmatpush1.msra.mxu0 0.0
        %3733 = vmatprep.subr.mxu0 0.0
        %3734 = vmatpush1.msra.mxu0 0.0
        %3735 = vmatprep.subr.mxu0 0.0
        %3736 = vmatpush1.msra.mxu0 0.0
        %3737 = vmatprep.subr.mxu0 0.0
        %3738 = vmatpush1.msra.mxu0 0.0
        %3739 = vmatprep.subr.mxu0 0.0
        %3740 = vmatpush1.msra.mxu0 0.0
        %3741 = vmatprep.subr.mxu0 0.0
        %3742 = vmatpush1.msra.mxu0 0.0
        %3743 = vmatprep.subr.mxu0 0.0
        %3744 = vmatpush1.msra.mxu0 0.0
        %3745 = vmatprep.mubr.f32.mxu0 0.0
        %3746 = vmatmul.mubr.f32.gmra.mrb[0].mxu0 %v3634
        %v3747 = vpop.f32.mrb[0].mxu0
        %v3748 = vadd.f32 %v3631, %v3747
        %v3749 = vpop.f32.mrb[0].mxu0
        %3750 = vmatprep.mubr.f32.mxu0 0.0
        %3751 = vmatmul.mubr.f32.gmra.mrb[0].mxu0 %v3637
        %v3752 = vpop.f32.mrb[0].mxu0
        %v3753 = vadd.f32 %v3631, %v3752
        %v3754 = vpop.f32.mrb[0].mxu0
        %3755 = vmatprep.mubr.f32.mxu0 0.0
        %3756 = vmatmul.mubr.f32.gmra.mrb[0].mxu0 %v3640
        %v3757 = vpop.f32.mrb[0].mxu0
        %v3758 = vadd.f32 %v3631, %v3757
        %v3759 = vpop.f32.mrb[0].mxu0
        %3760 = vmatprep.mubr.f32.mxu0 0.0
        %3761 = vmatmul.mubr.f32.gmra.mrb[0].mxu0 %v3643
        %v3762 = vpop.f32.mrb[0].mxu0
        %v3763 = vadd.f32 %v3631, %v3762
        %v3764 = vpop.f32.mrb[0].mxu0
        %3765 = vmatprep.mubr.f32.mxu0 0.0
        %3766 = vmatmul.mubr.f32.gmra.mrb[0].mxu0 %v3646
        %v3767 = vpop.f32.mrb[0].mxu0
        %v3768 = vadd.f32 %v3631, %v3767
        %v3769 = vpop.f32.mrb[0].mxu0
        %3770 = vmatprep.mubr.f32.mxu0 0.0
        %3771 = vmatmul.mubr.f32.gmra.mrb[0].mxu0 %v3649
        %v3772 = vpop.f32.mrb[0].mxu0
        %v3773 = vadd.f32 %v3631, %v3772
        %v3774 = vpop.f32.mrb[0].mxu0
        %3775 = vmatprep.mubr.f32.mxu0 0.0
        %3776 = vmatmul.mubr.f32.gmra.mrb[0].mxu0 %v3652
        %v3777 = vpop.f32.mrb[0].mxu0
        %v3778 = vadd.f32 %v3631, %v3777
        %v3779 = vpop.f32.mrb[0].mxu0
        %3780 = vmatprep.mubr.f32.mxu0 0.0
        %3781 = vmatmul.mubr.f32.gmra.mrb[0].mxu0 %v3655
        %v3782 = vpop.f32.mrb[0].mxu0
        %v3783 = vadd.f32 %v3631, %v3782
        %v3784 = vpop.f32.mrb[0].mxu0
        %3785 = vmatprep.mubr.f32.mxu0 0.0
        %3786 = vmatmul.mubr.f32.gmra.mrb[0].mxu0 %v3658
        %v3787 = vpop.f32.mrb[0].mxu0
        %v3788 = vadd.f32 %v3631, %v3787
        %v3789 = vpop.f32.mrb[0].mxu0
        %3790 = vmatprep.mubr.f32.mxu0 0.0
        %3791 = vmatmul.mubr.f32.gmra.mrb[0].mxu0 %v3661
        %v3792 = vpop.f32.mrb[0].mxu0
        %v3793 = vadd.f32 %v3631, %v3792
        %v3794 = vpop.f32.mrb[0].mxu0
        %3795 = vmatprep.mubr.f32.mxu0 0.0
        %3796 = vmatmul.mubr.f32.gmra.mrb[0].mxu0 %v3664
        %v3797 = vpop.f32.mrb[0].mxu0
        %v3798 = vadd.f32 %v3631, %v3797
        %v3799 = vpop.f32.mrb[0].mxu0
        %3800 = vmatprep.mubr.f32.mxu0 0.0
        %3801 = vmatmul.mubr.f32.gmra.mrb[0].mxu0 %v3667
        %v3802 = vpop.f32.mrb[0].mxu0
        %v3803 = vadd.f32 %v3631, %v3802
        %v3804 = vpop.f32.mrb[0].mxu0
        %3805 = vmatprep.mubr.f32.mxu0 0.0
        %3806 = vmatmul.mubr.f32.gmra.mrb[0].mxu0 %v3670
        %v3807 = vpop.f32.mrb[0].mxu0
        %v3808 = vadd.f32 %v3631, %v3807
        %v3809 = vpop.f32.mrb[0].mxu0
        %3810 = vmatprep.mubr.f32.mxu0 0.0
        %3811 = vmatmul.mubr.f32.gmra.mrb[0].mxu0 %v3673
        %v3812 = vpop.f32.mrb[0].mxu0
        %v3813 = vadd.f32 %v3631, %v3812
        %v3814 = vpop.f32.mrb[0].mxu0
        %3815 = vmatprep.mubr.f32.mxu0 0.0
        %3816 = vmatmul.mubr.f32.gmra.mrb[0].mxu0 %v3676
        %v3817 = vpop.f32.mrb[0].mxu0
        %v3818 = vadd.f32 %v3631, %v3817
        %v3819 = vpop.f32.mrb[0].mxu0
        %3820 = vmatprep.mubr.f32.mxu0 0.0
        %3821 = vmatmul.mubr.f32.gmra.mrb[0].mxu0 %v3679
        %v3822 = vpop.f32.mrb[0].mxu0
        %v3823 = vadd.f32 %v3631, %v3822
        %v3824 = vpop.f32.mrb[0].mxu0
        %3825 = vdwg.mxu0
        %v3826 = vsel %vm1415, %v3748, -inf
        %v3827 = vsel %vm1415, %v3753, -inf
        %v3828 = vmax.f32 %v3826, %v3827
        %v3829 = vrot.slane %v3828, 4
        %v3830 = vmax.f32 %v3828, %v3829
        %v3831 = vrot.slane %v3830, 2
        %v3832 = vmax.f32 %v3830, %v3831
        %v3833 = vrot.slane %v3832, 1
        %v3834 = vmax.f32 %v3832, %v3833
        %v3835 = vsel %vm1415, %v3758, -inf
        %v3836 = vsel %vm1415, %v3763, -inf
        %v3837 = vmax.f32 %v3835, %v3836
        %v3838 = vrot.slane %v3837, 4
        %v3839 = vmax.f32 %v3837, %v3838
        %v3840 = vrot.slane %v3839, 2
        %v3841 = vmax.f32 %v3839, %v3840
        %v3842 = vrot.slane %v3841, 1
        %v3843 = vmax.f32 %v3841, %v3842
        %v3844 = vsel %vm1415, %v3768, -inf
        %v3845 = vsel %vm1415, %v3773, -inf
        %v3846 = vmax.f32 %v3844, %v3845
        %v3847 = vrot.slane %v3846, 4
        %v3848 = vmax.f32 %v3846, %v3847
        %v3849 = vrot.slane %v3848, 2
        %v3850 = vmax.f32 %v3848, %v3849
        %v3851 = vrot.slane %v3850, 1
        %v3852 = vmax.f32 %v3850, %v3851
        %v3853 = vsel %vm1415, %v3778, -inf
        %v3854 = vsel %vm1415, %v3783, -inf
        %v3855 = vmax.f32 %v3853, %v3854
        %v3856 = vrot.slane %v3855, 4
        %v3857 = vmax.f32 %v3855, %v3856
        %v3858 = vrot.slane %v3857, 2
        %v3859 = vmax.f32 %v3857, %v3858
        %v3860 = vrot.slane %v3859, 1
        %v3861 = vmax.f32 %v3859, %v3860
        %v3862 = vsel %vm1415, %v3788, -inf
        %v3863 = vsel %vm1415, %v3793, -inf
        %v3864 = vmax.f32 %v3862, %v3863
        %v3865 = vrot.slane %v3864, 4
        %v3866 = vmax.f32 %v3864, %v3865
        %v3867 = vrot.slane %v3866, 2
        %v3868 = vmax.f32 %v3866, %v3867
        %v3869 = vrot.slane %v3868, 1
        %v3870 = vmax.f32 %v3868, %v3869
        %v3871 = vsel %vm1415, %v3798, -inf
        %v3872 = vsel %vm1415, %v3803, -inf
        %v3873 = vmax.f32 %v3871, %v3872
        %v3874 = vrot.slane %v3873, 4
        %v3875 = vmax.f32 %v3873, %v3874
        %v3876 = vrot.slane %v3875, 2
        %v3877 = vmax.f32 %v3875, %v3876
        %v3878 = vrot.slane %v3877, 1
        %v3879 = vmax.f32 %v3877, %v3878
        %v3880 = vsel %vm1415, %v3808, -inf
        %v3881 = vsel %vm1415, %v3813, -inf
        %v3882 = vmax.f32 %v3880, %v3881
        %v3883 = vrot.slane %v3882, 4
        %v3884 = vmax.f32 %v3882, %v3883
        %v3885 = vrot.slane %v3884, 2
        %v3886 = vmax.f32 %v3884, %v3885
        %v3887 = vrot.slane %v3886, 1
        %v3888 = vmax.f32 %v3886, %v3887
        %v3889 = vsel %vm1415, %v3818, -inf
        %v3890 = vsel %vm1415, %v3823, -inf
        %v3891 = vmax.f32 %v3889, %v3890
        %v3892 = vrot.slane %v3891, 4
        %v3893 = vmax.f32 %v3891, %v3892
        %v3894 = vrot.slane %v3893, 2
        %v3895 = vmax.f32 %v3893, %v3894
        %v3896 = vrot.slane %v3895, 1
        %v3897 = vmax.f32 %v3895, %v3896
        %v3898 = vsub.f32 %v3748, %v3834
        %v3899 = vsub.f32 %v3753, %v3834
        %v3900 = vsub.f32 %v3758, %v3843
        %v3901 = vsub.f32 %v3763, %v3843
        %v3902 = vsub.f32 %v3768, %v3852
        %v3903 = vsub.f32 %v3773, %v3852
        %v3904 = vsub.f32 %v3778, %v3861
        %v3905 = vsub.f32 %v3783, %v3861
        %v3906 = vsub.f32 %v3788, %v3870
        %v3907 = vsub.f32 %v3793, %v3870
        %v3908 = vsub.f32 %v3798, %v3879
        %v3909 = vsub.f32 %v3803, %v3879
        %v3910 = vsub.f32 %v3808, %v3888
        %v3911 = vsub.f32 %v3813, %v3888
        %v3912 = vsub.f32 %v3818, %v3897
        %v3913 = vsub.f32 %v3823, %v3897
        %v3914 = vmul.f32 %v3898, 1.442695
        %v3915 = vpow.pop %v3914
        %v3916 = vmul.f32 %v3899, 1.442695
        %v3917 = vpow.pop %v3916
        %v3918 = vmul.f32 %v3900, 1.442695
        %v3919 = vpow.pop %v3918
        %v3920 = vmul.f32 %v3901, 1.442695
        %v3921 = vpow.pop %v3920
        %v3922 = vmul.f32 %v3902, 1.442695
        %v3923 = vpow.pop %v3922
        %v3924 = vmul.f32 %v3903, 1.442695
        %v3925 = vpow.pop %v3924
        %v3926 = vmul.f32 %v3904, 1.442695
        %v3927 = vpow.pop %v3926
        %v3928 = vmul.f32 %v3905, 1.442695
        %v3929 = vpow.pop %v3928
        %v3930 = vmul.f32 %v3906, 1.442695
        %v3931 = vpow.pop %v3930
        %v3932 = vmul.f32 %v3907, 1.442695
        %v3933 = vpow.pop %v3932
        %v3934 = vmul.f32 %v3908, 1.442695
        %v3935 = vpow.pop %v3934
        %v3936 = vmul.f32 %v3909, 1.442695
        %v3937 = vpow.pop %v3936
        %v3938 = vmul.f32 %v3910, 1.442695
        %v3939 = vpow.pop %v3938
        %v3940 = vmul.f32 %v3911, 1.442695
        %v3941 = vpow.pop %v3940
        %v3942 = vmul.f32 %v3912, 1.442695
        %v3943 = vpow.pop %v3942
        %v3944 = vmul.f32 %v3913, 1.442695
        %v3945 = vpow.pop %v3944
        %v3946 = vsel %vm1415, %v3915, 0.0
        %v3947 = vsel %vm1415, %v3917, 0.0
        %v3948 = vadd.f32 %v3946, %v3947
        %v3949 = vrot.slane %v3948, 4
        %v3950 = vadd.f32 %v3948, %v3949
        %v3951 = vrot.slane %v3950, 2
        %v3952 = vadd.f32 %v3950, %v3951
        %v3953 = vrot.slane %v3952, 1
        %v3954 = vadd.f32 %v3952, %v3953
        %v3955 = vsel %vm1415, %v3919, 0.0
        %v3956 = vsel %vm1415, %v3921, 0.0
        %v3957 = vadd.f32 %v3955, %v3956
        %v3958 = vrot.slane %v3957, 4
        %v3959 = vadd.f32 %v3957, %v3958
        %v3960 = vrot.slane %v3959, 2
        %v3961 = vadd.f32 %v3959, %v3960
        %v3962 = vrot.slane %v3961, 1
        %v3963 = vadd.f32 %v3961, %v3962
        %v3964 = vsel %vm1415, %v3923, 0.0
        %v3965 = vsel %vm1415, %v3925, 0.0
        %v3966 = vadd.f32 %v3964, %v3965
        %v3967 = vrot.slane %v3966, 4
        %v3968 = vadd.f32 %v3966, %v3967
        %v3969 = vrot.slane %v3968, 2
        %v3970 = vadd.f32 %v3968, %v3969
        %v3971 = vrot.slane %v3970, 1
        %v3972 = vadd.f32 %v3970, %v3971
        %v3973 = vsel %vm1415, %v3927, 0.0
        %v3974 = vsel %vm1415, %v3929, 0.0
        %v3975 = vadd.f32 %v3973, %v3974
        %v3976 = vrot.slane %v3975, 4
        %v3977 = vadd.f32 %v3975, %v3976
        %v3978 = vrot.slane %v3977, 2
        %v3979 = vadd.f32 %v3977, %v3978
        %v3980 = vrot.slane %v3979, 1
        %v3981 = vadd.f32 %v3979, %v3980
        %v3982 = vsel %vm1415, %v3931, 0.0
        %v3983 = vsel %vm1415, %v3933, 0.0
        %v3984 = vadd.f32 %v3982, %v3983
        %v3985 = vrot.slane %v3984, 4
        %v3986 = vadd.f32 %v3984, %v3985
        %v3987 = vrot.slane %v3986, 2
        %v3988 = vadd.f32 %v3986, %v3987
        %v3989 = vrot.slane %v3988, 1
        %v3990 = vadd.f32 %v3988, %v3989
        %v3991 = vsel %vm1415, %v3935, 0.0
        %v3992 = vsel %vm1415, %v3937, 0.0
        %v3993 = vadd.f32 %v3991, %v3992
        %v3994 = vrot.slane %v3993, 4
        %v3995 = vadd.f32 %v3993, %v3994
        %v3996 = vrot.slane %v3995, 2
        %v3997 = vadd.f32 %v3995, %v3996
        %v3998 = vrot.slane %v3997, 1
        %v3999 = vadd.f32 %v3997, %v3998
        %v4000 = vsel %vm1415, %v3939, 0.0
        %v4001 = vsel %vm1415, %v3941, 0.0
        %v4002 = vadd.f32 %v4000, %v4001
        %v4003 = vrot.slane %v4002, 4
        %v4004 = vadd.f32 %v4002, %v4003
        %v4005 = vrot.slane %v4004, 2
        %v4006 = vadd.f32 %v4004, %v4005
        %v4007 = vrot.slane %v4006, 1
        %v4008 = vadd.f32 %v4006, %v4007
        %v4009 = vsel %vm1415, %v3943, 0.0
        %v4010 = vsel %vm1415, %v3945, 0.0
        %v4011 = vadd.f32 %v4009, %v4010
        %v4012 = vrot.slane %v4011, 4
        %v4013 = vadd.f32 %v4011, %v4012
        %v4014 = vrot.slane %v4013, 2
        %v4015 = vadd.f32 %v4013, %v4014
        %v4016 = vrot.slane %v4015, 1
        %v4017 = vadd.f32 %v4015, %v4016
        %v4018 = vrcp.pop %v3954
        %v4019 = vmul.f32 %v3915, %v4018
        %v4020 = vmul.f32 %v3917, %v4018
        %v4021 = vrcp.pop %v3963
        %v4022 = vmul.f32 %v3919, %v4021
        %v4023 = vmul.f32 %v3921, %v4021
        %v4024 = vrcp.pop %v3972
        %v4025 = vmul.f32 %v3923, %v4024
        %v4026 = vmul.f32 %v3925, %v4024
        %v4027 = vrcp.pop %v3981
        %v4028 = vmul.f32 %v3927, %v4027
        %v4029 = vmul.f32 %v3929, %v4027
        %v4030 = vrcp.pop %v3990
        %v4031 = vmul.f32 %v3931, %v4030
        %v4032 = vmul.f32 %v3933, %v4030
        %v4033 = vrcp.pop %v3999
        %v4034 = vmul.f32 %v3935, %v4033
        %v4035 = vmul.f32 %v3937, %v4033
        %v4036 = vrcp.pop %v4008
        %v4037 = vmul.f32 %v3939, %v4036
        %v4038 = vmul.f32 %v3941, %v4036
        %v4039 = vrcp.pop %v4017
        %v4040 = vmul.f32 %v3943, %v4039
        %v4041 = vmul.f32 %v3945, %v4039
        %4042 = vrot.lane.b32.xlu0 %v3378, 96
        %v4043 = vpop.permute.xlu0 %4042
        %4044 = vrot.lane.b32.xlu0 %v3379, 96
        %v4045 = vpop.permute.xlu0 %4044
        %4046 = vrot.lane.b32.xlu0 %v3380, 96
        %v4047 = vpop.permute.xlu0 %4046
        %4048 = vrot.lane.b32.xlu0 %v3381, 96
        %v4049 = vpop.permute.xlu0 %4048
        %4050 = vrot.lane.b32.xlu0 %v3382, 96
        %v4051 = vpop.permute.xlu0 %4050
        %4052 = vrot.lane.b32.xlu0 %v3383, 96
        %v4053 = vpop.permute.xlu0 %4052
        %4054 = vrot.lane.b32.xlu0 %v3384, 96
        %v4055 = vpop.permute.xlu0 %4054
        %4056 = vrot.lane.b32.xlu0 %v3385, 96
        %v4057 = vpop.permute.xlu0 %4056
        %4058 = vrot.lane.b32.xlu0 %v3386, 96
        %v4059 = vpop.permute.xlu0 %4058
        %4060 = vrot.lane.b32.xlu0 %v3387, 96
        %v4061 = vpop.permute.xlu0 %4060
        %4062 = vrot.lane.b32.xlu0 %v3388, 96
        %v4063 = vpop.permute.xlu0 %4062
        %4064 = vrot.lane.b32.xlu0 %v3389, 96
        %v4065 = vpop.permute.xlu0 %4064
        %4066 = vrot.lane.b32.xlu0 %v3390, 96
        %v4067 = vpop.permute.xlu0 %4066
        %4068 = vrot.lane.b32.xlu0 %v3391, 96
        %v4069 = vpop.permute.xlu0 %4068
        %4070 = vrot.lane.b32.xlu0 %v3392, 96
        %v4071 = vpop.permute.xlu0 %4070
        %4072 = vrot.lane.b32.xlu0 %v3393, 96
        %v4073 = vpop.permute.xlu0 %4072
        %v4090 = vmul.f32 %v4019, %v4043
        %v4091 = vmul.f32 %v4020, %v4045
        %v4092 = vmul.f32 %v4022, %v4047
        %v4093 = vmul.f32 %v4023, %v4049
        %v4094 = vmul.f32 %v4025, %v4051
        %v4095 = vmul.f32 %v4026, %v4053
        %v4096 = vmul.f32 %v4028, %v4055
        %v4097 = vmul.f32 %v4029, %v4057
        %v4098 = vmul.f32 %v4031, %v4059
        %v4099 = vmul.f32 %v4032, %v4061
        %v4100 = vmul.f32 %v4034, %v4063
        %v4101 = vmul.f32 %v4035, %v4065
        %v4102 = vmul.f32 %v4037, %v4067
        %v4103 = vmul.f32 %v4038, %v4069
        %v4104 = vmul.f32 %v4040, %v4071
        %v4105 = vmul.f32 %v4041, %v4073
        %v4106 = vmax.f32 %v4090, 0.0
        %v4107 = vmax.f32 %v4091, 0.0
        %v4108 = vmax.f32 %v4092, 0.0
        %v4109 = vmax.f32 %v4093, 0.0
        %v4110 = vmax.f32 %v4094, 0.0
        %v4111 = vmax.f32 %v4095, 0.0
        %v4112 = vmax.f32 %v4096, 0.0
        %v4113 = vmax.f32 %v4097, 0.0
        %v4114 = vmax.f32 %v4098, 0.0
        %v4115 = vmax.f32 %v4099, 0.0
        %v4116 = vmax.f32 %v4100, 0.0
        %v4117 = vmax.f32 %v4101, 0.0
        %v4118 = vmax.f32 %v4102, 0.0
        %v4119 = vmax.f32 %v4103, 0.0
        %v4120 = vmax.f32 %v4104, 0.0
        %v4121 = vmax.f32 %v4105, 0.0
        %v4122 = vsel %vm1415, %v4106, 0.0
        %v4123 = vsel %vm1415, %v4107, 0.0
        %v4124 = vadd.f32 %v4122, %v4123
        %v4125 = vrot.slane %v4124, 4
        %v4126 = vadd.f32 %v4124, %v4125
        %v4127 = vrot.slane %v4126, 2
        %v4128 = vadd.f32 %v4126, %v4127
        %v4129 = vrot.slane %v4128, 1
        %v4130 = vadd.f32 %v4128, %v4129
        %v4131 = vsel %vm1415, %v4108, 0.0
        %v4132 = vsel %vm1415, %v4109, 0.0
        %v4133 = vadd.f32 %v4131, %v4132
        %v4134 = vrot.slane %v4133, 4
        %v4135 = vadd.f32 %v4133, %v4134
        %v4136 = vrot.slane %v4135, 2
        %v4137 = vadd.f32 %v4135, %v4136
        %v4138 = vrot.slane %v4137, 1
        %v4139 = vadd.f32 %v4137, %v4138
        %v4140 = vsel %vm1415, %v4110, 0.0
        %v4141 = vsel %vm1415, %v4111, 0.0
        %v4142 = vadd.f32 %v4140, %v4141
        %v4143 = vrot.slane %v4142, 4
        %v4144 = vadd.f32 %v4142, %v4143
        %v4145 = vrot.slane %v4144, 2
        %v4146 = vadd.f32 %v4144, %v4145
        %v4147 = vrot.slane %v4146, 1
        %v4148 = vadd.f32 %v4146, %v4147
        %v4149 = vsel %vm1415, %v4112, 0.0
        %v4150 = vsel %vm1415, %v4113, 0.0
        %v4151 = vadd.f32 %v4149, %v4150
        %v4152 = vrot.slane %v4151, 4
        %v4153 = vadd.f32 %v4151, %v4152
        %v4154 = vrot.slane %v4153, 2
        %v4155 = vadd.f32 %v4153, %v4154
        %v4156 = vrot.slane %v4155, 1
        %v4157 = vadd.f32 %v4155, %v4156
        %v4158 = vsel %vm1415, %v4114, 0.0
        %v4159 = vsel %vm1415, %v4115, 0.0
        %v4160 = vadd.f32 %v4158, %v4159
        %v4161 = vrot.slane %v4160, 4
        %v4162 = vadd.f32 %v4160, %v4161
        %v4163 = vrot.slane %v4162, 2
        %v4164 = vadd.f32 %v4162, %v4163
        %v4165 = vrot.slane %v4164, 1
        %v4166 = vadd.f32 %v4164, %v4165
        %v4167 = vsel %vm1415, %v4116, 0.0
        %v4168 = vsel %vm1415, %v4117, 0.0
        %v4169 = vadd.f32 %v4167, %v4168
        %v4170 = vrot.slane %v4169, 4
        %v4171 = vadd.f32 %v4169, %v4170
        %v4172 = vrot.slane %v4171, 2
        %v4173 = vadd.f32 %v4171, %v4172
        %v4174 = vrot.slane %v4173, 1
        %v4175 = vadd.f32 %v4173, %v4174
        %v4176 = vsel %vm1415, %v4118, 0.0
        %v4177 = vsel %vm1415, %v4119, 0.0
        %v4178 = vadd.f32 %v4176, %v4177
        %v4179 = vrot.slane %v4178, 4
        %v4180 = vadd.f32 %v4178, %v4179
        %v4181 = vrot.slane %v4180, 2
        %v4182 = vadd.f32 %v4180, %v4181
        %v4183 = vrot.slane %v4182, 1
        %v4184 = vadd.f32 %v4182, %v4183
        %v4185 = vsel %vm1415, %v4120, 0.0
        %v4186 = vsel %vm1415, %v4121, 0.0
        %v4187 = vadd.f32 %v4185, %v4186
        %v4188 = vrot.slane %v4187, 4
        %v4189 = vadd.f32 %v4187, %v4188
        %v4190 = vrot.slane %v4189, 2
        %v4191 = vadd.f32 %v4189, %v4190
        %v4192 = vrot.slane %v4191, 1
        %v4193 = vadd.f32 %v4191, %v4192
        %v4194 = vsel %vm1415, %v2790, 0.0
        %v4195 = vsel %vm1415, %v2791, 0.0
        %v4196 = vadd.f32 %v4194, %v4195
        %v4197 = vrot.slane %v4196, 4
        %v4198 = vadd.f32 %v4196, %v4197
        %v4199 = vrot.slane %v4198, 2
        %v4200 = vadd.f32 %v4198, %v4199
        %v4201 = vrot.slane %v4200, 1
        %v4202 = vadd.f32 %v4200, %v4201
        %v4203 = vsel %vm1415, %v2792, 0.0
        %v4204 = vsel %vm1415, %v2793, 0.0
        %v4205 = vadd.f32 %v4203, %v4204
        %v4206 = vrot.slane %v4205, 4
        %v4207 = vadd.f32 %v4205, %v4206
        %v4208 = vrot.slane %v4207, 2
        %v4209 = vadd.f32 %v4207, %v4208
        %v4210 = vrot.slane %v4209, 1
        %v4211 = vadd.f32 %v4209, %v4210
        %v4212 = vsel %vm1415, %v2794, 0.0
        %v4213 = vsel %vm1415, %v2795, 0.0
        %v4214 = vadd.f32 %v4212, %v4213
        %v4215 = vrot.slane %v4214, 4
        %v4216 = vadd.f32 %v4214, %v4215
        %v4217 = vrot.slane %v4216, 2
        %v4218 = vadd.f32 %v4216, %v4217
        %v4219 = vrot.slane %v4218, 1
        %v4220 = vadd.f32 %v4218, %v4219
        %v4221 = vsel %vm1415, %v2796, 0.0
        %v4222 = vsel %vm1415, %v2797, 0.0
        %v4223 = vadd.f32 %v4221, %v4222
        %v4224 = vrot.slane %v4223, 4
        %v4225 = vadd.f32 %v4223, %v4224
        %v4226 = vrot.slane %v4225, 2
        %v4227 = vadd.f32 %v4225, %v4226
        %v4228 = vrot.slane %v4227, 1
        %v4229 = vadd.f32 %v4227, %v4228
        %v4230 = vsel %vm1415, %v2798, 0.0
        %v4231 = vsel %vm1415, %v2799, 0.0
        %v4232 = vadd.f32 %v4230, %v4231
        %v4233 = vrot.slane %v4232, 4
        %v4234 = vadd.f32 %v4232, %v4233
        %v4235 = vrot.slane %v4234, 2
        %v4236 = vadd.f32 %v4234, %v4235
        %v4237 = vrot.slane %v4236, 1
        %v4238 = vadd.f32 %v4236, %v4237
        %v4239 = vsel %vm1415, %v2800, 0.0
        %v4240 = vsel %vm1415, %v2801, 0.0
        %v4241 = vadd.f32 %v4239, %v4240
        %v4242 = vrot.slane %v4241, 4
        %v4243 = vadd.f32 %v4241, %v4242
        %v4244 = vrot.slane %v4243, 2
        %v4245 = vadd.f32 %v4243, %v4244
        %v4246 = vrot.slane %v4245, 1
        %v4247 = vadd.f32 %v4245, %v4246
        %v4248 = vsel %vm1415, %v2802, 0.0
        %v4249 = vsel %vm1415, %v2803, 0.0
        %v4250 = vadd.f32 %v4248, %v4249
        %v4251 = vrot.slane %v4250, 4
        %v4252 = vadd.f32 %v4250, %v4251
        %v4253 = vrot.slane %v4252, 2
        %v4254 = vadd.f32 %v4252, %v4253
        %v4255 = vrot.slane %v4254, 1
        %v4256 = vadd.f32 %v4254, %v4255
        %v4257 = vsel %vm1415, %v2804, 0.0
        %v4258 = vsel %vm1415, %v2805, 0.0
        %v4259 = vadd.f32 %v4257, %v4258
        %v4260 = vrot.slane %v4259, 4
        %v4261 = vadd.f32 %v4259, %v4260
        %v4262 = vrot.slane %v4261, 2
        %v4263 = vadd.f32 %v4261, %v4262
        %v4264 = vrot.slane %v4263, 1
        %v4265 = vadd.f32 %v4263, %v4264
        %s4266 = scalar_lea.vmem %s17, 32
        %v4267 = vld [vmem:[%s4266] sm:$0xff]
        %v4268 = vld [vmem:[%s4266 + $0x8] sm:$0xff]
        %v4269 = vld [vmem:[%s4266 + $0x10] sm:$0xff]
        %v4270 = vld [vmem:[%s4266 + $0x18] sm:$0xff]
        %s4271 = scalar_lea.vmem %s18, 1
        %v4272 = vld [vmem:[%s4271] sm:$0x1]
        %v4273 = vmul.f32 %v4272, 16.0
        %v4275 = vlaneseq
        %v4276 = vshrl.u32 %v4275, 7
        %v4277 = vsub.s32 0, %v4276
        %v4278 = vrot.slane %v4273, %v4277
        %vm4288 = vcmask 1041409
        %v4289 = vsel %vm4288, %v4139, %v4130
        %vm4290 = vcmask 1042434
        %v4291 = vsel %vm4290, %v4148, %v4289
        %vm4292 = vcmask 1043459
        %v4293 = vsel %vm4292, %v4157, %v4291
        %vm4294 = vcmask 1044484
        %v4295 = vsel %vm4294, %v4166, %v4293
        %vm4296 = vcmask 1045509
        %v4297 = vsel %vm4296, %v4175, %v4295
        %vm4298 = vcmask 1046534
        %v4299 = vsel %vm4298, %v4184, %v4297
        %vm4300 = vcmask 1047559
        %v4301 = vsel %vm4300, %v4193, %v4299
        %v4302 = vsel %vm1415, %v4301, 0
        %4304 = vmatprep.subr.mxu0 0.0
        %4305 = vmatpush1.msra.mxu0 %v4267
        %4306 = vmatprep.subr.mxu0 0.0
        %4307 = vmatpush1.msra.mxu0 %v4268
        %4308 = vmatprep.subr.mxu0 0.0
        %4309 = vmatpush1.msra.mxu0 %v4269
        %4310 = vmatprep.subr.mxu0 0.0
        %4311 = vmatpush1.msra.mxu0 %v4270
        %4312 = vmatprep.subr.mxu0 0.0
        %4313 = vmatpush1.msra.mxu0 0.0
        %4314 = vmatprep.subr.mxu0 0.0
        %4315 = vmatpush1.msra.mxu0 0.0
        %4316 = vmatprep.subr.mxu0 0.0
        %4317 = vmatpush1.msra.mxu0 0.0
        %4318 = vmatprep.subr.mxu0 0.0
        %4319 = vmatpush1.msra.mxu0 0.0
        %4320 = vmatprep.subr.mxu0 0.0
        %4321 = vmatpush1.msra.mxu0 0.0
        %4322 = vmatprep.subr.mxu0 0.0
        %4323 = vmatpush1.msra.mxu0 0.0
        %4324 = vmatprep.subr.mxu0 0.0
        %4325 = vmatpush1.msra.mxu0 0.0
        %4326 = vmatprep.subr.mxu0 0.0
        %4327 = vmatpush1.msra.mxu0 0.0
        %4328 = vmatprep.subr.mxu0 0.0
        %4329 = vmatpush1.msra.mxu0 0.0
        %4330 = vmatprep.subr.mxu0 0.0
        %4331 = vmatpush1.msra.mxu0 0.0
        %4332 = vmatprep.subr.mxu0 0.0
        %4333 = vmatpush1.msra.mxu0 0.0
        %4334 = vmatprep.subr.mxu0 0.0
        %4335 = vmatpush1.msra.mxu0 0.0
        %4336 = vmatprep.subr.mxu0 0.0
        %4337 = vmatpush1.msra.mxu0 0.0
        %4338 = vmatprep.subr.mxu0 0.0
        %4339 = vmatpush1.msra.mxu0 0.0
        %4340 = vmatprep.subr.mxu0 0.0
        %4341 = vmatpush1.msra.mxu0 0.0
        %4342 = vmatprep.subr.mxu0 0.0
        %4343 = vmatpush1.msra.mxu0 0.0
        %4344 = vmatprep.subr.mxu0 0.0
        %4345 = vmatpush1.msra.mxu0 0.0
        %4346 = vmatprep.subr.mxu0 0.0
        %4347 = vmatpush1.msra.mxu0 0.0
        %4348 = vmatprep.subr.mxu0 0.0
        %4349 = vmatpush1.msra.mxu0 0.0
        %4350 = vmatprep.subr.mxu0 0.0
        %4351 = vmatpush1.msra.mxu0 0.0
        %4352 = vmatprep.subr.mxu0 0.0
        %4353 = vmatpush1.msra.mxu0 0.0
        %4354 = vmatprep.subr.mxu0 0.0
        %4355 = vmatpush1.msra.mxu0 0.0
        %4356 = vmatprep.subr.mxu0 0.0
        %4357 = vmatpush1.msra.mxu0 0.0
        %4358 = vmatprep.subr.mxu0 0.0
        %4359 = vmatpush1.msra.mxu0 0.0
        %4360 = vmatprep.subr.mxu0 0.0
        %4361 = vmatpush1.msra.mxu0 0.0
        %4362 = vmatprep.subr.mxu0 0.0
        %4363 = vmatpush1.msra.mxu0 0.0
        %4364 = vmatprep.subr.mxu0 0.0
        %4365 = vmatpush1.msra.mxu0 0.0
        %4366 = vmatprep.subr.mxu0 0.0
        %4367 = vmatpush1.msra.mxu0 0.0
        %4368 = vmatprep.mubr.f32.mxu0 0.0
        %4369 = vmatmul.mubr.f32.gmra.mrb[0].mxu0 %v4302
        %v4370 = vpop.f32.mrb[0].mxu0
        %v4371 = vadd.f32 %v4278, %v4370
        %v4372 = vpop.f32.mrb[0].mxu0
        %4373 = vdwg.mxu0
        %v4382 = vsel %vm4288, %v4211, %v4202
        %v4383 = vsel %vm4290, %v4220, %v4382
        %v4384 = vsel %vm4292, %v4229, %v4383
        %v4385 = vsel %vm4294, %v4238, %v4384
        %v4386 = vsel %vm4296, %v4247, %v4385
        %v4387 = vsel %vm4298, %v4256, %v4386
        %v4388 = vsel %vm4300, %v4265, %v4387
        %v4390 = vadd.f32 %v4371, %v4388
        %4391 = vst.msk [vmem:[%s674] sm:$0xff] %vm1415, %v4390
        %s4392 = sand.u32 %s449, 1
        %s4393 = scalar_lea.sflag [#allocation4], %s4392
        %s4394 = sand.u32 %s449, 1
        %s4395 = smul.addr %s4394, 8
        %s4396 = scalar_lea.vmem [#allocation13], %s4395
        // Predicated region
        $region121: #{tpu_custom_call.1} parent=95 // pred_check
          %p4397 = pneg %p459
        $region122: #{tpu_custom_call.1} parent=95 // pred_check_branch
          %4399 = sbr.rel (%p4397) target = $region124
        $region123: #{tpu_custom_call.1} parent=95 // pred_region
          %s4401 = ssub.s32 128, 128
          %4402 = vsyncadd %s4393, %s4401
          %s4403 = smul.addr %s37, 128
          %s4404 = scalar_lea.hbm %s19, %s4403
          %s4406 = sshll.u32 %s4396, 4
          %s4407 = int_to_ptr.vmem [resolvable:$true] %s4406
          %4409 = dma.vmem_to_hbm [thread:$0]  %s4407, 128, %s4404, %s4393
        $region124: #{tpu_custom_call.1} parent=95 // pred_fallthru
          _
      $region96: #{tpu_custom_call.1} parent=5 // pred_fallthru
        _
      %p4410 = scmp.le.s32.totalorder 2, %s32
      // Predicated region
      $region125: #{tpu_custom_call.1} parent=5 // pred_check
        %p4411 = pneg %p4410
      $region126: #{tpu_custom_call.1} parent=5 // pred_check_branch
        %4413 = sbr.rel (%p4411) target = $region128
      $region127: #{tpu_custom_call.1} parent=5 // pred_region
        %s4414 = ssub.s32 %s32, 2
        // Predicated region
        $region129: #{tpu_custom_call.1} parent=127 // pred_check
          %p4415 = pneg %p465
        $region130: #{tpu_custom_call.1} parent=127 // pred_check_branch
          %4417 = sbr.rel (%p4415) target = $region132
        $region131: #{tpu_custom_call.1} parent=127 // pred_region
          %s4418 = sand.u32 %s450, 1
          %s4419 = scalar_lea.sflag [#allocation4], %s4418
          %s4420 = sand.u32 %s450, 1
          %s4421 = smul.addr %s4420, 8
          %s4422 = scalar_lea.vmem [#allocation13], %s4421
          %4423 = dma.done %s4419, 128
        $region132: #{tpu_custom_call.1} parent=127 // pred_fallthru
          _
      $region128: #{tpu_custom_call.1} parent=5 // pred_fallthru
        _
    $region6: #{tpu_custom_call.1} parent=1 // loop_footer
      %s36 = sadd.s32 1, %s32
    $region7: #{tpu_custom_call.1} parent=1 // loop_footer_branch
      %31 = sbr.rel target = $region3
    $region8: #{tpu_custom_call.1} parent=1 // loop_exit
      _
    %4424 = vsyncpa [#allocation3], 1
    %s4425 = scalar_lea.sflag [#allocation3], 1
    %4426 = vsyncpa %s4425, 1
    %4427 = vsyncpa [#allocation6], 1
    %4428 = vsyncpa [#allocation9], 1
    %4429 = vsyncpa [#allocation12], 1
    %4430 = vsyncpa [#allocation4], 1
    %s4431 = scalar_lea.sflag [#allocation4], 1
    %4432 = vsyncpa %s4431, 1

</llo_original>
